<compile_context>
chip_gen: v6e
topology: v6e:2x2x1
jax: 0.10.0
libtpu: 0.0.40
codegen_flags: <defaults>
</compile_context>

<pallas_src>
import functools
import re

import jax
import jax.numpy as jnp
from jax.experimental import pallas as pl
from jax.experimental.pallas import tpu as pltpu


# ----------------------------------------------------------------------------
# Kernel
# ----------------------------------------------------------------------------
def inr_kernel(x_ref, w1_ref, b1_ref, w2_ref, b2_ref, w3_ref, b3_ref, o_ref,
               *, compute_dtype):
    cdt = compute_dtype

    # x tile: (in_f, tile_n) -- points on the lane axis.
    x = x_ref[...].astype(cdt)
    w1 = w1_ref[...].astype(cdt)                  # (hidden, in_f)
    in_f = x.shape[0]

    # fc1: K == in_f is tiny, so do it on the VPU as in_f broadcast FMAs
    # (avoids MXU push/pop latency and (8,128) padding of the tiny operand).
    h = w1[:, 0:1] * x[0:1, :]                    # (hidden, tile_n)
    for k in range(1, in_f):                      # static unroll, in_f is small
        h = h + w1[:, k:k + 1] * x[k:k + 1, :]
    h = h + b1_ref[...].astype(cdt)               # bias (hidden, 1) broadcasts
    h = jnp.sin(h)                                # sin in compute dtype

    # fc2 on the MXU: (hidden, hidden) @ (hidden, tile_n); lane dim = tile_n.
    # Operands in compute dtype (bf16 on v6e/v7x), f32 accumulation.
    h = jnp.dot(w2_ref[...].astype(cdt), h.astype(cdt),
                preferred_element_type=jnp.float32)
    h = jnp.sin(h.astype(cdt) + b2_ref[...].astype(cdt))

    # fc3: (out_f, hidden) @ (hidden, tile_n) -> lane-dense (out_f, tile_n) store.
    out = jnp.dot(w3_ref[...].astype(cdt), h.astype(cdt),
                  preferred_element_type=jnp.float32)
    out = out + b3_ref[...].astype(jnp.float32)
    o_ref[...] = out.astype(o_ref.dtype)


# ----------------------------------------------------------------------------
# Chip / tiling heuristics
# ----------------------------------------------------------------------------
def _chip_generation():
    """Best-effort TPU generation from device_kind (0 if unknown)."""
    try:
        kind = jax.devices()[0].device_kind.lower()
    except Exception:
        return 0
    m = re.search(r"(\d+)", kind)
    return int(m.group(1)) if m else 0


def _choose_tile(n, tile_n):
    """Clamp the lane tile: multiple of 128, no gross over-padding of small N,
    and >= 2 grid steps when there is enough work (v7x megacore sharding)."""
    n128 = pl.cdiv(n, 128) * 128
    tile = tile_n
    if n128 >= 2 * 128:
        tile = min(tile, max(128, (n128 // 2) // 128 * 128))
    return max(128, min(tile, n128))


# ----------------------------------------------------------------------------
# Feature-major forward (preferred entry point: no wrapper transposes)
# ----------------------------------------------------------------------------
def inr_forward_fm(x_fm, params, *, tile_n=8192, out_dtype=None,
                   compute_dtype=None):
    """Run the 3-layer sine-MLP on feature-major points x_fm:[in_features, N].

    Returns feature-major output [out_features, N].  Params are in PyTorch
    nn.Linear layout: w:[out, in], b:[out].  Keeping coordinates feature-major
    across calls avoids the x.T / out.T XLA transposes that otherwise ~3x the
    HBM traffic of this memory-bound kernel.
    """
    w1, b1, w2, b2, w3, b3 = params
    in_f, n = x_fm.shape
    hidden = w1.shape[0]
    out_f = w3.shape[0]

    gen = _chip_generation()
    if compute_dtype is None:
        # bf16 VPU/EUP/MXU on v6e/v7x; v5e and older have no bf16 VPU/EUP.
        compute_dtype = jnp.bfloat16 if gen >= 6 else jnp.float32
    if out_dtype is None:
        out_dtype = x_fm.dtype   # pass out_dtype=jnp.bfloat16 to cut HBM writes

    in_bytes = jnp.dtype(x_fm.dtype).itemsize
    out_bytes = jnp.dtype(out_dtype).itemsize
    comp_bytes = jnp.dtype(compute_dtype).itemsize

    # Per-generation tile cap (v7x has 64 MiB VMEM vs 128 MiB on v5e/v6e) plus
    # an explicit VMEM-budget clamp: 2x double-buffered x, 2x double-buffered
    # out, ~4 live (hidden, tile) intermediates.
    gen_cap = 16384 if gen >= 7 else 32768
    per_lane = 2 * in_f * in_bytes + 2 * out_f * out_bytes + 4 * hidden * comp_bytes
    budget = 24 << 20
    vmem_cap = max(128, (budget // per_lane) // 128 * 128)
    tile_n = _choose_tile(n, min(tile_n, gen_cap, vmem_cap))

    n_pad = pl.cdiv(n, tile_n) * tile_n
    if n_pad != n:
        x_fm = jnp.pad(x_fm, ((0, 0), (0, n_pad - n)))

    # Biases as column vectors so they broadcast against (feat, tile_n) tiles.
    b1c = b1.reshape(hidden, 1)
    b2c = b2.reshape(hidden, 1)
    b3c = b3.reshape(out_f, 1)

    grid = (n_pad // tile_n,)

    # x / out tiled over the point (lane) axis; weights & biases are whole-array
    # constant blocks (block_shape == full shape satisfies the (8,128) rule).
    in_specs = [
        pl.BlockSpec((in_f, tile_n), lambda i: (0, i)),      # x tile
        pl.BlockSpec((hidden, in_f), lambda i: (0, 0)),      # w1
        pl.BlockSpec((hidden, 1), lambda i: (0, 0)),         # b1
        pl.BlockSpec((hidden, hidden), lambda i: (0, 0)),    # w2
        pl.BlockSpec((hidden, 1), lambda i: (0, 0)),         # b2
        pl.BlockSpec((out_f, hidden), lambda i: (0, 0)),     # w3
        pl.BlockSpec((out_f, 1), lambda i: (0, 0)),          # b3
    ]
    out_spec = pl.BlockSpec((out_f, tile_n), lambda i: (0, i))

    # Explicit scoped-VMEM limit sized from the tile (review item #2/#3).
    weight_bytes = 2 * 4 * (hidden * in_f + hidden + hidden * hidden + hidden
                            + out_f * hidden + out_f)
    vmem_limit = int(min(max(per_lane * tile_n + weight_bytes + (4 << 20),
                             16 << 20), 32 << 20))

    # Advisory cost so XLA can schedule neighbors around the custom call.
    flops = 2 * n_pad * (in_f * hidden + hidden * hidden + hidden * out_f)
    transcendentals = 2 * n_pad * hidden
    bytes_accessed = (
        n_pad * (in_f * in_bytes + out_f * out_bytes)
        + 4 * (hidden * in_f + hidden + hidden * hidden + hidden
               + out_f * hidden + out_f)
    )

    out_fm = pl.pallas_call(
        functools.partial(inr_kernel, compute_dtype=compute_dtype),
        out_shape=jax.ShapeDtypeStruct((out_f, n_pad), out_dtype),
        grid_spec=pltpu.PrefetchScalarGridSpec(
            num_scalar_prefetch=0,
            grid=grid,
            in_specs=in_specs,
            out_specs=out_spec,
        ),
        compiler_params=pltpu.CompilerParams(
            dimension_semantics=("parallel",),
            vmem_limit_bytes=vmem_limit,
        ),
        cost_estimate=pl.CostEstimate(
            flops=int(flops),
            transcendentals=int(transcendentals),
            bytes_accessed=int(bytes_accessed),
        ),
    )(x_fm, w1, b1c, w2, b2c, w3, b3c)

    return out_fm[:, :n]


# ----------------------------------------------------------------------------
# Point-major compatibility wrapper (matches the PyTorch module's [N, F] I/O)
# ----------------------------------------------------------------------------
def inr_forward(x, params, **kwargs):
    """x:[N, in_features] -> [N, out_features].  Prefer inr_forward_fm for
    repeated calls: it avoids the layout-plumbing transposes on both sides."""
    return inr_forward_fm(x.T, params, **kwargs).T


# ----------------------------------------------------------------------------
# Params / reference
# ----------------------------------------------------------------------------
def init_inr_params(key, in_features, out_features, hidden_size):
    """Deterministic init mimicking torch.nn.Linear defaults
    (uniform in +-1/sqrt(fan_in)).  Weights stored PyTorch-style [out, in]."""
    def linear(key, fan_in, fan_out):
        kw, kb = jax.random.split(key)
        bound = 1.0 / jnp.sqrt(fan_in)
        w = jax.random.uniform(kw, (fan_out, fan_in), jnp.float32, -bound, bound)
        b = jax.random.uniform(kb, (fan_out,), jnp.float32, -bound, bound)
        return w, b

    k1, k2, k3 = jax.random.split(key, 3)
    w1, b1 = linear(k1, in_features, hidden_size)
    w2, b2 = linear(k2, hidden_size, hidden_size)
    w3, b3 = linear(k3, hidden_size, out_features)
    return (w1, b1, w2, b2, w3, b3)


def inr_reference(x, params):
    """Pure-JAX reference (matches the PyTorch module)."""
    w1, b1, w2, b2, w3, b3 = params
    h = jnp.sin(x @ w1.T + b1)
    h = jnp.sin(h @ w2.T + b2)
    return h @ w3.T + b3


if __name__ == "__main__":
    key = jax.random.PRNGKey(0)
    k_param, k_x = jax.random.split(key)

    in_features = 2       # (x, y) coordinate INR
    out_features = 3      # RGB
    hidden_size = 32
    n_points = 1000       # not a multiple of 128 / tile: exercises the padding path

    params = init_inr_params(k_param, in_features, out_features, hidden_size)
    x = jax.random.uniform(k_x, (n_points, in_features), jnp.float32, -1.0, 1.0)
    ref = inr_reference(x, params)

    # 1) Exact-path check: f32 compute through the point-major wrapper.
    out = jax.block_until_ready(inr_forward(x, params, compute_dtype=jnp.float32))
    assert out.shape == (n_points, out_features)
    assert jnp.allclose(out, ref, atol=1e-5, rtol=1e-5), "f32 mismatch vs reference"

    # 2) Auto path (bf16 compute on v6e/v7x, f32 elsewhere) via the
    #    feature-major API (no wrapper transposes inside).
    out_fm = jax.block_until_ready(inr_forward_fm(x.T, params))
    tol = 5e-2 if _chip_generation() >= 6 else 1e-5
    assert out_fm.shape == (out_features, n_points)
    assert jnp.allclose(out_fm.T.astype(jnp.float32), ref, atol=tol, rtol=tol), \
        "auto-compute-dtype mismatch vs reference"

    print("KERNEL_OK")
</pallas_src>

<mosaic_0001>
module attributes {stable_mosaic.version = 11 : i64} {
  func.func @inr_kernel(%arg0: i32, %arg1: memref<2x512xf32, #tpu.memory_space<vmem>>, %arg2: memref<32x2xf32, #tpu.memory_space<vmem>>, %arg3: memref<32x1xf32, #tpu.memory_space<vmem>>, %arg4: memref<32x32xf32, #tpu.memory_space<vmem>>, %arg5: memref<32x1xf32, #tpu.memory_space<vmem>>, %arg6: memref<3x32xf32, #tpu.memory_space<vmem>>, %arg7: memref<3x1xf32, #tpu.memory_space<vmem>>, %arg8: memref<3x512xf32, #tpu.memory_space<vmem>>) attributes {dimension_semantics = [#tpu.dimension_semantics<parallel>], iteration_bounds = array<i64: 2>, scalar_prefetch = 0 : i64, scratch_operands = 0 : i64, tpu.core_type = #tpu.core_type<tc>, window_params = [{transform_indices = @transform_0, window_bounds = array<i64: 2, 512>}, {pipeline_mode = #tpu.pipeline_mode<synchronous>, transform_indices = @transform_1, window_bounds = array<i64: 32, 2>}, {pipeline_mode = #tpu.pipeline_mode<synchronous>, transform_indices = @transform_2, window_bounds = array<i64: 32, 1>}, {pipeline_mode = #tpu.pipeline_mode<synchronous>, transform_indices = @transform_3, window_bounds = array<i64: 32, 32>}, {pipeline_mode = #tpu.pipeline_mode<synchronous>, transform_indices = @transform_4, window_bounds = array<i64: 32, 1>}, {pipeline_mode = #tpu.pipeline_mode<synchronous>, transform_indices = @transform_5, window_bounds = array<i64: 3, 32>}, {pipeline_mode = #tpu.pipeline_mode<synchronous>, transform_indices = @transform_6, window_bounds = array<i64: 3, 1>}, {transform_indices = @transform_7, window_bounds = array<i64: 3, 512>}]} {
    %c0 = arith.constant 0 : index
    %c0_0 = arith.constant 0 : index
    %0 = vector.load %arg1[%c0, %c0_0] : memref<2x512xf32, #tpu.memory_space<vmem>>, vector<2x512xf32>
    %c0_1 = arith.constant 0 : index
    %c0_2 = arith.constant 0 : index
    %1 = vector.load %arg2[%c0_1, %c0_2] : memref<32x2xf32, #tpu.memory_space<vmem>>, vector<32x2xf32>
    %2 = vector.extract_strided_slice %1 {offsets = [0, 0], sizes = [32, 1], strides = [1, 1]} : vector<32x2xf32> to vector<32x1xf32>
    %3 = vector.extract_strided_slice %0 {offsets = [0, 0], sizes = [1, 512], strides = [1, 1]} : vector<2x512xf32> to vector<1x512xf32>
    %4 = vector.broadcast %2 : vector<32x1xf32> to vector<32x512xf32>
    %5 = vector.broadcast %3 : vector<1x512xf32> to vector<32x512xf32>
    %6 = arith.mulf %4, %5 : vector<32x512xf32>
    %7 = vector.extract_strided_slice %1 {offsets = [0, 1], sizes = [32, 1], strides = [1, 1]} : vector<32x2xf32> to vector<32x1xf32>
    %8 = vector.extract_strided_slice %0 {offsets = [1, 0], sizes = [1, 512], strides = [1, 1]} : vector<2x512xf32> to vector<1x512xf32>
    %9 = vector.broadcast %7 : vector<32x1xf32> to vector<32x512xf32>
    %10 = vector.broadcast %8 : vector<1x512xf32> to vector<32x512xf32>
    %11 = arith.mulf %9, %10 : vector<32x512xf32>
    %12 = arith.addf %6, %11 : vector<32x512xf32>
    %c0_3 = arith.constant 0 : index
    %c0_4 = arith.constant 0 : index
    %13 = vector.load %arg3[%c0_3, %c0_4] : memref<32x1xf32, #tpu.memory_space<vmem>>, vector<32x1xf32>
    %14 = vector.broadcast %13 : vector<32x1xf32> to vector<32x512xf32>
    %15 = arith.addf %12, %14 : vector<32x512xf32>
    %16 = math.sin %15 : vector<32x512xf32>
    %c0_5 = arith.constant 0 : index
    %c0_6 = arith.constant 0 : index
    %17 = vector.load %arg4[%c0_5, %c0_6] : memref<32x32xf32, #tpu.memory_space<vmem>>, vector<32x32xf32>
    %cst = arith.constant dense<0.000000e+00> : vector<32x512xf32>
    %18 = tpu.matmul %17, %16, %cst {dimension_numbers = #tpu.dot_dimension_numbers<[1], [0], [0], [1], [0, 0, 1, 1], [], []>} : vector<32x32xf32>, vector<32x512xf32>, vector<32x512xf32> -> vector<32x512xf32>
    %c0_7 = arith.constant 0 : index
    %c0_8 = arith.constant 0 : index
    %19 = vector.load %arg5[%c0_7, %c0_8] : memref<32x1xf32, #tpu.memory_space<vmem>>, vector<32x1xf32>
    %20 = vector.broadcast %19 : vector<32x1xf32> to vector<32x512xf32>
    %21 = arith.addf %18, %20 : vector<32x512xf32>
    %22 = math.sin %21 : vector<32x512xf32>
    %c0_9 = arith.constant 0 : index
    %c0_10 = arith.constant 0 : index
    %23 = vector.load %arg6[%c0_9, %c0_10] : memref<3x32xf32, #tpu.memory_space<vmem>>, vector<3x32xf32>
    %cst_11 = arith.constant dense<0.000000e+00> : vector<3x512xf32>
    %24 = tpu.matmul %23, %22, %cst_11 {dimension_numbers = #tpu.dot_dimension_numbers<[1], [0], [0], [1], [0, 0, 1, 1], [], []>} : vector<3x32xf32>, vector<32x512xf32>, vector<3x512xf32> -> vector<3x512xf32>
    %c0_12 = arith.constant 0 : index
    %c0_13 = arith.constant 0 : index
    %25 = vector.load %arg7[%c0_12, %c0_13] : memref<3x1xf32, #tpu.memory_space<vmem>>, vector<3x1xf32>
    %26 = vector.broadcast %25 : vector<3x1xf32> to vector<3x512xf32>
    %27 = arith.addf %24, %26 : vector<3x512xf32>
    %c0_14 = arith.constant 0 : index
    %c0_15 = arith.constant 0 : index
    %28 = vector.load %arg8[%c0_14, %c0_15] : memref<3x512xf32, #tpu.memory_space<vmem>>, vector<3x512xf32>
    tpu.vector_store %arg8[%c0_14, %c0_15], %27 {strides = array<i32>} : memref<3x512xf32, #tpu.memory_space<vmem>>, vector<3x512xf32>,
    return
  }
  func.func @transform_0(%arg0: i32) -> (i32, i32) {
    %c0_i32 = arith.constant 0 : i32
    %c0_i32_0 = arith.constant 0 : i32
    return %c0_i32, %arg0 : i32, i32
  }
  func.func @transform_1(%arg0: i32) -> (i32, i32) {
    %c0_i32 = arith.constant 0 : i32
    %c0_i32_0 = arith.constant 0 : i32
    %c0_i32_1 = arith.constant 0 : i32
    return %c0_i32, %c0_i32_0 : i32, i32
  }
  func.func @transform_2(%arg0: i32) -> (i32, i32) {
    %c0_i32 = arith.constant 0 : i32
    %c0_i32_0 = arith.constant 0 : i32
    %c0_i32_1 = arith.constant 0 : i32
    return %c0_i32, %c0_i32_0 : i32, i32
  }
  func.func @transform_3(%arg0: i32) -> (i32, i32) {
    %c0_i32 = arith.constant 0 : i32
    %c0_i32_0 = arith.constant 0 : i32
    %c0_i32_1 = arith.constant 0 : i32
    return %c0_i32, %c0_i32_0 : i32, i32
  }
  func.func @transform_4(%arg0: i32) -> (i32, i32) {
    %c0_i32 = arith.constant 0 : i32
    %c0_i32_0 = arith.constant 0 : i32
    %c0_i32_1 = arith.constant 0 : i32
    return %c0_i32, %c0_i32_0 : i32, i32
  }
  func.func @transform_5(%arg0: i32) -> (i32, i32) {
    %c0_i32 = arith.constant 0 : i32
    %c0_i32_0 = arith.constant 0 : i32
    %c0_i32_1 = arith.constant 0 : i32
    return %c0_i32, %c0_i32_0 : i32, i32
  }
  func.func @transform_6(%arg0: i32) -> (i32, i32) {
    %c0_i32 = arith.constant 0 : i32
    %c0_i32_0 = arith.constant 0 : i32
    %c0_i32_1 = arith.constant 0 : i32
    return %c0_i32, %c0_i32_0 : i32, i32
  }
  func.func @transform_7(%arg0: i32) -> (i32, i32) {
    %c0_i32 = arith.constant 0 : i32
    %c0_i32_0 = arith.constant 0 : i32
    return %c0_i32, %arg0 : i32, i32
  }
}

</mosaic_0001>

<llo_original>
// kernel: tpu_custom_call.1
$region0: #{tpu_custom_call.1}
  #allocation0 [shape = 'u32[]', space=smem, size = 0x4, offset = 0x4, fixed_abs, tag = 'smem constant byte address 0x4 - core index']
  #allocation1 [shape = 'u32[144,128]{1,0:T(1,128)}', space=vmem, size = 0x12000, scoped, tag = 'internal scratch']
  %s0 = inlined_call_operand.vmem [shape: f32[2,1024], index: 0, kind: input, shape index: {}]
  %s1 = inlined_call_operand.vmem [shape: f32[32,2], index: 1, kind: input, shape index: {}]
  %s2 = inlined_call_operand.vmem [shape: f32[32,1], index: 2, kind: input, shape index: {}]
  %s3 = inlined_call_operand.vmem [shape: f32[32,32], index: 3, kind: input, shape index: {}]
  %s4 = inlined_call_operand.vmem [shape: f32[32,1], index: 4, kind: input, shape index: {}]
  %s5 = inlined_call_operand.vmem [shape: f32[3,32], index: 5, kind: input, shape index: {}]
  %s6 = inlined_call_operand.vmem [shape: f32[3,1], index: 6, kind: input, shape index: {}]
  %s7 = inlined_call_operand.hbm [shape: f32[3,1024], index: 7, kind: output, shape index: {}]
  %s8 = sld [smem:[#allocation0]]
  $region61: #{tpu_custom_call.1} parent=0
    _
  %s10 = ssub.s32 1, %s8
  %s11 = scalar_select 0, %s10, %s8
  $region1: #{tpu_custom_call.1} parent=0
    #allocation2 [shape = 'u8[16384]{0}', space=vmem, size = 0x4000, scoped, tag = 'output window, operand 0']
    #allocation3 [shape = 's32[2]{0}', space=sflag, size = 0x8, scoped, tag = 'scoped memory for tpu_custom_call.1']
    %12 = vsyncpa [#allocation3], 0
    %s13 = scalar_lea.sflag [#allocation3], 1
    %14 = vsyncpa %s13, 0
    loop: start=0, step=1, limit=4
    $region2: #{tpu_custom_call.1} parent=1 // loop_pre_header
      _
    $region3: #{tpu_custom_call.1} parent=1 // loop_header
      %s16 = sphi 0, %s20
      %p17 = scmp.ge.s32.totalorder %s16, 4
      %s26 = sphi 0, %s28
      %s29 = sphi 0, %s26
      %s30 = sphi 0, %s29
      %s46 = sphi 0, %s30
      %s50 = sphi 0, %s50
      %s52 = sphi 0, %s50
      %s53 = sphi 0, %s52
      %s67 = sphi 0, %s53
      %s71 = sphi 0, %s71
      %s73 = sphi 0, %s71
      %s74 = sphi 0, %s73
      %s88 = sphi 0, %s74
      %s92 = sphi 0, %s92
      %s94 = sphi 0, %s92
      %s95 = sphi 0, %s94
      %s109 = sphi 0, %s95
      %s113 = sphi 0, %s113
      %s115 = sphi 0, %s113
      %s116 = sphi 0, %s115
      %s130 = sphi 0, %s116
      %s134 = sphi 0, %s134
      %s136 = sphi 0, %s134
      %s137 = sphi 0, %s136
      %s151 = sphi 0, %s137
      %s155 = sphi 0, %s155
      %s157 = sphi 0, %s155
      %s158 = sphi 0, %s157
      %s172 = sphi 0, %s158
      %s178 = sphi 0, %s180
      %s181 = sphi 0, %s178
      %s182 = sphi 0, %s181
      %s198 = sphi 0, %s182
    $region4: #{tpu_custom_call.1} parent=1 // loop_header_branch
      %19 = sbr.rel (%p17) target = $region8
    $region5: #{tpu_custom_call.1} parent=1 // loop_body
      %s21 = ssub.s32 %s16, 1
      %s22 = ssub.s32 %s16, 2
      %s23 = sadd.s32 %s16, 1
      %s24 = ssub.s32 %s16, %s23
      %p25 = scmp.eq.s32.totalorder %s24, 0
      %s27 = sadd.s32 %s26, 1
      %s28 = scalar_select %p25, %s26, %s27
      %p31 = pneg %p25
      %p32 = scmp.eq.s32.totalorder %s16, 1
      %p33 = por %p31, %p32
      %p34 = scmp.ne.s32.totalorder %s26, %s29
      %p35 = scmp.eq.s32.totalorder %s16, 0
      %p36 = por %p34, %p35
      %p37 = scmp.ne.s32.totalorder %s26, %s29
      %p38 = scmp.eq.s32.totalorder %s21, 1
      %p39 = por %p37, %p38
      %p40 = scmp.ne.s32.totalorder %s29, %s30
      %p41 = scmp.eq.s32.totalorder %s21, 0
      %p42 = por %p40, %p41
      %p43 = scmp.ne.s32.totalorder %s29, %s30
      %p44 = scmp.eq.s32.totalorder %s22, 1
      %p45 = por %p43, %p44
      %p47 = scmp.ne.s32.totalorder %s30, %s46
      %p48 = scmp.eq.s32.totalorder %s22, 0
      %p49 = por %p47, %p48
      %s51 = sadd.s32 %s50, 1
      %p54 = scmp.eq.s32.totalorder %s16, 1
      %p55 = scmp.ne.s32.totalorder %s50, %s52
      %p56 = scmp.eq.s32.totalorder %s16, 0
      %p57 = por %p55, %p56
      %p58 = scmp.ne.s32.totalorder %s50, %s52
      %p59 = scmp.eq.s32.totalorder %s21, 1
      %p60 = por %p58, %p59
      %p61 = scmp.ne.s32.totalorder %s52, %s53
      %p62 = scmp.eq.s32.totalorder %s21, 0
      %p63 = por %p61, %p62
      %p64 = scmp.ne.s32.totalorder %s52, %s53
      %p65 = scmp.eq.s32.totalorder %s22, 1
      %p66 = por %p64, %p65
      %p68 = scmp.ne.s32.totalorder %s53, %s67
      %p69 = scmp.eq.s32.totalorder %s22, 0
      %p70 = por %p68, %p69
      %s72 = sadd.s32 %s71, 1
      %p75 = scmp.eq.s32.totalorder %s16, 1
      %p76 = scmp.ne.s32.totalorder %s71, %s73
      %p77 = scmp.eq.s32.totalorder %s16, 0
      %p78 = por %p76, %p77
      %p79 = scmp.ne.s32.totalorder %s71, %s73
      %p80 = scmp.eq.s32.totalorder %s21, 1
      %p81 = por %p79, %p80
      %p82 = scmp.ne.s32.totalorder %s73, %s74
      %p83 = scmp.eq.s32.totalorder %s21, 0
      %p84 = por %p82, %p83
      %p85 = scmp.ne.s32.totalorder %s73, %s74
      %p86 = scmp.eq.s32.totalorder %s22, 1
      %p87 = por %p85, %p86
      %p89 = scmp.ne.s32.totalorder %s74, %s88
      %p90 = scmp.eq.s32.totalorder %s22, 0
      %p91 = por %p89, %p90
      %s93 = sadd.s32 %s92, 1
      %p96 = scmp.eq.s32.totalorder %s16, 1
      %p97 = scmp.ne.s32.totalorder %s92, %s94
      %p98 = scmp.eq.s32.totalorder %s16, 0
      %p99 = por %p97, %p98
      %p100 = scmp.ne.s32.totalorder %s92, %s94
      %p101 = scmp.eq.s32.totalorder %s21, 1
      %p102 = por %p100, %p101
      %p103 = scmp.ne.s32.totalorder %s94, %s95
      %p104 = scmp.eq.s32.totalorder %s21, 0
      %p105 = por %p103, %p104
      %p106 = scmp.ne.s32.totalorder %s94, %s95
      %p107 = scmp.eq.s32.totalorder %s22, 1
      %p108 = por %p106, %p107
      %p110 = scmp.ne.s32.totalorder %s95, %s109
      %p111 = scmp.eq.s32.totalorder %s22, 0
      %p112 = por %p110, %p111
      %s114 = sadd.s32 %s113, 1
      %p117 = scmp.eq.s32.totalorder %s16, 1
      %p118 = scmp.ne.s32.totalorder %s113, %s115
      %p119 = scmp.eq.s32.totalorder %s16, 0
      %p120 = por %p118, %p119
      %p121 = scmp.ne.s32.totalorder %s113, %s115
      %p122 = scmp.eq.s32.totalorder %s21, 1
      %p123 = por %p121, %p122
      %p124 = scmp.ne.s32.totalorder %s115, %s116
      %p125 = scmp.eq.s32.totalorder %s21, 0
      %p126 = por %p124, %p125
      %p127 = scmp.ne.s32.totalorder %s115, %s116
      %p128 = scmp.eq.s32.totalorder %s22, 1
      %p129 = por %p127, %p128
      %p131 = scmp.ne.s32.totalorder %s116, %s130
      %p132 = scmp.eq.s32.totalorder %s22, 0
      %p133 = por %p131, %p132
      %s135 = sadd.s32 %s134, 1
      %p138 = scmp.eq.s32.totalorder %s16, 1
      %p139 = scmp.ne.s32.totalorder %s134, %s136
      %p140 = scmp.eq.s32.totalorder %s16, 0
      %p141 = por %p139, %p140
      %p142 = scmp.ne.s32.totalorder %s134, %s136
      %p143 = scmp.eq.s32.totalorder %s21, 1
      %p144 = por %p142, %p143
      %p145 = scmp.ne.s32.totalorder %s136, %s137
      %p146 = scmp.eq.s32.totalorder %s21, 0
      %p147 = por %p145, %p146
      %p148 = scmp.ne.s32.totalorder %s136, %s137
      %p149 = scmp.eq.s32.totalorder %s22, 1
      %p150 = por %p148, %p149
      %p152 = scmp.ne.s32.totalorder %s137, %s151
      %p153 = scmp.eq.s32.totalorder %s22, 0
      %p154 = por %p152, %p153
      %s156 = sadd.s32 %s155, 1
      %p159 = scmp.eq.s32.totalorder %s16, 1
      %p160 = scmp.ne.s32.totalorder %s155, %s157
      %p161 = scmp.eq.s32.totalorder %s16, 0
      %p162 = por %p160, %p161
      %p163 = scmp.ne.s32.totalorder %s155, %s157
      %p164 = scmp.eq.s32.totalorder %s21, 1
      %p165 = por %p163, %p164
      %p166 = scmp.ne.s32.totalorder %s157, %s158
      %p167 = scmp.eq.s32.totalorder %s21, 0
      %p168 = por %p166, %p167
      %p169 = scmp.ne.s32.totalorder %s157, %s158
      %p170 = scmp.eq.s32.totalorder %s22, 1
      %p171 = por %p169, %p170
      %p173 = scmp.ne.s32.totalorder %s158, %s172
      %p174 = scmp.eq.s32.totalorder %s22, 0
      %p175 = por %p173, %p174
      %s176 = ssub.s32 %s16, %s23
      %p177 = scmp.eq.s32.totalorder %s176, 0
      %s179 = sadd.s32 %s178, 1
      %s180 = scalar_select %p177, %s178, %s179
      %p183 = pneg %p177
      %p184 = scmp.eq.s32.totalorder %s16, 1
      %p185 = por %p183, %p184
      %p186 = scmp.ne.s32.totalorder %s178, %s181
      %p187 = scmp.eq.s32.totalorder %s16, 0
      %p188 = por %p186, %p187
      %p189 = scmp.ne.s32.totalorder %s178, %s181
      %p190 = scmp.eq.s32.totalorder %s21, 1
      %p191 = por %p189, %p190
      %p192 = scmp.ne.s32.totalorder %s181, %s182
      %p193 = scmp.eq.s32.totalorder %s21, 0
      %p194 = por %p192, %p193
      %p195 = scmp.ne.s32.totalorder %s181, %s182
      %p196 = scmp.eq.s32.totalorder %s22, 1
      %p197 = por %p195, %p196
      %p199 = scmp.ne.s32.totalorder %s182, %s198
      %p200 = scmp.eq.s32.totalorder %s22, 0
      %p201 = por %p199, %p200
      %p202 = scmp.le.s32.totalorder 1, %s16
      %p203 = scmp.lt.s32.totalorder %s16, 3
      %p204 = pnand %p202, %p203
      %p205 = pneg %p204
      // Predicated region
      $region9: #{tpu_custom_call.1} parent=5 // pred_check
        _
      $region10: #{tpu_custom_call.1} parent=5 // pred_check_branch
        %207 = sbr.rel (%p204) target = $region12
      $region11: #{tpu_custom_call.1} parent=5 // pred_region
        %s208 = ssub.s32 %s16, 1
        // Predicated region
        $region13: #{tpu_custom_call.1} parent=11 // pred_check
          %p209 = pneg %p63
        $region14: #{tpu_custom_call.1} parent=11 // pred_check_branch
          %211 = sbr.rel (%p209) target = $region16
        $region15: #{tpu_custom_call.1} parent=11 // pred_region
          _
        $region16: #{tpu_custom_call.1} parent=11 // pred_fallthru
          _
        // Predicated region
        $region17: #{tpu_custom_call.1} parent=11 // pred_check
          %p212 = pneg %p84
        $region18: #{tpu_custom_call.1} parent=11 // pred_check_branch
          %214 = sbr.rel (%p212) target = $region20
        $region19: #{tpu_custom_call.1} parent=11 // pred_region
          _
        $region20: #{tpu_custom_call.1} parent=11 // pred_fallthru
          _
        // Predicated region
        $region21: #{tpu_custom_call.1} parent=11 // pred_check
          %p215 = pneg %p105
        $region22: #{tpu_custom_call.1} parent=11 // pred_check_branch
          %217 = sbr.rel (%p215) target = $region24
        $region23: #{tpu_custom_call.1} parent=11 // pred_region
          _
        $region24: #{tpu_custom_call.1} parent=11 // pred_fallthru
          _
        // Predicated region
        $region25: #{tpu_custom_call.1} parent=11 // pred_check
          %p218 = pneg %p126
        $region26: #{tpu_custom_call.1} parent=11 // pred_check_branch
          %220 = sbr.rel (%p218) target = $region28
        $region27: #{tpu_custom_call.1} parent=11 // pred_region
          _
        $region28: #{tpu_custom_call.1} parent=11 // pred_fallthru
          _
        // Predicated region
        $region29: #{tpu_custom_call.1} parent=11 // pred_check
          %p221 = pneg %p147
        $region30: #{tpu_custom_call.1} parent=11 // pred_check_branch
          %223 = sbr.rel (%p221) target = $region32
        $region31: #{tpu_custom_call.1} parent=11 // pred_region
          _
        $region32: #{tpu_custom_call.1} parent=11 // pred_fallthru
          _
        // Predicated region
        $region33: #{tpu_custom_call.1} parent=11 // pred_check
          %p224 = pneg %p168
        $region34: #{tpu_custom_call.1} parent=11 // pred_check_branch
          %226 = sbr.rel (%p224) target = $region36
        $region35: #{tpu_custom_call.1} parent=11 // pred_region
          _
        $region36: #{tpu_custom_call.1} parent=11 // pred_fallthru
          _
      $region12: #{tpu_custom_call.1} parent=5 // pred_fallthru
        _
      %p227 = scmp.lt.s32.totalorder %s16, 2
      // Predicated region
      $region37: #{tpu_custom_call.1} parent=5 // pred_check
        %p228 = pneg %p227
      $region38: #{tpu_custom_call.1} parent=5 // pred_check_branch
        %230 = sbr.rel (%p228) target = $region40
      $region39: #{tpu_custom_call.1} parent=5 // pred_region
        // Predicated region
        $region41: #{tpu_custom_call.1} parent=39 // pred_check
          %p231 = pneg %p36
        $region42: #{tpu_custom_call.1} parent=39 // pred_check_branch
          %233 = sbr.rel (%p231) target = $region44
        $region43: #{tpu_custom_call.1} parent=39 // pred_region
          %s234 = smul.u32 4, %s16
          %p235 = scmp.lt.s32.totalorder %s234, 7
          %s236 = scalar_select %p235, %s234, 7
          %s237 = smul.addr %s236, 2
          %s238 = scalar_lea.vmem %s0, %s237
          %s239 = smul.u32 4, %s16
        $region44: #{tpu_custom_call.1} parent=39 // pred_fallthru
          _
      $region40: #{tpu_custom_call.1} parent=5 // pred_fallthru
        _
      %p240 = scmp.le.s32.totalorder 1, %s16
      %p241 = scmp.lt.s32.totalorder %s16, 3
      %p242 = pnand %p240, %p241
      %p243 = pneg %p242
      // Predicated region
      $region45: #{tpu_custom_call.1} parent=5 // pred_check
        _
      $region46: #{tpu_custom_call.1} parent=5 // pred_check_branch
        %245 = sbr.rel (%p242) target = $region48
      $region47: #{tpu_custom_call.1} parent=5 // pred_region
        %s246 = ssub.s32 %s16, 1
        %s247 = smul.u32 4, %s21
        %p248 = scmp.lt.s32.totalorder %s247, 7
        %s249 = scalar_select %p248, %s247, 7
        %s250 = smul.addr %s249, 2
        %s251 = scalar_lea.vmem %s0, %s250
        %p252 = pneg %p42
        %p253 = pneg %p39
        %p254 = pneg %p63
        %p255 = pneg %p60
        %p256 = pneg %p84
        %p257 = pneg %p81
        %p258 = pneg %p105
        %p259 = pneg %p102
        %p260 = pneg %p126
        %p261 = pneg %p123
        %p262 = pneg %p147
        %p263 = pneg %p144
        %p264 = pneg %p168
        %p265 = pneg %p165
        %p266 = pneg %p194
        %p267 = pneg %p191
        %s268 = sand.u32 %s181, 1
        %s269 = scalar_lea.sflag [#allocation3], %s268
        %s270 = sand.u32 %s181, 1
        %s271 = smul.addr %s270, 16
        %s272 = scalar_lea.vmem [#allocation2], %s271
        %s273 = smul.u32 4, %s21
        %p274 = scmp.lt.s32.totalorder %s273, 7
        %s275 = scalar_select %p274, %s273, 7
        %s276 = smul.addr %s275, 2
        %s277 = scalar_lea.vmem %s0, %s276
        %s278 = smul.u32 4, %s21
        %s279 = smul.u32 4, %s21
        %v280 = vld [vmem:[%s277] sm:$0xff]
        %v281 = vld [vmem:[%s1] sm:$0xff]
        %v282 = vld [vmem:[%s1 + $0x8] sm:$0xff]
        %v283 = vld [vmem:[%s1 + $0x10] sm:$0xff]
        %v284 = vld [vmem:[%s1 + $0x18] sm:$0xff]
        %286 = vset.pattern.permute.xlu0 0
        %287 = vperm.xlu0 %286, %v281
        %v288 = vpop.permute.xlu0 %287
        %291 = vset.pattern.permute.xlu0 0
        %292 = vperm.xlu0 %291, %v282
        %v293 = vpop.permute.xlu0 %292
        %296 = vset.pattern.permute.xlu0 0
        %297 = vperm.xlu0 %296, %v283
        %v298 = vpop.permute.xlu0 %297
        %301 = vset.pattern.permute.xlu0 0
        %302 = vperm.xlu0 %301, %v284
        %v303 = vpop.permute.xlu0 %302
        %v306 = vlaneseq
        %v307 = vshrl.u32 %v306, 7
        %v308 = vsub.s32 0, %v307
        %v309 = vrot.slane %v280, %v308
        %v310 = vlaneseq
        %v311 = vshrl.u32 %v310, 7
        %v312 = vsub.s32 2, %v311
        %v313 = vrot.slane %v280, %v312
        %v314 = vlaneseq
        %v315 = vshrl.u32 %v314, 7
        %v316 = vsub.s32 4, %v315
        %v317 = vrot.slane %v280, %v316
        %v318 = vlaneseq
        %v319 = vshrl.u32 %v318, 7
        %v320 = vsub.s32 6, %v319
        %v321 = vrot.slane %v280, %v320
        %v326 = vlaneseq
        %v327 = vshrl.u32 %v326, 7
        %v328 = vsub.s32 0, %v327
        %v329 = vrot.slane %v309, %v328
        %v330 = vlaneseq
        %v331 = vshrl.u32 %v330, 7
        %v332 = vsub.s32 0, %v331
        %v333 = vrot.slane %v313, %v332
        %v334 = vlaneseq
        %v335 = vshrl.u32 %v334, 7
        %v336 = vsub.s32 0, %v335
        %v337 = vrot.slane %v317, %v336
        %v338 = vlaneseq
        %v339 = vshrl.u32 %v338, 7
        %v340 = vsub.s32 0, %v339
        %v341 = vrot.slane %v321, %v340
        %v342 = vmul.f32 %v288, %v329
        %v343 = vmul.f32 %v288, %v333
        %v344 = vmul.f32 %v288, %v337
        %v345 = vmul.f32 %v288, %v341
        %v346 = vmul.f32 %v293, %v329
        %v347 = vmul.f32 %v293, %v333
        %v348 = vmul.f32 %v293, %v337
        %v349 = vmul.f32 %v293, %v341
        %v350 = vmul.f32 %v298, %v329
        %v351 = vmul.f32 %v298, %v333
        %v352 = vmul.f32 %v298, %v337
        %v353 = vmul.f32 %v298, %v341
        %v354 = vmul.f32 %v303, %v329
        %v355 = vmul.f32 %v303, %v333
        %v356 = vmul.f32 %v303, %v337
        %v357 = vmul.f32 %v303, %v341
        %358 = vset.pattern.permute.xlu0 1
        %359 = vperm.xlu0 %358, %v281
        %v360 = vpop.permute.xlu0 %359
        %362 = vset.pattern.permute.xlu0 1
        %363 = vperm.xlu0 %362, %v282
        %v364 = vpop.permute.xlu0 %363
        %366 = vset.pattern.permute.xlu0 1
        %367 = vperm.xlu0 %366, %v283
        %v368 = vpop.permute.xlu0 %367
        %370 = vset.pattern.permute.xlu0 1
        %371 = vperm.xlu0 %370, %v284
        %v372 = vpop.permute.xlu0 %371
        %v374 = vlaneseq
        %v375 = vshrl.u32 %v374, 7
        %v376 = vsub.s32 1, %v375
        %v377 = vrot.slane %v280, %v376
        %v378 = vlaneseq
        %v379 = vshrl.u32 %v378, 7
        %v380 = vsub.s32 3, %v379
        %v381 = vrot.slane %v280, %v380
        %v382 = vlaneseq
        %v383 = vshrl.u32 %v382, 7
        %v384 = vsub.s32 5, %v383
        %v385 = vrot.slane %v280, %v384
        %v386 = vlaneseq
        %v387 = vshrl.u32 %v386, 7
        %v388 = vsub.s32 7, %v387
        %v389 = vrot.slane %v280, %v388
        %v394 = vlaneseq
        %v395 = vshrl.u32 %v394, 7
        %v396 = vsub.s32 1, %v395
        %v397 = vrot.slane %v377, %v396
        %v398 = vlaneseq
        %v399 = vshrl.u32 %v398, 7
        %v400 = vsub.s32 1, %v399
        %v401 = vrot.slane %v381, %v400
        %v402 = vlaneseq
        %v403 = vshrl.u32 %v402, 7
        %v404 = vsub.s32 1, %v403
        %v405 = vrot.slane %v385, %v404
        %v406 = vlaneseq
        %v407 = vshrl.u32 %v406, 7
        %v408 = vsub.s32 1, %v407
        %v409 = vrot.slane %v389, %v408
        %v410 = vmul.f32 %v360, %v397
        %v411 = vmul.f32 %v360, %v401
        %v412 = vmul.f32 %v360, %v405
        %v413 = vmul.f32 %v360, %v409
        %v414 = vmul.f32 %v364, %v397
        %v415 = vmul.f32 %v364, %v401
        %v416 = vmul.f32 %v364, %v405
        %v417 = vmul.f32 %v364, %v409
        %v418 = vmul.f32 %v368, %v397
        %v419 = vmul.f32 %v368, %v401
        %v420 = vmul.f32 %v368, %v405
        %v421 = vmul.f32 %v368, %v409
        %v422 = vmul.f32 %v372, %v397
        %v423 = vmul.f32 %v372, %v401
        %v424 = vmul.f32 %v372, %v405
        %v425 = vmul.f32 %v372, %v409
        %v426 = vadd.f32 %v342, %v410
        %v427 = vadd.f32 %v343, %v411
        %v428 = vadd.f32 %v344, %v412
        %v429 = vadd.f32 %v345, %v413
        %v430 = vadd.f32 %v346, %v414
        %v431 = vadd.f32 %v347, %v415
        %v432 = vadd.f32 %v348, %v416
        %v433 = vadd.f32 %v349, %v417
        %v434 = vadd.f32 %v350, %v418
        %v435 = vadd.f32 %v351, %v419
        %v436 = vadd.f32 %v352, %v420
        %v437 = vadd.f32 %v353, %v421
        %v438 = vadd.f32 %v354, %v422
        %v439 = vadd.f32 %v355, %v423
        %v440 = vadd.f32 %v356, %v424
        %v441 = vadd.f32 %v357, %v425
        %v442 = vld [vmem:[%s2] sm:$0xff]
        %v443 = vld [vmem:[%s2 + $0x8] sm:$0xff]
        %v444 = vld [vmem:[%s2 + $0x10] sm:$0xff]
        %v445 = vld [vmem:[%s2 + $0x18] sm:$0xff]
        %447 = vset.pattern.permute.xlu0 0
        %448 = vperm.xlu0 %447, %v442
        %v449 = vpop.permute.xlu0 %448
        %452 = vset.pattern.permute.xlu0 0
        %453 = vperm.xlu0 %452, %v443
        %v454 = vpop.permute.xlu0 %453
        %457 = vset.pattern.permute.xlu0 0
        %458 = vperm.xlu0 %457, %v444
        %v459 = vpop.permute.xlu0 %458
        %462 = vset.pattern.permute.xlu0 0
        %463 = vperm.xlu0 %462, %v445
        %v464 = vpop.permute.xlu0 %463
        %v466 = vadd.f32 %v426, %v449
        %v467 = vadd.f32 %v427, %v449
        %v468 = vadd.f32 %v428, %v449
        %v469 = vadd.f32 %v429, %v449
        %v470 = vadd.f32 %v430, %v454
        %v471 = vadd.f32 %v431, %v454
        %v472 = vadd.f32 %v432, %v454
        %v473 = vadd.f32 %v433, %v454
        %v474 = vadd.f32 %v434, %v459
        %v475 = vadd.f32 %v435, %v459
        %v476 = vadd.f32 %v436, %v459
        %v477 = vadd.f32 %v437, %v459
        %v478 = vadd.f32 %v438, %v464
        %v479 = vadd.f32 %v439, %v464
        %v480 = vadd.f32 %v440, %v464
        %v481 = vadd.f32 %v441, %v464
        %v482 = vand.u32 2147483647, %v466
        %vm483 = vcmp.le.f32.partialorder %v482, 0.7853982
        %vm484 = vcmp.lt.s32.totalorder %v466, 0
        %v485 = vand.u32 %v466, 2139095040
        %v486 = vshrl.u32 %v485, 23
        %v487 = vsub.s32 %v486, 127
        %v488 = vand.u32 2147483647, %v466
        %v489 = vand.u32 %v488, 8388607
        %v490 = vor.u32 %v489, 8388608
        %v491 = vsub.s32 0, %v490
        %v492 = vadd.s32 %v487, 1
        %vm493 = vcmp.gt.s32.totalorder %v492, 0
        %v494 = vsel %vm493, %v492, 0
        %v495 = vshrl.u32 %v494, 5
        %v496 = vand.u32 %v494, 31
        %v497 = vsub.s32 32, %v496
        %v498 = vshrl.u32 683565275, %v497
        %v499 = vshll.u32 683565275, %v496
        %v500 = vshrl.u32 2475754826, %v497
        %v501 = vor.u32 %v499, %v500
        %v502 = vshll.u32 2475754826, %v496
        %v503 = vshrl.u32 2131351028, %v497
        %v504 = vor.u32 %v502, %v503
        %v505 = vshll.u32 2131351028, %v496
        %v506 = vshrl.u32 2102212464, %v497
        %v507 = vor.u32 %v505, %v506
        %v508 = vshll.u32 2102212464, %v496
        %v509 = vshrl.u32 920167782, %v497
        %v510 = vor.u32 %v508, %v509
        %v511 = vshll.u32 920167782, %v496
        %v512 = vshrl.u32 1326507024, %v497
        %v513 = vor.u32 %v511, %v512
        %vm514 = vcmp.lt.s32.totalorder %v495, 1
        %vm515 = vcmp.lt.s32.totalorder %v495, 2
        %vm516 = vcmp.lt.s32.totalorder %v495, 3
        %vm517 = vcmp.lt.s32.totalorder %v495, 4
        %v518 = vsel %vm514, %v498, %v501
        %v519 = vsel %vm517, %v507, 2102212464
        %v520 = vsel %vm516, %v504, %v519
        %v521 = vsel %vm515, %v518, %v520
        %v522 = vsel %vm514, %v501, %v504
        %v523 = vsel %vm517, %v510, 920167782
        %v524 = vsel %vm516, %v507, %v523
        %v525 = vsel %vm515, %v522, %v524
        %v526 = vsel %vm514, %v504, %v507
        %v527 = vsel %vm517, %v513, 1326507024
        %v528 = vsel %vm516, %v510, %v527
        %v529 = vsel %vm515, %v526, %v528
        %v530 = vshll.u32 %v490, 8
        %v531 = vmul.u32.u64.compose %v530, %v529
        %v532 = vextract.low.u32 %v531
        %v533 = vextract.high.u32 %v531
        %v534 = vmul.u32.u64.compose %v530, %v525
        %v535 = vextract.low.u32 %v534
        %v536 = vextract.high.u32 %v534
        %v537 = vmul.u32 %v530, %v521
        %v538 = vadd.s32 %v533, %v535
        %vm539 = vc.u32 %v533, %v535
        %v540 = vadd.s32 %v536, 1
        %v541 = vsel %vm539, %v540, %v536
        %v542 = vadd.s32 %v537, %v541
        %v543 = vadd.s32 %v542, 536870912
        %v544 = vshrl.u32 %v543, 30
        %v545 = vshll.u32 %v544, 30
        %v546 = vsub.s32 %v542, %v545
        %vm547 = vcmp.lt.s32.totalorder %v546, 0
        %v548 = vsub.s32 0, %v546
        %v549 = vsel %vm547, %v548, %v546
        %v550 = vclz %v549
        %v551 = vsub.s32 %v550, 2
        %vm552 = vcmp.gt.s32.totalorder 0, %v551
        %v553 = vsel %vm552, 0, %v551
        %v554 = vsub.s32 32, %v553
        %v555 = vshll.u32 %v546, %v553
        %v556 = vshrl.u32 %v538, %v554
        %v557 = vor.u32 %v555, %v556
        %v558 = vsub.s32 4294967266, %v553
        %v559 = vadd.s32 %v558, 127
        %v560 = vshll.u32 %v559, 23
        %v561 = vor.u32 4788187, %v560
        %v562 = vand.u32 2147483647, %v561
        %v564 = vcvt.s32.f32 %v557
        %v565 = vmul.f32 %v564, %v562
        %v566 = vxor.u32 %v565, 2147483648
        %v567 = vsel %vm484, %v566, %v565
        %v568 = vsub.s32 4, %v544
        %v569 = vsel %vm484, %v568, %v544
        %v570 = vsel %vm483, %v466, %v567
        %v571 = vsel %vm483, 0, %v569
        %v572 = vcosq.f32.pop %v570
        %v573 = vsinq.f32.pop %v570
        %vm574 = vweird.f32 %v466
        %v575 = vadd.s32 %v571, 3
        %v576 = vand.u32 %v575, 3
        %vm577 = vcmp.lt.s32.totalorder %v576, 2
        %vm578 = vcmp.eq.s32.totalorder %v576, 0
        %v579 = vxor.u32 %v573, 2147483648
        %v580 = vsel %vm578, %v572, %v579
        %vm581 = vcmp.eq.s32.totalorder %v576, 2
        %v582 = vxor.u32 %v572, 2147483648
        %v583 = vsel %vm581, %v582, %v573
        %v584 = vsel %vm577, %v580, %v583
        %v585 = vsel %vm574, nan, %v584
        %v586 = vand.u32 2147483647, %v467
        %vm587 = vcmp.le.f32.partialorder %v586, 0.7853982
        %vm588 = vcmp.lt.s32.totalorder %v467, 0
        %v589 = vand.u32 %v467, 2139095040
        %v590 = vshrl.u32 %v589, 23
        %v591 = vsub.s32 %v590, 127
        %v592 = vand.u32 2147483647, %v467
        %v593 = vand.u32 %v592, 8388607
        %v594 = vor.u32 %v593, 8388608
        %v595 = vsub.s32 0, %v594
        %v596 = vadd.s32 %v591, 1
        %vm597 = vcmp.gt.s32.totalorder %v596, 0
        %v598 = vsel %vm597, %v596, 0
        %v599 = vshrl.u32 %v598, 5
        %v600 = vand.u32 %v598, 31
        %v601 = vsub.s32 32, %v600
        %v602 = vshrl.u32 683565275, %v601
        %v603 = vshll.u32 683565275, %v600
        %v604 = vshrl.u32 2475754826, %v601
        %v605 = vor.u32 %v603, %v604
        %v606 = vshll.u32 2475754826, %v600
        %v607 = vshrl.u32 2131351028, %v601
        %v608 = vor.u32 %v606, %v607
        %v609 = vshll.u32 2131351028, %v600
        %v610 = vshrl.u32 2102212464, %v601
        %v611 = vor.u32 %v609, %v610
        %v612 = vshll.u32 2102212464, %v600
        %v613 = vshrl.u32 920167782, %v601
        %v614 = vor.u32 %v612, %v613
        %v615 = vshll.u32 920167782, %v600
        %v616 = vshrl.u32 1326507024, %v601
        %v617 = vor.u32 %v615, %v616
        %vm618 = vcmp.lt.s32.totalorder %v599, 1
        %vm619 = vcmp.lt.s32.totalorder %v599, 2
        %vm620 = vcmp.lt.s32.totalorder %v599, 3
        %vm621 = vcmp.lt.s32.totalorder %v599, 4
        %v622 = vsel %vm618, %v602, %v605
        %v623 = vsel %vm621, %v611, 2102212464
        %v624 = vsel %vm620, %v608, %v623
        %v625 = vsel %vm619, %v622, %v624
        %v626 = vsel %vm618, %v605, %v608
        %v627 = vsel %vm621, %v614, 920167782
        %v628 = vsel %vm620, %v611, %v627
        %v629 = vsel %vm619, %v626, %v628
        %v630 = vsel %vm618, %v608, %v611
        %v631 = vsel %vm621, %v617, 1326507024
        %v632 = vsel %vm620, %v614, %v631
        %v633 = vsel %vm619, %v630, %v632
        %v634 = vshll.u32 %v594, 8
        %v635 = vmul.u32.u64.compose %v634, %v633
        %v636 = vextract.low.u32 %v635
        %v637 = vextract.high.u32 %v635
        %v638 = vmul.u32.u64.compose %v634, %v629
        %v639 = vextract.low.u32 %v638
        %v640 = vextract.high.u32 %v638
        %v641 = vmul.u32 %v634, %v625
        %v642 = vadd.s32 %v637, %v639
        %vm643 = vc.u32 %v637, %v639
        %v644 = vadd.s32 %v640, 1
        %v645 = vsel %vm643, %v644, %v640
        %v646 = vadd.s32 %v641, %v645
        %v647 = vadd.s32 %v646, 536870912
        %v648 = vshrl.u32 %v647, 30
        %v649 = vshll.u32 %v648, 30
        %v650 = vsub.s32 %v646, %v649
        %vm651 = vcmp.lt.s32.totalorder %v650, 0
        %v652 = vsub.s32 0, %v650
        %v653 = vsel %vm651, %v652, %v650
        %v654 = vclz %v653
        %v655 = vsub.s32 %v654, 2
        %vm656 = vcmp.gt.s32.totalorder 0, %v655
        %v657 = vsel %vm656, 0, %v655
        %v658 = vsub.s32 32, %v657
        %v659 = vshll.u32 %v650, %v657
        %v660 = vshrl.u32 %v642, %v658
        %v661 = vor.u32 %v659, %v660
        %v662 = vsub.s32 4294967266, %v657
        %v663 = vadd.s32 %v662, 127
        %v664 = vshll.u32 %v663, 23
        %v665 = vor.u32 4788187, %v664
        %v666 = vand.u32 2147483647, %v665
        %v668 = vcvt.s32.f32 %v661
        %v669 = vmul.f32 %v668, %v666
        %v670 = vxor.u32 %v669, 2147483648
        %v671 = vsel %vm588, %v670, %v669
        %v672 = vsub.s32 4, %v648
        %v673 = vsel %vm588, %v672, %v648
        %v674 = vsel %vm587, %v467, %v671
        %v675 = vsel %vm587, 0, %v673
        %v676 = vcosq.f32.pop %v674
        %v677 = vsinq.f32.pop %v674
        %vm678 = vweird.f32 %v467
        %v679 = vadd.s32 %v675, 3
        %v680 = vand.u32 %v679, 3
        %vm681 = vcmp.lt.s32.totalorder %v680, 2
        %vm682 = vcmp.eq.s32.totalorder %v680, 0
        %v683 = vxor.u32 %v677, 2147483648
        %v684 = vsel %vm682, %v676, %v683
        %vm685 = vcmp.eq.s32.totalorder %v680, 2
        %v686 = vxor.u32 %v676, 2147483648
        %v687 = vsel %vm685, %v686, %v677
        %v688 = vsel %vm681, %v684, %v687
        %v689 = vsel %vm678, nan, %v688
        %v690 = vand.u32 2147483647, %v468
        %vm691 = vcmp.le.f32.partialorder %v690, 0.7853982
        %vm692 = vcmp.lt.s32.totalorder %v468, 0
        %v693 = vand.u32 %v468, 2139095040
        %v694 = vshrl.u32 %v693, 23
        %v695 = vsub.s32 %v694, 127
        %v696 = vand.u32 2147483647, %v468
        %v697 = vand.u32 %v696, 8388607
        %v698 = vor.u32 %v697, 8388608
        %v699 = vsub.s32 0, %v698
        %v700 = vadd.s32 %v695, 1
        %vm701 = vcmp.gt.s32.totalorder %v700, 0
        %v702 = vsel %vm701, %v700, 0
        %v703 = vshrl.u32 %v702, 5
        %v704 = vand.u32 %v702, 31
        %v705 = vsub.s32 32, %v704
        %v706 = vshrl.u32 683565275, %v705
        %v707 = vshll.u32 683565275, %v704
        %v708 = vshrl.u32 2475754826, %v705
        %v709 = vor.u32 %v707, %v708
        %v710 = vshll.u32 2475754826, %v704
        %v711 = vshrl.u32 2131351028, %v705
        %v712 = vor.u32 %v710, %v711
        %v713 = vshll.u32 2131351028, %v704
        %v714 = vshrl.u32 2102212464, %v705
        %v715 = vor.u32 %v713, %v714
        %v716 = vshll.u32 2102212464, %v704
        %v717 = vshrl.u32 920167782, %v705
        %v718 = vor.u32 %v716, %v717
        %v719 = vshll.u32 920167782, %v704
        %v720 = vshrl.u32 1326507024, %v705
        %v721 = vor.u32 %v719, %v720
        %vm722 = vcmp.lt.s32.totalorder %v703, 1
        %vm723 = vcmp.lt.s32.totalorder %v703, 2
        %vm724 = vcmp.lt.s32.totalorder %v703, 3
        %vm725 = vcmp.lt.s32.totalorder %v703, 4
        %v726 = vsel %vm722, %v706, %v709
        %v727 = vsel %vm725, %v715, 2102212464
        %v728 = vsel %vm724, %v712, %v727
        %v729 = vsel %vm723, %v726, %v728
        %v730 = vsel %vm722, %v709, %v712
        %v731 = vsel %vm725, %v718, 920167782
        %v732 = vsel %vm724, %v715, %v731
        %v733 = vsel %vm723, %v730, %v732
        %v734 = vsel %vm722, %v712, %v715
        %v735 = vsel %vm725, %v721, 1326507024
        %v736 = vsel %vm724, %v718, %v735
        %v737 = vsel %vm723, %v734, %v736
        %v738 = vshll.u32 %v698, 8
        %v739 = vmul.u32.u64.compose %v738, %v737
        %v740 = vextract.low.u32 %v739
        %v741 = vextract.high.u32 %v739
        %v742 = vmul.u32.u64.compose %v738, %v733
        %v743 = vextract.low.u32 %v742
        %v744 = vextract.high.u32 %v742
        %v745 = vmul.u32 %v738, %v729
        %v746 = vadd.s32 %v741, %v743
        %vm747 = vc.u32 %v741, %v743
        %v748 = vadd.s32 %v744, 1
        %v749 = vsel %vm747, %v748, %v744
        %v750 = vadd.s32 %v745, %v749
        %v751 = vadd.s32 %v750, 536870912
        %v752 = vshrl.u32 %v751, 30
        %v753 = vshll.u32 %v752, 30
        %v754 = vsub.s32 %v750, %v753
        %vm755 = vcmp.lt.s32.totalorder %v754, 0
        %v756 = vsub.s32 0, %v754
        %v757 = vsel %vm755, %v756, %v754
        %v758 = vclz %v757
        %v759 = vsub.s32 %v758, 2
        %vm760 = vcmp.gt.s32.totalorder 0, %v759
        %v761 = vsel %vm760, 0, %v759
        %v762 = vsub.s32 32, %v761
        %v763 = vshll.u32 %v754, %v761
        %v764 = vshrl.u32 %v746, %v762
        %v765 = vor.u32 %v763, %v764
        %v766 = vsub.s32 4294967266, %v761
        %v767 = vadd.s32 %v766, 127
        %v768 = vshll.u32 %v767, 23
        %v769 = vor.u32 4788187, %v768
        %v770 = vand.u32 2147483647, %v769
        %v772 = vcvt.s32.f32 %v765
        %v773 = vmul.f32 %v772, %v770
        %v774 = vxor.u32 %v773, 2147483648
        %v775 = vsel %vm692, %v774, %v773
        %v776 = vsub.s32 4, %v752
        %v777 = vsel %vm692, %v776, %v752
        %v778 = vsel %vm691, %v468, %v775
        %v779 = vsel %vm691, 0, %v777
        %v780 = vcosq.f32.pop %v778
        %v781 = vsinq.f32.pop %v778
        %vm782 = vweird.f32 %v468
        %v783 = vadd.s32 %v779, 3
        %v784 = vand.u32 %v783, 3
        %vm785 = vcmp.lt.s32.totalorder %v784, 2
        %vm786 = vcmp.eq.s32.totalorder %v784, 0
        %v787 = vxor.u32 %v781, 2147483648
        %v788 = vsel %vm786, %v780, %v787
        %vm789 = vcmp.eq.s32.totalorder %v784, 2
        %v790 = vxor.u32 %v780, 2147483648
        %v791 = vsel %vm789, %v790, %v781
        %v792 = vsel %vm785, %v788, %v791
        %v793 = vsel %vm782, nan, %v792
        %v794 = vand.u32 2147483647, %v469
        %vm795 = vcmp.le.f32.partialorder %v794, 0.7853982
        %vm796 = vcmp.lt.s32.totalorder %v469, 0
        %v797 = vand.u32 %v469, 2139095040
        %v798 = vshrl.u32 %v797, 23
        %v799 = vsub.s32 %v798, 127
        %v800 = vand.u32 2147483647, %v469
        %v801 = vand.u32 %v800, 8388607
        %v802 = vor.u32 %v801, 8388608
        %v803 = vsub.s32 0, %v802
        %v804 = vadd.s32 %v799, 1
        %vm805 = vcmp.gt.s32.totalorder %v804, 0
        %v806 = vsel %vm805, %v804, 0
        %v807 = vshrl.u32 %v806, 5
        %v808 = vand.u32 %v806, 31
        %v809 = vsub.s32 32, %v808
        %v810 = vshrl.u32 683565275, %v809
        %v811 = vshll.u32 683565275, %v808
        %v812 = vshrl.u32 2475754826, %v809
        %v813 = vor.u32 %v811, %v812
        %v814 = vshll.u32 2475754826, %v808
        %v815 = vshrl.u32 2131351028, %v809
        %v816 = vor.u32 %v814, %v815
        %v817 = vshll.u32 2131351028, %v808
        %v818 = vshrl.u32 2102212464, %v809
        %v819 = vor.u32 %v817, %v818
        %v820 = vshll.u32 2102212464, %v808
        %v821 = vshrl.u32 920167782, %v809
        %v822 = vor.u32 %v820, %v821
        %v823 = vshll.u32 920167782, %v808
        %v824 = vshrl.u32 1326507024, %v809
        %v825 = vor.u32 %v823, %v824
        %vm826 = vcmp.lt.s32.totalorder %v807, 1
        %vm827 = vcmp.lt.s32.totalorder %v807, 2
        %vm828 = vcmp.lt.s32.totalorder %v807, 3
        %vm829 = vcmp.lt.s32.totalorder %v807, 4
        %v830 = vsel %vm826, %v810, %v813
        %v831 = vsel %vm829, %v819, 2102212464
        %v832 = vsel %vm828, %v816, %v831
        %v833 = vsel %vm827, %v830, %v832
        %v834 = vsel %vm826, %v813, %v816
        %v835 = vsel %vm829, %v822, 920167782
        %v836 = vsel %vm828, %v819, %v835
        %v837 = vsel %vm827, %v834, %v836
        %v838 = vsel %vm826, %v816, %v819
        %v839 = vsel %vm829, %v825, 1326507024
        %v840 = vsel %vm828, %v822, %v839
        %v841 = vsel %vm827, %v838, %v840
        %v842 = vshll.u32 %v802, 8
        %v843 = vmul.u32.u64.compose %v842, %v841
        %v844 = vextract.low.u32 %v843
        %v845 = vextract.high.u32 %v843
        %v846 = vmul.u32.u64.compose %v842, %v837
        %v847 = vextract.low.u32 %v846
        %v848 = vextract.high.u32 %v846
        %v849 = vmul.u32 %v842, %v833
        %v850 = vadd.s32 %v845, %v847
        %vm851 = vc.u32 %v845, %v847
        %v852 = vadd.s32 %v848, 1
        %v853 = vsel %vm851, %v852, %v848
        %v854 = vadd.s32 %v849, %v853
        %v855 = vadd.s32 %v854, 536870912
        %v856 = vshrl.u32 %v855, 30
        %v857 = vshll.u32 %v856, 30
        %v858 = vsub.s32 %v854, %v857
        %vm859 = vcmp.lt.s32.totalorder %v858, 0
        %v860 = vsub.s32 0, %v858
        %v861 = vsel %vm859, %v860, %v858
        %v862 = vclz %v861
        %v863 = vsub.s32 %v862, 2
        %vm864 = vcmp.gt.s32.totalorder 0, %v863
        %v865 = vsel %vm864, 0, %v863
        %v866 = vsub.s32 32, %v865
        %v867 = vshll.u32 %v858, %v865
        %v868 = vshrl.u32 %v850, %v866
        %v869 = vor.u32 %v867, %v868
        %v870 = vsub.s32 4294967266, %v865
        %v871 = vadd.s32 %v870, 127
        %v872 = vshll.u32 %v871, 23
        %v873 = vor.u32 4788187, %v872
        %v874 = vand.u32 2147483647, %v873
        %v876 = vcvt.s32.f32 %v869
        %v877 = vmul.f32 %v876, %v874
        %v878 = vxor.u32 %v877, 2147483648
        %v879 = vsel %vm796, %v878, %v877
        %v880 = vsub.s32 4, %v856
        %v881 = vsel %vm796, %v880, %v856
        %v882 = vsel %vm795, %v469, %v879
        %v883 = vsel %vm795, 0, %v881
        %v884 = vcosq.f32.pop %v882
        %v885 = vsinq.f32.pop %v882
        %vm886 = vweird.f32 %v469
        %v887 = vadd.s32 %v883, 3
        %v888 = vand.u32 %v887, 3
        %vm889 = vcmp.lt.s32.totalorder %v888, 2
        %vm890 = vcmp.eq.s32.totalorder %v888, 0
        %v891 = vxor.u32 %v885, 2147483648
        %v892 = vsel %vm890, %v884, %v891
        %vm893 = vcmp.eq.s32.totalorder %v888, 2
        %v894 = vxor.u32 %v884, 2147483648
        %v895 = vsel %vm893, %v894, %v885
        %v896 = vsel %vm889, %v892, %v895
        %v897 = vsel %vm886, nan, %v896
        %v898 = vand.u32 2147483647, %v470
        %vm899 = vcmp.le.f32.partialorder %v898, 0.7853982
        %vm900 = vcmp.lt.s32.totalorder %v470, 0
        %v901 = vand.u32 %v470, 2139095040
        %v902 = vshrl.u32 %v901, 23
        %v903 = vsub.s32 %v902, 127
        %v904 = vand.u32 2147483647, %v470
        %v905 = vand.u32 %v904, 8388607
        %v906 = vor.u32 %v905, 8388608
        %v907 = vsub.s32 0, %v906
        %v908 = vadd.s32 %v903, 1
        %vm909 = vcmp.gt.s32.totalorder %v908, 0
        %v910 = vsel %vm909, %v908, 0
        %v911 = vshrl.u32 %v910, 5
        %v912 = vand.u32 %v910, 31
        %v913 = vsub.s32 32, %v912
        %v914 = vshrl.u32 683565275, %v913
        %v915 = vshll.u32 683565275, %v912
        %v916 = vshrl.u32 2475754826, %v913
        %v917 = vor.u32 %v915, %v916
        %v918 = vshll.u32 2475754826, %v912
        %v919 = vshrl.u32 2131351028, %v913
        %v920 = vor.u32 %v918, %v919
        %v921 = vshll.u32 2131351028, %v912
        %v922 = vshrl.u32 2102212464, %v913
        %v923 = vor.u32 %v921, %v922
        %v924 = vshll.u32 2102212464, %v912
        %v925 = vshrl.u32 920167782, %v913
        %v926 = vor.u32 %v924, %v925
        %v927 = vshll.u32 920167782, %v912
        %v928 = vshrl.u32 1326507024, %v913
        %v929 = vor.u32 %v927, %v928
        %vm930 = vcmp.lt.s32.totalorder %v911, 1
        %vm931 = vcmp.lt.s32.totalorder %v911, 2
        %vm932 = vcmp.lt.s32.totalorder %v911, 3
        %vm933 = vcmp.lt.s32.totalorder %v911, 4
        %v934 = vsel %vm930, %v914, %v917
        %v935 = vsel %vm933, %v923, 2102212464
        %v936 = vsel %vm932, %v920, %v935
        %v937 = vsel %vm931, %v934, %v936
        %v938 = vsel %vm930, %v917, %v920
        %v939 = vsel %vm933, %v926, 920167782
        %v940 = vsel %vm932, %v923, %v939
        %v941 = vsel %vm931, %v938, %v940
        %v942 = vsel %vm930, %v920, %v923
        %v943 = vsel %vm933, %v929, 1326507024
        %v944 = vsel %vm932, %v926, %v943
        %v945 = vsel %vm931, %v942, %v944
        %v946 = vshll.u32 %v906, 8
        %v947 = vmul.u32.u64.compose %v946, %v945
        %v948 = vextract.low.u32 %v947
        %v949 = vextract.high.u32 %v947
        %v950 = vmul.u32.u64.compose %v946, %v941
        %v951 = vextract.low.u32 %v950
        %v952 = vextract.high.u32 %v950
        %v953 = vmul.u32 %v946, %v937
        %v954 = vadd.s32 %v949, %v951
        %vm955 = vc.u32 %v949, %v951
        %v956 = vadd.s32 %v952, 1
        %v957 = vsel %vm955, %v956, %v952
        %v958 = vadd.s32 %v953, %v957
        %v959 = vadd.s32 %v958, 536870912
        %v960 = vshrl.u32 %v959, 30
        %v961 = vshll.u32 %v960, 30
        %v962 = vsub.s32 %v958, %v961
        %vm963 = vcmp.lt.s32.totalorder %v962, 0
        %v964 = vsub.s32 0, %v962
        %v965 = vsel %vm963, %v964, %v962
        %v966 = vclz %v965
        %v967 = vsub.s32 %v966, 2
        %vm968 = vcmp.gt.s32.totalorder 0, %v967
        %v969 = vsel %vm968, 0, %v967
        %v970 = vsub.s32 32, %v969
        %v971 = vshll.u32 %v962, %v969
        %v972 = vshrl.u32 %v954, %v970
        %v973 = vor.u32 %v971, %v972
        %v974 = vsub.s32 4294967266, %v969
        %v975 = vadd.s32 %v974, 127
        %v976 = vshll.u32 %v975, 23
        %v977 = vor.u32 4788187, %v976
        %v978 = vand.u32 2147483647, %v977
        %v980 = vcvt.s32.f32 %v973
        %v981 = vmul.f32 %v980, %v978
        %v982 = vxor.u32 %v981, 2147483648
        %v983 = vsel %vm900, %v982, %v981
        %v984 = vsub.s32 4, %v960
        %v985 = vsel %vm900, %v984, %v960
        %v986 = vsel %vm899, %v470, %v983
        %v987 = vsel %vm899, 0, %v985
        %v988 = vcosq.f32.pop %v986
        %v989 = vsinq.f32.pop %v986
        %vm990 = vweird.f32 %v470
        %v991 = vadd.s32 %v987, 3
        %v992 = vand.u32 %v991, 3
        %vm993 = vcmp.lt.s32.totalorder %v992, 2
        %vm994 = vcmp.eq.s32.totalorder %v992, 0
        %v995 = vxor.u32 %v989, 2147483648
        %v996 = vsel %vm994, %v988, %v995
        %vm997 = vcmp.eq.s32.totalorder %v992, 2
        %v998 = vxor.u32 %v988, 2147483648
        %v999 = vsel %vm997, %v998, %v989
        %v1000 = vsel %vm993, %v996, %v999
        %v1001 = vsel %vm990, nan, %v1000
        %v1002 = vand.u32 2147483647, %v471
        %vm1003 = vcmp.le.f32.partialorder %v1002, 0.7853982
        %vm1004 = vcmp.lt.s32.totalorder %v471, 0
        %v1005 = vand.u32 %v471, 2139095040
        %v1006 = vshrl.u32 %v1005, 23
        %v1007 = vsub.s32 %v1006, 127
        %v1008 = vand.u32 2147483647, %v471
        %v1009 = vand.u32 %v1008, 8388607
        %v1010 = vor.u32 %v1009, 8388608
        %v1011 = vsub.s32 0, %v1010
        %v1012 = vadd.s32 %v1007, 1
        %vm1013 = vcmp.gt.s32.totalorder %v1012, 0
        %v1014 = vsel %vm1013, %v1012, 0
        %v1015 = vshrl.u32 %v1014, 5
        %v1016 = vand.u32 %v1014, 31
        %v1017 = vsub.s32 32, %v1016
        %v1018 = vshrl.u32 683565275, %v1017
        %v1019 = vshll.u32 683565275, %v1016
        %v1020 = vshrl.u32 2475754826, %v1017
        %v1021 = vor.u32 %v1019, %v1020
        %v1022 = vshll.u32 2475754826, %v1016
        %v1023 = vshrl.u32 2131351028, %v1017
        %v1024 = vor.u32 %v1022, %v1023
        %v1025 = vshll.u32 2131351028, %v1016
        %v1026 = vshrl.u32 2102212464, %v1017
        %v1027 = vor.u32 %v1025, %v1026
        %v1028 = vshll.u32 2102212464, %v1016
        %v1029 = vshrl.u32 920167782, %v1017
        %v1030 = vor.u32 %v1028, %v1029
        %v1031 = vshll.u32 920167782, %v1016
        %v1032 = vshrl.u32 1326507024, %v1017
        %v1033 = vor.u32 %v1031, %v1032
        %vm1034 = vcmp.lt.s32.totalorder %v1015, 1
        %vm1035 = vcmp.lt.s32.totalorder %v1015, 2
        %vm1036 = vcmp.lt.s32.totalorder %v1015, 3
        %vm1037 = vcmp.lt.s32.totalorder %v1015, 4
        %v1038 = vsel %vm1034, %v1018, %v1021
        %v1039 = vsel %vm1037, %v1027, 2102212464
        %v1040 = vsel %vm1036, %v1024, %v1039
        %v1041 = vsel %vm1035, %v1038, %v1040
        %v1042 = vsel %vm1034, %v1021, %v1024
        %v1043 = vsel %vm1037, %v1030, 920167782
        %v1044 = vsel %vm1036, %v1027, %v1043
        %v1045 = vsel %vm1035, %v1042, %v1044
        %v1046 = vsel %vm1034, %v1024, %v1027
        %v1047 = vsel %vm1037, %v1033, 1326507024
        %v1048 = vsel %vm1036, %v1030, %v1047
        %v1049 = vsel %vm1035, %v1046, %v1048
        %v1050 = vshll.u32 %v1010, 8
        %v1051 = vmul.u32.u64.compose %v1050, %v1049
        %v1052 = vextract.low.u32 %v1051
        %v1053 = vextract.high.u32 %v1051
        %v1054 = vmul.u32.u64.compose %v1050, %v1045
        %v1055 = vextract.low.u32 %v1054
        %v1056 = vextract.high.u32 %v1054
        %v1057 = vmul.u32 %v1050, %v1041
        %v1058 = vadd.s32 %v1053, %v1055
        %vm1059 = vc.u32 %v1053, %v1055
        %v1060 = vadd.s32 %v1056, 1
        %v1061 = vsel %vm1059, %v1060, %v1056
        %v1062 = vadd.s32 %v1057, %v1061
        %v1063 = vadd.s32 %v1062, 536870912
        %v1064 = vshrl.u32 %v1063, 30
        %v1065 = vshll.u32 %v1064, 30
        %v1066 = vsub.s32 %v1062, %v1065
        %vm1067 = vcmp.lt.s32.totalorder %v1066, 0
        %v1068 = vsub.s32 0, %v1066
        %v1069 = vsel %vm1067, %v1068, %v1066
        %v1070 = vclz %v1069
        %v1071 = vsub.s32 %v1070, 2
        %vm1072 = vcmp.gt.s32.totalorder 0, %v1071
        %v1073 = vsel %vm1072, 0, %v1071
        %v1074 = vsub.s32 32, %v1073
        %v1075 = vshll.u32 %v1066, %v1073
        %v1076 = vshrl.u32 %v1058, %v1074
        %v1077 = vor.u32 %v1075, %v1076
        %v1078 = vsub.s32 4294967266, %v1073
        %v1079 = vadd.s32 %v1078, 127
        %v1080 = vshll.u32 %v1079, 23
        %v1081 = vor.u32 4788187, %v1080
        %v1082 = vand.u32 2147483647, %v1081
        %v1084 = vcvt.s32.f32 %v1077
        %v1085 = vmul.f32 %v1084, %v1082
        %v1086 = vxor.u32 %v1085, 2147483648
        %v1087 = vsel %vm1004, %v1086, %v1085
        %v1088 = vsub.s32 4, %v1064
        %v1089 = vsel %vm1004, %v1088, %v1064
        %v1090 = vsel %vm1003, %v471, %v1087
        %v1091 = vsel %vm1003, 0, %v1089
        %v1092 = vcosq.f32.pop %v1090
        %v1093 = vsinq.f32.pop %v1090
        %vm1094 = vweird.f32 %v471
        %v1095 = vadd.s32 %v1091, 3
        %v1096 = vand.u32 %v1095, 3
        %vm1097 = vcmp.lt.s32.totalorder %v1096, 2
        %vm1098 = vcmp.eq.s32.totalorder %v1096, 0
        %v1099 = vxor.u32 %v1093, 2147483648
        %v1100 = vsel %vm1098, %v1092, %v1099
        %vm1101 = vcmp.eq.s32.totalorder %v1096, 2
        %v1102 = vxor.u32 %v1092, 2147483648
        %v1103 = vsel %vm1101, %v1102, %v1093
        %v1104 = vsel %vm1097, %v1100, %v1103
        %v1105 = vsel %vm1094, nan, %v1104
        %v1106 = vand.u32 2147483647, %v472
        %vm1107 = vcmp.le.f32.partialorder %v1106, 0.7853982
        %vm1108 = vcmp.lt.s32.totalorder %v472, 0
        %v1109 = vand.u32 %v472, 2139095040
        %v1110 = vshrl.u32 %v1109, 23
        %v1111 = vsub.s32 %v1110, 127
        %v1112 = vand.u32 2147483647, %v472
        %v1113 = vand.u32 %v1112, 8388607
        %v1114 = vor.u32 %v1113, 8388608
        %v1115 = vsub.s32 0, %v1114
        %v1116 = vadd.s32 %v1111, 1
        %vm1117 = vcmp.gt.s32.totalorder %v1116, 0
        %v1118 = vsel %vm1117, %v1116, 0
        %v1119 = vshrl.u32 %v1118, 5
        %v1120 = vand.u32 %v1118, 31
        %v1121 = vsub.s32 32, %v1120
        %v1122 = vshrl.u32 683565275, %v1121
        %v1123 = vshll.u32 683565275, %v1120
        %v1124 = vshrl.u32 2475754826, %v1121
        %v1125 = vor.u32 %v1123, %v1124
        %v1126 = vshll.u32 2475754826, %v1120
        %v1127 = vshrl.u32 2131351028, %v1121
        %v1128 = vor.u32 %v1126, %v1127
        %v1129 = vshll.u32 2131351028, %v1120
        %v1130 = vshrl.u32 2102212464, %v1121
        %v1131 = vor.u32 %v1129, %v1130
        %v1132 = vshll.u32 2102212464, %v1120
        %v1133 = vshrl.u32 920167782, %v1121
        %v1134 = vor.u32 %v1132, %v1133
        %v1135 = vshll.u32 920167782, %v1120
        %v1136 = vshrl.u32 1326507024, %v1121
        %v1137 = vor.u32 %v1135, %v1136
        %vm1138 = vcmp.lt.s32.totalorder %v1119, 1
        %vm1139 = vcmp.lt.s32.totalorder %v1119, 2
        %vm1140 = vcmp.lt.s32.totalorder %v1119, 3
        %vm1141 = vcmp.lt.s32.totalorder %v1119, 4
        %v1142 = vsel %vm1138, %v1122, %v1125
        %v1143 = vsel %vm1141, %v1131, 2102212464
        %v1144 = vsel %vm1140, %v1128, %v1143
        %v1145 = vsel %vm1139, %v1142, %v1144
        %v1146 = vsel %vm1138, %v1125, %v1128
        %v1147 = vsel %vm1141, %v1134, 920167782
        %v1148 = vsel %vm1140, %v1131, %v1147
        %v1149 = vsel %vm1139, %v1146, %v1148
        %v1150 = vsel %vm1138, %v1128, %v1131
        %v1151 = vsel %vm1141, %v1137, 1326507024
        %v1152 = vsel %vm1140, %v1134, %v1151
        %v1153 = vsel %vm1139, %v1150, %v1152
        %v1154 = vshll.u32 %v1114, 8
        %v1155 = vmul.u32.u64.compose %v1154, %v1153
        %v1156 = vextract.low.u32 %v1155
        %v1157 = vextract.high.u32 %v1155
        %v1158 = vmul.u32.u64.compose %v1154, %v1149
        %v1159 = vextract.low.u32 %v1158
        %v1160 = vextract.high.u32 %v1158
        %v1161 = vmul.u32 %v1154, %v1145
        %v1162 = vadd.s32 %v1157, %v1159
        %vm1163 = vc.u32 %v1157, %v1159
        %v1164 = vadd.s32 %v1160, 1
        %v1165 = vsel %vm1163, %v1164, %v1160
        %v1166 = vadd.s32 %v1161, %v1165
        %v1167 = vadd.s32 %v1166, 536870912
        %v1168 = vshrl.u32 %v1167, 30
        %v1169 = vshll.u32 %v1168, 30
        %v1170 = vsub.s32 %v1166, %v1169
        %vm1171 = vcmp.lt.s32.totalorder %v1170, 0
        %v1172 = vsub.s32 0, %v1170
        %v1173 = vsel %vm1171, %v1172, %v1170
        %v1174 = vclz %v1173
        %v1175 = vsub.s32 %v1174, 2
        %vm1176 = vcmp.gt.s32.totalorder 0, %v1175
        %v1177 = vsel %vm1176, 0, %v1175
        %v1178 = vsub.s32 32, %v1177
        %v1179 = vshll.u32 %v1170, %v1177
        %v1180 = vshrl.u32 %v1162, %v1178
        %v1181 = vor.u32 %v1179, %v1180
        %v1182 = vsub.s32 4294967266, %v1177
        %v1183 = vadd.s32 %v1182, 127
        %v1184 = vshll.u32 %v1183, 23
        %v1185 = vor.u32 4788187, %v1184
        %v1186 = vand.u32 2147483647, %v1185
        %v1188 = vcvt.s32.f32 %v1181
        %v1189 = vmul.f32 %v1188, %v1186
        %v1190 = vxor.u32 %v1189, 2147483648
        %v1191 = vsel %vm1108, %v1190, %v1189
        %v1192 = vsub.s32 4, %v1168
        %v1193 = vsel %vm1108, %v1192, %v1168
        %v1194 = vsel %vm1107, %v472, %v1191
        %v1195 = vsel %vm1107, 0, %v1193
        %v1196 = vcosq.f32.pop %v1194
        %v1197 = vsinq.f32.pop %v1194
        %vm1198 = vweird.f32 %v472
        %v1199 = vadd.s32 %v1195, 3
        %v1200 = vand.u32 %v1199, 3
        %vm1201 = vcmp.lt.s32.totalorder %v1200, 2
        %vm1202 = vcmp.eq.s32.totalorder %v1200, 0
        %v1203 = vxor.u32 %v1197, 2147483648
        %v1204 = vsel %vm1202, %v1196, %v1203
        %vm1205 = vcmp.eq.s32.totalorder %v1200, 2
        %v1206 = vxor.u32 %v1196, 2147483648
        %v1207 = vsel %vm1205, %v1206, %v1197
        %v1208 = vsel %vm1201, %v1204, %v1207
        %v1209 = vsel %vm1198, nan, %v1208
        %v1210 = vand.u32 2147483647, %v473
        %vm1211 = vcmp.le.f32.partialorder %v1210, 0.7853982
        %vm1212 = vcmp.lt.s32.totalorder %v473, 0
        %v1213 = vand.u32 %v473, 2139095040
        %v1214 = vshrl.u32 %v1213, 23
        %v1215 = vsub.s32 %v1214, 127
        %v1216 = vand.u32 2147483647, %v473
        %v1217 = vand.u32 %v1216, 8388607
        %v1218 = vor.u32 %v1217, 8388608
        %v1219 = vsub.s32 0, %v1218
        %v1220 = vadd.s32 %v1215, 1
        %vm1221 = vcmp.gt.s32.totalorder %v1220, 0
        %v1222 = vsel %vm1221, %v1220, 0
        %v1223 = vshrl.u32 %v1222, 5
        %v1224 = vand.u32 %v1222, 31
        %v1225 = vsub.s32 32, %v1224
        %v1226 = vshrl.u32 683565275, %v1225
        %v1227 = vshll.u32 683565275, %v1224
        %v1228 = vshrl.u32 2475754826, %v1225
        %v1229 = vor.u32 %v1227, %v1228
        %v1230 = vshll.u32 2475754826, %v1224
        %v1231 = vshrl.u32 2131351028, %v1225
        %v1232 = vor.u32 %v1230, %v1231
        %v1233 = vshll.u32 2131351028, %v1224
        %v1234 = vshrl.u32 2102212464, %v1225
        %v1235 = vor.u32 %v1233, %v1234
        %v1236 = vshll.u32 2102212464, %v1224
        %v1237 = vshrl.u32 920167782, %v1225
        %v1238 = vor.u32 %v1236, %v1237
        %v1239 = vshll.u32 920167782, %v1224
        %v1240 = vshrl.u32 1326507024, %v1225
        %v1241 = vor.u32 %v1239, %v1240
        %vm1242 = vcmp.lt.s32.totalorder %v1223, 1
        %vm1243 = vcmp.lt.s32.totalorder %v1223, 2
        %vm1244 = vcmp.lt.s32.totalorder %v1223, 3
        %vm1245 = vcmp.lt.s32.totalorder %v1223, 4
        %v1246 = vsel %vm1242, %v1226, %v1229
        %v1247 = vsel %vm1245, %v1235, 2102212464
        %v1248 = vsel %vm1244, %v1232, %v1247
        %v1249 = vsel %vm1243, %v1246, %v1248
        %v1250 = vsel %vm1242, %v1229, %v1232
        %v1251 = vsel %vm1245, %v1238, 920167782
        %v1252 = vsel %vm1244, %v1235, %v1251
        %v1253 = vsel %vm1243, %v1250, %v1252
        %v1254 = vsel %vm1242, %v1232, %v1235
        %v1255 = vsel %vm1245, %v1241, 1326507024
        %v1256 = vsel %vm1244, %v1238, %v1255
        %v1257 = vsel %vm1243, %v1254, %v1256
        %v1258 = vshll.u32 %v1218, 8
        %v1259 = vmul.u32.u64.compose %v1258, %v1257
        %v1260 = vextract.low.u32 %v1259
        %v1261 = vextract.high.u32 %v1259
        %v1262 = vmul.u32.u64.compose %v1258, %v1253
        %v1263 = vextract.low.u32 %v1262
        %v1264 = vextract.high.u32 %v1262
        %v1265 = vmul.u32 %v1258, %v1249
        %v1266 = vadd.s32 %v1261, %v1263
        %vm1267 = vc.u32 %v1261, %v1263
        %v1268 = vadd.s32 %v1264, 1
        %v1269 = vsel %vm1267, %v1268, %v1264
        %v1270 = vadd.s32 %v1265, %v1269
        %v1271 = vadd.s32 %v1270, 536870912
        %v1272 = vshrl.u32 %v1271, 30
        %v1273 = vshll.u32 %v1272, 30
        %v1274 = vsub.s32 %v1270, %v1273
        %vm1275 = vcmp.lt.s32.totalorder %v1274, 0
        %v1276 = vsub.s32 0, %v1274
        %v1277 = vsel %vm1275, %v1276, %v1274
        %v1278 = vclz %v1277
        %v1279 = vsub.s32 %v1278, 2
        %vm1280 = vcmp.gt.s32.totalorder 0, %v1279
        %v1281 = vsel %vm1280, 0, %v1279
        %v1282 = vsub.s32 32, %v1281
        %v1283 = vshll.u32 %v1274, %v1281
        %v1284 = vshrl.u32 %v1266, %v1282
        %v1285 = vor.u32 %v1283, %v1284
        %v1286 = vsub.s32 4294967266, %v1281
        %v1287 = vadd.s32 %v1286, 127
        %v1288 = vshll.u32 %v1287, 23
        %v1289 = vor.u32 4788187, %v1288
        %v1290 = vand.u32 2147483647, %v1289
        %v1292 = vcvt.s32.f32 %v1285
        %v1293 = vmul.f32 %v1292, %v1290
        %v1294 = vxor.u32 %v1293, 2147483648
        %v1295 = vsel %vm1212, %v1294, %v1293
        %v1296 = vsub.s32 4, %v1272
        %v1297 = vsel %vm1212, %v1296, %v1272
        %v1298 = vsel %vm1211, %v473, %v1295
        %v1299 = vsel %vm1211, 0, %v1297
        %v1300 = vcosq.f32.pop %v1298
        %v1301 = vsinq.f32.pop %v1298
        %vm1302 = vweird.f32 %v473
        %v1303 = vadd.s32 %v1299, 3
        %v1304 = vand.u32 %v1303, 3
        %vm1305 = vcmp.lt.s32.totalorder %v1304, 2
        %vm1306 = vcmp.eq.s32.totalorder %v1304, 0
        %v1307 = vxor.u32 %v1301, 2147483648
        %v1308 = vsel %vm1306, %v1300, %v1307
        %vm1309 = vcmp.eq.s32.totalorder %v1304, 2
        %v1310 = vxor.u32 %v1300, 2147483648
        %v1311 = vsel %vm1309, %v1310, %v1301
        %v1312 = vsel %vm1305, %v1308, %v1311
        %v1313 = vsel %vm1302, nan, %v1312
        %v1314 = vand.u32 2147483647, %v474
        %vm1315 = vcmp.le.f32.partialorder %v1314, 0.7853982
        %vm1316 = vcmp.lt.s32.totalorder %v474, 0
        %v1317 = vand.u32 %v474, 2139095040
        %v1318 = vshrl.u32 %v1317, 23
        %v1319 = vsub.s32 %v1318, 127
        %v1320 = vand.u32 2147483647, %v474
        %v1321 = vand.u32 %v1320, 8388607
        %v1322 = vor.u32 %v1321, 8388608
        %v1323 = vsub.s32 0, %v1322
        %v1324 = vadd.s32 %v1319, 1
        %vm1325 = vcmp.gt.s32.totalorder %v1324, 0
        %v1326 = vsel %vm1325, %v1324, 0
        %v1327 = vshrl.u32 %v1326, 5
        %v1328 = vand.u32 %v1326, 31
        %v1329 = vsub.s32 32, %v1328
        %v1330 = vshrl.u32 683565275, %v1329
        %v1331 = vshll.u32 683565275, %v1328
        %v1332 = vshrl.u32 2475754826, %v1329
        %v1333 = vor.u32 %v1331, %v1332
        %v1334 = vshll.u32 2475754826, %v1328
        %v1335 = vshrl.u32 2131351028, %v1329
        %v1336 = vor.u32 %v1334, %v1335
        %v1337 = vshll.u32 2131351028, %v1328
        %v1338 = vshrl.u32 2102212464, %v1329
        %v1339 = vor.u32 %v1337, %v1338
        %v1340 = vshll.u32 2102212464, %v1328
        %v1341 = vshrl.u32 920167782, %v1329
        %v1342 = vor.u32 %v1340, %v1341
        %v1343 = vshll.u32 920167782, %v1328
        %v1344 = vshrl.u32 1326507024, %v1329
        %v1345 = vor.u32 %v1343, %v1344
        %vm1346 = vcmp.lt.s32.totalorder %v1327, 1
        %vm1347 = vcmp.lt.s32.totalorder %v1327, 2
        %vm1348 = vcmp.lt.s32.totalorder %v1327, 3
        %vm1349 = vcmp.lt.s32.totalorder %v1327, 4
        %v1350 = vsel %vm1346, %v1330, %v1333
        %v1351 = vsel %vm1349, %v1339, 2102212464
        %v1352 = vsel %vm1348, %v1336, %v1351
        %v1353 = vsel %vm1347, %v1350, %v1352
        %v1354 = vsel %vm1346, %v1333, %v1336
        %v1355 = vsel %vm1349, %v1342, 920167782
        %v1356 = vsel %vm1348, %v1339, %v1355
        %v1357 = vsel %vm1347, %v1354, %v1356
        %v1358 = vsel %vm1346, %v1336, %v1339
        %v1359 = vsel %vm1349, %v1345, 1326507024
        %v1360 = vsel %vm1348, %v1342, %v1359
        %v1361 = vsel %vm1347, %v1358, %v1360
        %v1362 = vshll.u32 %v1322, 8
        %v1363 = vmul.u32.u64.compose %v1362, %v1361
        %v1364 = vextract.low.u32 %v1363
        %v1365 = vextract.high.u32 %v1363
        %v1366 = vmul.u32.u64.compose %v1362, %v1357
        %v1367 = vextract.low.u32 %v1366
        %v1368 = vextract.high.u32 %v1366
        %v1369 = vmul.u32 %v1362, %v1353
        %v1370 = vadd.s32 %v1365, %v1367
        %vm1371 = vc.u32 %v1365, %v1367
        %v1372 = vadd.s32 %v1368, 1
        %v1373 = vsel %vm1371, %v1372, %v1368
        %v1374 = vadd.s32 %v1369, %v1373
        %v1375 = vadd.s32 %v1374, 536870912
        %v1376 = vshrl.u32 %v1375, 30
        %v1377 = vshll.u32 %v1376, 30
        %v1378 = vsub.s32 %v1374, %v1377
        %vm1379 = vcmp.lt.s32.totalorder %v1378, 0
        %v1380 = vsub.s32 0, %v1378
        %v1381 = vsel %vm1379, %v1380, %v1378
        %v1382 = vclz %v1381
        %v1383 = vsub.s32 %v1382, 2
        %vm1384 = vcmp.gt.s32.totalorder 0, %v1383
        %v1385 = vsel %vm1384, 0, %v1383
        %v1386 = vsub.s32 32, %v1385
        %v1387 = vshll.u32 %v1378, %v1385
        %v1388 = vshrl.u32 %v1370, %v1386
        %v1389 = vor.u32 %v1387, %v1388
        %v1390 = vsub.s32 4294967266, %v1385
        %v1391 = vadd.s32 %v1390, 127
        %v1392 = vshll.u32 %v1391, 23
        %v1393 = vor.u32 4788187, %v1392
        %v1394 = vand.u32 2147483647, %v1393
        %v1396 = vcvt.s32.f32 %v1389
        %v1397 = vmul.f32 %v1396, %v1394
        %v1398 = vxor.u32 %v1397, 2147483648
        %v1399 = vsel %vm1316, %v1398, %v1397
        %v1400 = vsub.s32 4, %v1376
        %v1401 = vsel %vm1316, %v1400, %v1376
        %v1402 = vsel %vm1315, %v474, %v1399
        %v1403 = vsel %vm1315, 0, %v1401
        %v1404 = vcosq.f32.pop %v1402
        %v1405 = vsinq.f32.pop %v1402
        %vm1406 = vweird.f32 %v474
        %v1407 = vadd.s32 %v1403, 3
        %v1408 = vand.u32 %v1407, 3
        %vm1409 = vcmp.lt.s32.totalorder %v1408, 2
        %vm1410 = vcmp.eq.s32.totalorder %v1408, 0
        %v1411 = vxor.u32 %v1405, 2147483648
        %v1412 = vsel %vm1410, %v1404, %v1411
        %vm1413 = vcmp.eq.s32.totalorder %v1408, 2
        %v1414 = vxor.u32 %v1404, 2147483648
        %v1415 = vsel %vm1413, %v1414, %v1405
        %v1416 = vsel %vm1409, %v1412, %v1415
        %v1417 = vsel %vm1406, nan, %v1416
        %v1418 = vand.u32 2147483647, %v475
        %vm1419 = vcmp.le.f32.partialorder %v1418, 0.7853982
        %vm1420 = vcmp.lt.s32.totalorder %v475, 0
        %v1421 = vand.u32 %v475, 2139095040
        %v1422 = vshrl.u32 %v1421, 23
        %v1423 = vsub.s32 %v1422, 127
        %v1424 = vand.u32 2147483647, %v475
        %v1425 = vand.u32 %v1424, 8388607
        %v1426 = vor.u32 %v1425, 8388608
        %v1427 = vsub.s32 0, %v1426
        %v1428 = vadd.s32 %v1423, 1
        %vm1429 = vcmp.gt.s32.totalorder %v1428, 0
        %v1430 = vsel %vm1429, %v1428, 0
        %v1431 = vshrl.u32 %v1430, 5
        %v1432 = vand.u32 %v1430, 31
        %v1433 = vsub.s32 32, %v1432
        %v1434 = vshrl.u32 683565275, %v1433
        %v1435 = vshll.u32 683565275, %v1432
        %v1436 = vshrl.u32 2475754826, %v1433
        %v1437 = vor.u32 %v1435, %v1436
        %v1438 = vshll.u32 2475754826, %v1432
        %v1439 = vshrl.u32 2131351028, %v1433
        %v1440 = vor.u32 %v1438, %v1439
        %v1441 = vshll.u32 2131351028, %v1432
        %v1442 = vshrl.u32 2102212464, %v1433
        %v1443 = vor.u32 %v1441, %v1442
        %v1444 = vshll.u32 2102212464, %v1432
        %v1445 = vshrl.u32 920167782, %v1433
        %v1446 = vor.u32 %v1444, %v1445
        %v1447 = vshll.u32 920167782, %v1432
        %v1448 = vshrl.u32 1326507024, %v1433
        %v1449 = vor.u32 %v1447, %v1448
        %vm1450 = vcmp.lt.s32.totalorder %v1431, 1
        %vm1451 = vcmp.lt.s32.totalorder %v1431, 2
        %vm1452 = vcmp.lt.s32.totalorder %v1431, 3
        %vm1453 = vcmp.lt.s32.totalorder %v1431, 4
        %v1454 = vsel %vm1450, %v1434, %v1437
        %v1455 = vsel %vm1453, %v1443, 2102212464
        %v1456 = vsel %vm1452, %v1440, %v1455
        %v1457 = vsel %vm1451, %v1454, %v1456
        %v1458 = vsel %vm1450, %v1437, %v1440
        %v1459 = vsel %vm1453, %v1446, 920167782
        %v1460 = vsel %vm1452, %v1443, %v1459
        %v1461 = vsel %vm1451, %v1458, %v1460
        %v1462 = vsel %vm1450, %v1440, %v1443
        %v1463 = vsel %vm1453, %v1449, 1326507024
        %v1464 = vsel %vm1452, %v1446, %v1463
        %v1465 = vsel %vm1451, %v1462, %v1464
        %v1466 = vshll.u32 %v1426, 8
        %v1467 = vmul.u32.u64.compose %v1466, %v1465
        %v1468 = vextract.low.u32 %v1467
        %v1469 = vextract.high.u32 %v1467
        %v1470 = vmul.u32.u64.compose %v1466, %v1461
        %v1471 = vextract.low.u32 %v1470
        %v1472 = vextract.high.u32 %v1470
        %v1473 = vmul.u32 %v1466, %v1457
        %v1474 = vadd.s32 %v1469, %v1471
        %vm1475 = vc.u32 %v1469, %v1471
        %v1476 = vadd.s32 %v1472, 1
        %v1477 = vsel %vm1475, %v1476, %v1472
        %v1478 = vadd.s32 %v1473, %v1477
        %v1479 = vadd.s32 %v1478, 536870912
        %v1480 = vshrl.u32 %v1479, 30
        %v1481 = vshll.u32 %v1480, 30
        %v1482 = vsub.s32 %v1478, %v1481
        %vm1483 = vcmp.lt.s32.totalorder %v1482, 0
        %v1484 = vsub.s32 0, %v1482
        %v1485 = vsel %vm1483, %v1484, %v1482
        %v1486 = vclz %v1485
        %v1487 = vsub.s32 %v1486, 2
        %vm1488 = vcmp.gt.s32.totalorder 0, %v1487
        %v1489 = vsel %vm1488, 0, %v1487
        %v1490 = vsub.s32 32, %v1489
        %v1491 = vshll.u32 %v1482, %v1489
        %v1492 = vshrl.u32 %v1474, %v1490
        %v1493 = vor.u32 %v1491, %v1492
        %v1494 = vsub.s32 4294967266, %v1489
        %v1495 = vadd.s32 %v1494, 127
        %v1496 = vshll.u32 %v1495, 23
        %v1497 = vor.u32 4788187, %v1496
        %v1498 = vand.u32 2147483647, %v1497
        %v1500 = vcvt.s32.f32 %v1493
        %v1501 = vmul.f32 %v1500, %v1498
        %v1502 = vxor.u32 %v1501, 2147483648
        %v1503 = vsel %vm1420, %v1502, %v1501
        %v1504 = vsub.s32 4, %v1480
        %v1505 = vsel %vm1420, %v1504, %v1480
        %v1506 = vsel %vm1419, %v475, %v1503
        %v1507 = vsel %vm1419, 0, %v1505
        %v1508 = vcosq.f32.pop %v1506
        %v1509 = vsinq.f32.pop %v1506
        %vm1510 = vweird.f32 %v475
        %v1511 = vadd.s32 %v1507, 3
        %v1512 = vand.u32 %v1511, 3
        %vm1513 = vcmp.lt.s32.totalorder %v1512, 2
        %vm1514 = vcmp.eq.s32.totalorder %v1512, 0
        %v1515 = vxor.u32 %v1509, 2147483648
        %v1516 = vsel %vm1514, %v1508, %v1515
        %vm1517 = vcmp.eq.s32.totalorder %v1512, 2
        %v1518 = vxor.u32 %v1508, 2147483648
        %v1519 = vsel %vm1517, %v1518, %v1509
        %v1520 = vsel %vm1513, %v1516, %v1519
        %v1521 = vsel %vm1510, nan, %v1520
        %v1522 = vand.u32 2147483647, %v476
        %vm1523 = vcmp.le.f32.partialorder %v1522, 0.7853982
        %vm1524 = vcmp.lt.s32.totalorder %v476, 0
        %v1525 = vand.u32 %v476, 2139095040
        %v1526 = vshrl.u32 %v1525, 23
        %v1527 = vsub.s32 %v1526, 127
        %v1528 = vand.u32 2147483647, %v476
        %v1529 = vand.u32 %v1528, 8388607
        %v1530 = vor.u32 %v1529, 8388608
        %v1531 = vsub.s32 0, %v1530
        %v1532 = vadd.s32 %v1527, 1
        %vm1533 = vcmp.gt.s32.totalorder %v1532, 0
        %v1534 = vsel %vm1533, %v1532, 0
        %v1535 = vshrl.u32 %v1534, 5
        %v1536 = vand.u32 %v1534, 31
        %v1537 = vsub.s32 32, %v1536
        %v1538 = vshrl.u32 683565275, %v1537
        %v1539 = vshll.u32 683565275, %v1536
        %v1540 = vshrl.u32 2475754826, %v1537
        %v1541 = vor.u32 %v1539, %v1540
        %v1542 = vshll.u32 2475754826, %v1536
        %v1543 = vshrl.u32 2131351028, %v1537
        %v1544 = vor.u32 %v1542, %v1543
        %v1545 = vshll.u32 2131351028, %v1536
        %v1546 = vshrl.u32 2102212464, %v1537
        %v1547 = vor.u32 %v1545, %v1546
        %v1548 = vshll.u32 2102212464, %v1536
        %v1549 = vshrl.u32 920167782, %v1537
        %v1550 = vor.u32 %v1548, %v1549
        %v1551 = vshll.u32 920167782, %v1536
        %v1552 = vshrl.u32 1326507024, %v1537
        %v1553 = vor.u32 %v1551, %v1552
        %vm1554 = vcmp.lt.s32.totalorder %v1535, 1
        %vm1555 = vcmp.lt.s32.totalorder %v1535, 2
        %vm1556 = vcmp.lt.s32.totalorder %v1535, 3
        %vm1557 = vcmp.lt.s32.totalorder %v1535, 4
        %v1558 = vsel %vm1554, %v1538, %v1541
        %v1559 = vsel %vm1557, %v1547, 2102212464
        %v1560 = vsel %vm1556, %v1544, %v1559
        %v1561 = vsel %vm1555, %v1558, %v1560
        %v1562 = vsel %vm1554, %v1541, %v1544
        %v1563 = vsel %vm1557, %v1550, 920167782
        %v1564 = vsel %vm1556, %v1547, %v1563
        %v1565 = vsel %vm1555, %v1562, %v1564
        %v1566 = vsel %vm1554, %v1544, %v1547
        %v1567 = vsel %vm1557, %v1553, 1326507024
        %v1568 = vsel %vm1556, %v1550, %v1567
        %v1569 = vsel %vm1555, %v1566, %v1568
        %v1570 = vshll.u32 %v1530, 8
        %v1571 = vmul.u32.u64.compose %v1570, %v1569
        %v1572 = vextract.low.u32 %v1571
        %v1573 = vextract.high.u32 %v1571
        %v1574 = vmul.u32.u64.compose %v1570, %v1565
        %v1575 = vextract.low.u32 %v1574
        %v1576 = vextract.high.u32 %v1574
        %v1577 = vmul.u32 %v1570, %v1561
        %v1578 = vadd.s32 %v1573, %v1575
        %vm1579 = vc.u32 %v1573, %v1575
        %v1580 = vadd.s32 %v1576, 1
        %v1581 = vsel %vm1579, %v1580, %v1576
        %v1582 = vadd.s32 %v1577, %v1581
        %v1583 = vadd.s32 %v1582, 536870912
        %v1584 = vshrl.u32 %v1583, 30
        %v1585 = vshll.u32 %v1584, 30
        %v1586 = vsub.s32 %v1582, %v1585
        %vm1587 = vcmp.lt.s32.totalorder %v1586, 0
        %v1588 = vsub.s32 0, %v1586
        %v1589 = vsel %vm1587, %v1588, %v1586
        %v1590 = vclz %v1589
        %v1591 = vsub.s32 %v1590, 2
        %vm1592 = vcmp.gt.s32.totalorder 0, %v1591
        %v1593 = vsel %vm1592, 0, %v1591
        %v1594 = vsub.s32 32, %v1593
        %v1595 = vshll.u32 %v1586, %v1593
        %v1596 = vshrl.u32 %v1578, %v1594
        %v1597 = vor.u32 %v1595, %v1596
        %v1598 = vsub.s32 4294967266, %v1593
        %v1599 = vadd.s32 %v1598, 127
        %v1600 = vshll.u32 %v1599, 23
        %v1601 = vor.u32 4788187, %v1600
        %v1602 = vand.u32 2147483647, %v1601
        %v1604 = vcvt.s32.f32 %v1597
        %v1605 = vmul.f32 %v1604, %v1602
        %v1606 = vxor.u32 %v1605, 2147483648
        %v1607 = vsel %vm1524, %v1606, %v1605
        %v1608 = vsub.s32 4, %v1584
        %v1609 = vsel %vm1524, %v1608, %v1584
        %v1610 = vsel %vm1523, %v476, %v1607
        %v1611 = vsel %vm1523, 0, %v1609
        %v1612 = vcosq.f32.pop %v1610
        %v1613 = vsinq.f32.pop %v1610
        %vm1614 = vweird.f32 %v476
        %v1615 = vadd.s32 %v1611, 3
        %v1616 = vand.u32 %v1615, 3
        %vm1617 = vcmp.lt.s32.totalorder %v1616, 2
        %vm1618 = vcmp.eq.s32.totalorder %v1616, 0
        %v1619 = vxor.u32 %v1613, 2147483648
        %v1620 = vsel %vm1618, %v1612, %v1619
        %vm1621 = vcmp.eq.s32.totalorder %v1616, 2
        %v1622 = vxor.u32 %v1612, 2147483648
        %v1623 = vsel %vm1621, %v1622, %v1613
        %v1624 = vsel %vm1617, %v1620, %v1623
        %v1625 = vsel %vm1614, nan, %v1624
        %v1626 = vand.u32 2147483647, %v477
        %vm1627 = vcmp.le.f32.partialorder %v1626, 0.7853982
        %vm1628 = vcmp.lt.s32.totalorder %v477, 0
        %v1629 = vand.u32 %v477, 2139095040
        %v1630 = vshrl.u32 %v1629, 23
        %v1631 = vsub.s32 %v1630, 127
        %v1632 = vand.u32 2147483647, %v477
        %v1633 = vand.u32 %v1632, 8388607
        %v1634 = vor.u32 %v1633, 8388608
        %v1635 = vsub.s32 0, %v1634
        %v1636 = vadd.s32 %v1631, 1
        %vm1637 = vcmp.gt.s32.totalorder %v1636, 0
        %v1638 = vsel %vm1637, %v1636, 0
        %v1639 = vshrl.u32 %v1638, 5
        %v1640 = vand.u32 %v1638, 31
        %v1641 = vsub.s32 32, %v1640
        %v1642 = vshrl.u32 683565275, %v1641
        %v1643 = vshll.u32 683565275, %v1640
        %v1644 = vshrl.u32 2475754826, %v1641
        %v1645 = vor.u32 %v1643, %v1644
        %v1646 = vshll.u32 2475754826, %v1640
        %v1647 = vshrl.u32 2131351028, %v1641
        %v1648 = vor.u32 %v1646, %v1647
        %v1649 = vshll.u32 2131351028, %v1640
        %v1650 = vshrl.u32 2102212464, %v1641
        %v1651 = vor.u32 %v1649, %v1650
        %v1652 = vshll.u32 2102212464, %v1640
        %v1653 = vshrl.u32 920167782, %v1641
        %v1654 = vor.u32 %v1652, %v1653
        %v1655 = vshll.u32 920167782, %v1640
        %v1656 = vshrl.u32 1326507024, %v1641
        %v1657 = vor.u32 %v1655, %v1656
        %vm1658 = vcmp.lt.s32.totalorder %v1639, 1
        %vm1659 = vcmp.lt.s32.totalorder %v1639, 2
        %vm1660 = vcmp.lt.s32.totalorder %v1639, 3
        %vm1661 = vcmp.lt.s32.totalorder %v1639, 4
        %v1662 = vsel %vm1658, %v1642, %v1645
        %v1663 = vsel %vm1661, %v1651, 2102212464
        %v1664 = vsel %vm1660, %v1648, %v1663
        %v1665 = vsel %vm1659, %v1662, %v1664
        %v1666 = vsel %vm1658, %v1645, %v1648
        %v1667 = vsel %vm1661, %v1654, 920167782
        %v1668 = vsel %vm1660, %v1651, %v1667
        %v1669 = vsel %vm1659, %v1666, %v1668
        %v1670 = vsel %vm1658, %v1648, %v1651
        %v1671 = vsel %vm1661, %v1657, 1326507024
        %v1672 = vsel %vm1660, %v1654, %v1671
        %v1673 = vsel %vm1659, %v1670, %v1672
        %v1674 = vshll.u32 %v1634, 8
        %v1675 = vmul.u32.u64.compose %v1674, %v1673
        %v1676 = vextract.low.u32 %v1675
        %v1677 = vextract.high.u32 %v1675
        %v1678 = vmul.u32.u64.compose %v1674, %v1669
        %v1679 = vextract.low.u32 %v1678
        %v1680 = vextract.high.u32 %v1678
        %v1681 = vmul.u32 %v1674, %v1665
        %v1682 = vadd.s32 %v1677, %v1679
        %vm1683 = vc.u32 %v1677, %v1679
        %v1684 = vadd.s32 %v1680, 1
        %v1685 = vsel %vm1683, %v1684, %v1680
        %v1686 = vadd.s32 %v1681, %v1685
        %v1687 = vadd.s32 %v1686, 536870912
        %v1688 = vshrl.u32 %v1687, 30
        %v1689 = vshll.u32 %v1688, 30
        %v1690 = vsub.s32 %v1686, %v1689
        %vm1691 = vcmp.lt.s32.totalorder %v1690, 0
        %v1692 = vsub.s32 0, %v1690
        %v1693 = vsel %vm1691, %v1692, %v1690
        %v1694 = vclz %v1693
        %v1695 = vsub.s32 %v1694, 2
        %vm1696 = vcmp.gt.s32.totalorder 0, %v1695
        %v1697 = vsel %vm1696, 0, %v1695
        %v1698 = vsub.s32 32, %v1697
        %v1699 = vshll.u32 %v1690, %v1697
        %v1700 = vshrl.u32 %v1682, %v1698
        %v1701 = vor.u32 %v1699, %v1700
        %v1702 = vsub.s32 4294967266, %v1697
        %v1703 = vadd.s32 %v1702, 127
        %v1704 = vshll.u32 %v1703, 23
        %v1705 = vor.u32 4788187, %v1704
        %v1706 = vand.u32 2147483647, %v1705
        %v1708 = vcvt.s32.f32 %v1701
        %v1709 = vmul.f32 %v1708, %v1706
        %v1710 = vxor.u32 %v1709, 2147483648
        %v1711 = vsel %vm1628, %v1710, %v1709
        %v1712 = vsub.s32 4, %v1688
        %v1713 = vsel %vm1628, %v1712, %v1688
        %v1714 = vsel %vm1627, %v477, %v1711
        %v1715 = vsel %vm1627, 0, %v1713
        %v1716 = vcosq.f32.pop %v1714
        %v1717 = vsinq.f32.pop %v1714
        %vm1718 = vweird.f32 %v477
        %v1719 = vadd.s32 %v1715, 3
        %v1720 = vand.u32 %v1719, 3
        %vm1721 = vcmp.lt.s32.totalorder %v1720, 2
        %vm1722 = vcmp.eq.s32.totalorder %v1720, 0
        %v1723 = vxor.u32 %v1717, 2147483648
        %v1724 = vsel %vm1722, %v1716, %v1723
        %vm1725 = vcmp.eq.s32.totalorder %v1720, 2
        %v1726 = vxor.u32 %v1716, 2147483648
        %v1727 = vsel %vm1725, %v1726, %v1717
        %v1728 = vsel %vm1721, %v1724, %v1727
        %v1729 = vsel %vm1718, nan, %v1728
        %v1730 = vand.u32 2147483647, %v478
        %vm1731 = vcmp.le.f32.partialorder %v1730, 0.7853982
        %vm1732 = vcmp.lt.s32.totalorder %v478, 0
        %v1733 = vand.u32 %v478, 2139095040
        %v1734 = vshrl.u32 %v1733, 23
        %v1735 = vsub.s32 %v1734, 127
        %v1736 = vand.u32 2147483647, %v478
        %v1737 = vand.u32 %v1736, 8388607
        %v1738 = vor.u32 %v1737, 8388608
        %v1739 = vsub.s32 0, %v1738
        %v1740 = vadd.s32 %v1735, 1
        %vm1741 = vcmp.gt.s32.totalorder %v1740, 0
        %v1742 = vsel %vm1741, %v1740, 0
        %v1743 = vshrl.u32 %v1742, 5
        %v1744 = vand.u32 %v1742, 31
        %v1745 = vsub.s32 32, %v1744
        %v1746 = vshrl.u32 683565275, %v1745
        %v1747 = vshll.u32 683565275, %v1744
        %v1748 = vshrl.u32 2475754826, %v1745
        %v1749 = vor.u32 %v1747, %v1748
        %v1750 = vshll.u32 2475754826, %v1744
        %v1751 = vshrl.u32 2131351028, %v1745
        %v1752 = vor.u32 %v1750, %v1751
        %v1753 = vshll.u32 2131351028, %v1744
        %v1754 = vshrl.u32 2102212464, %v1745
        %v1755 = vor.u32 %v1753, %v1754
        %v1756 = vshll.u32 2102212464, %v1744
        %v1757 = vshrl.u32 920167782, %v1745
        %v1758 = vor.u32 %v1756, %v1757
        %v1759 = vshll.u32 920167782, %v1744
        %v1760 = vshrl.u32 1326507024, %v1745
        %v1761 = vor.u32 %v1759, %v1760
        %vm1762 = vcmp.lt.s32.totalorder %v1743, 1
        %vm1763 = vcmp.lt.s32.totalorder %v1743, 2
        %vm1764 = vcmp.lt.s32.totalorder %v1743, 3
        %vm1765 = vcmp.lt.s32.totalorder %v1743, 4
        %v1766 = vsel %vm1762, %v1746, %v1749
        %v1767 = vsel %vm1765, %v1755, 2102212464
        %v1768 = vsel %vm1764, %v1752, %v1767
        %v1769 = vsel %vm1763, %v1766, %v1768
        %v1770 = vsel %vm1762, %v1749, %v1752
        %v1771 = vsel %vm1765, %v1758, 920167782
        %v1772 = vsel %vm1764, %v1755, %v1771
        %v1773 = vsel %vm1763, %v1770, %v1772
        %v1774 = vsel %vm1762, %v1752, %v1755
        %v1775 = vsel %vm1765, %v1761, 1326507024
        %v1776 = vsel %vm1764, %v1758, %v1775
        %v1777 = vsel %vm1763, %v1774, %v1776
        %v1778 = vshll.u32 %v1738, 8
        %v1779 = vmul.u32.u64.compose %v1778, %v1777
        %v1780 = vextract.low.u32 %v1779
        %v1781 = vextract.high.u32 %v1779
        %v1782 = vmul.u32.u64.compose %v1778, %v1773
        %v1783 = vextract.low.u32 %v1782
        %v1784 = vextract.high.u32 %v1782
        %v1785 = vmul.u32 %v1778, %v1769
        %v1786 = vadd.s32 %v1781, %v1783
        %vm1787 = vc.u32 %v1781, %v1783
        %v1788 = vadd.s32 %v1784, 1
        %v1789 = vsel %vm1787, %v1788, %v1784
        %v1790 = vadd.s32 %v1785, %v1789
        %v1791 = vadd.s32 %v1790, 536870912
        %v1792 = vshrl.u32 %v1791, 30
        %v1793 = vshll.u32 %v1792, 30
        %v1794 = vsub.s32 %v1790, %v1793
        %vm1795 = vcmp.lt.s32.totalorder %v1794, 0
        %v1796 = vsub.s32 0, %v1794
        %v1797 = vsel %vm1795, %v1796, %v1794
        %v1798 = vclz %v1797
        %v1799 = vsub.s32 %v1798, 2
        %vm1800 = vcmp.gt.s32.totalorder 0, %v1799
        %v1801 = vsel %vm1800, 0, %v1799
        %v1802 = vsub.s32 32, %v1801
        %v1803 = vshll.u32 %v1794, %v1801
        %v1804 = vshrl.u32 %v1786, %v1802
        %v1805 = vor.u32 %v1803, %v1804
        %v1806 = vsub.s32 4294967266, %v1801
        %v1807 = vadd.s32 %v1806, 127
        %v1808 = vshll.u32 %v1807, 23
        %v1809 = vor.u32 4788187, %v1808
        %v1810 = vand.u32 2147483647, %v1809
        %v1812 = vcvt.s32.f32 %v1805
        %v1813 = vmul.f32 %v1812, %v1810
        %v1814 = vxor.u32 %v1813, 2147483648
        %v1815 = vsel %vm1732, %v1814, %v1813
        %v1816 = vsub.s32 4, %v1792
        %v1817 = vsel %vm1732, %v1816, %v1792
        %v1818 = vsel %vm1731, %v478, %v1815
        %v1819 = vsel %vm1731, 0, %v1817
        %v1820 = vcosq.f32.pop %v1818
        %v1821 = vsinq.f32.pop %v1818
        %vm1822 = vweird.f32 %v478
        %v1823 = vadd.s32 %v1819, 3
        %v1824 = vand.u32 %v1823, 3
        %vm1825 = vcmp.lt.s32.totalorder %v1824, 2
        %vm1826 = vcmp.eq.s32.totalorder %v1824, 0
        %v1827 = vxor.u32 %v1821, 2147483648
        %v1828 = vsel %vm1826, %v1820, %v1827
        %vm1829 = vcmp.eq.s32.totalorder %v1824, 2
        %v1830 = vxor.u32 %v1820, 2147483648
        %v1831 = vsel %vm1829, %v1830, %v1821
        %v1832 = vsel %vm1825, %v1828, %v1831
        %v1833 = vsel %vm1822, nan, %v1832
        %v1834 = vand.u32 2147483647, %v479
        %vm1835 = vcmp.le.f32.partialorder %v1834, 0.7853982
        %vm1836 = vcmp.lt.s32.totalorder %v479, 0
        %v1837 = vand.u32 %v479, 2139095040
        %v1838 = vshrl.u32 %v1837, 23
        %v1839 = vsub.s32 %v1838, 127
        %v1840 = vand.u32 2147483647, %v479
        %v1841 = vand.u32 %v1840, 8388607
        %v1842 = vor.u32 %v1841, 8388608
        %v1843 = vsub.s32 0, %v1842
        %v1844 = vadd.s32 %v1839, 1
        %vm1845 = vcmp.gt.s32.totalorder %v1844, 0
        %v1846 = vsel %vm1845, %v1844, 0
        %v1847 = vshrl.u32 %v1846, 5
        %v1848 = vand.u32 %v1846, 31
        %v1849 = vsub.s32 32, %v1848
        %v1850 = vshrl.u32 683565275, %v1849
        %v1851 = vshll.u32 683565275, %v1848
        %v1852 = vshrl.u32 2475754826, %v1849
        %v1853 = vor.u32 %v1851, %v1852
        %v1854 = vshll.u32 2475754826, %v1848
        %v1855 = vshrl.u32 2131351028, %v1849
        %v1856 = vor.u32 %v1854, %v1855
        %v1857 = vshll.u32 2131351028, %v1848
        %v1858 = vshrl.u32 2102212464, %v1849
        %v1859 = vor.u32 %v1857, %v1858
        %v1860 = vshll.u32 2102212464, %v1848
        %v1861 = vshrl.u32 920167782, %v1849
        %v1862 = vor.u32 %v1860, %v1861
        %v1863 = vshll.u32 920167782, %v1848
        %v1864 = vshrl.u32 1326507024, %v1849
        %v1865 = vor.u32 %v1863, %v1864
        %vm1866 = vcmp.lt.s32.totalorder %v1847, 1
        %vm1867 = vcmp.lt.s32.totalorder %v1847, 2
        %vm1868 = vcmp.lt.s32.totalorder %v1847, 3
        %vm1869 = vcmp.lt.s32.totalorder %v1847, 4
        %v1870 = vsel %vm1866, %v1850, %v1853
        %v1871 = vsel %vm1869, %v1859, 2102212464
        %v1872 = vsel %vm1868, %v1856, %v1871
        %v1873 = vsel %vm1867, %v1870, %v1872
        %v1874 = vsel %vm1866, %v1853, %v1856
        %v1875 = vsel %vm1869, %v1862, 920167782
        %v1876 = vsel %vm1868, %v1859, %v1875
        %v1877 = vsel %vm1867, %v1874, %v1876
        %v1878 = vsel %vm1866, %v1856, %v1859
        %v1879 = vsel %vm1869, %v1865, 1326507024
        %v1880 = vsel %vm1868, %v1862, %v1879
        %v1881 = vsel %vm1867, %v1878, %v1880
        %v1882 = vshll.u32 %v1842, 8
        %v1883 = vmul.u32.u64.compose %v1882, %v1881
        %v1884 = vextract.low.u32 %v1883
        %v1885 = vextract.high.u32 %v1883
        %v1886 = vmul.u32.u64.compose %v1882, %v1877
        %v1887 = vextract.low.u32 %v1886
        %v1888 = vextract.high.u32 %v1886
        %v1889 = vmul.u32 %v1882, %v1873
        %v1890 = vadd.s32 %v1885, %v1887
        %vm1891 = vc.u32 %v1885, %v1887
        %v1892 = vadd.s32 %v1888, 1
        %v1893 = vsel %vm1891, %v1892, %v1888
        %v1894 = vadd.s32 %v1889, %v1893
        %v1895 = vadd.s32 %v1894, 536870912
        %v1896 = vshrl.u32 %v1895, 30
        %v1897 = vshll.u32 %v1896, 30
        %v1898 = vsub.s32 %v1894, %v1897
        %vm1899 = vcmp.lt.s32.totalorder %v1898, 0
        %v1900 = vsub.s32 0, %v1898
        %v1901 = vsel %vm1899, %v1900, %v1898
        %v1902 = vclz %v1901
        %v1903 = vsub.s32 %v1902, 2
        %vm1904 = vcmp.gt.s32.totalorder 0, %v1903
        %v1905 = vsel %vm1904, 0, %v1903
        %v1906 = vsub.s32 32, %v1905
        %v1907 = vshll.u32 %v1898, %v1905
        %v1908 = vshrl.u32 %v1890, %v1906
        %v1909 = vor.u32 %v1907, %v1908
        %v1910 = vsub.s32 4294967266, %v1905
        %v1911 = vadd.s32 %v1910, 127
        %v1912 = vshll.u32 %v1911, 23
        %v1913 = vor.u32 4788187, %v1912
        %v1914 = vand.u32 2147483647, %v1913
        %v1916 = vcvt.s32.f32 %v1909
        %v1917 = vmul.f32 %v1916, %v1914
        %v1918 = vxor.u32 %v1917, 2147483648
        %v1919 = vsel %vm1836, %v1918, %v1917
        %v1920 = vsub.s32 4, %v1896
        %v1921 = vsel %vm1836, %v1920, %v1896
        %v1922 = vsel %vm1835, %v479, %v1919
        %v1923 = vsel %vm1835, 0, %v1921
        %v1924 = vcosq.f32.pop %v1922
        %v1925 = vsinq.f32.pop %v1922
        %vm1926 = vweird.f32 %v479
        %v1927 = vadd.s32 %v1923, 3
        %v1928 = vand.u32 %v1927, 3
        %vm1929 = vcmp.lt.s32.totalorder %v1928, 2
        %vm1930 = vcmp.eq.s32.totalorder %v1928, 0
        %v1931 = vxor.u32 %v1925, 2147483648
        %v1932 = vsel %vm1930, %v1924, %v1931
        %vm1933 = vcmp.eq.s32.totalorder %v1928, 2
        %v1934 = vxor.u32 %v1924, 2147483648
        %v1935 = vsel %vm1933, %v1934, %v1925
        %v1936 = vsel %vm1929, %v1932, %v1935
        %v1937 = vsel %vm1926, nan, %v1936
        %v1938 = vand.u32 2147483647, %v480
        %vm1939 = vcmp.le.f32.partialorder %v1938, 0.7853982
        %vm1940 = vcmp.lt.s32.totalorder %v480, 0
        %v1941 = vand.u32 %v480, 2139095040
        %v1942 = vshrl.u32 %v1941, 23
        %v1943 = vsub.s32 %v1942, 127
        %v1944 = vand.u32 2147483647, %v480
        %v1945 = vand.u32 %v1944, 8388607
        %v1946 = vor.u32 %v1945, 8388608
        %v1947 = vsub.s32 0, %v1946
        %v1948 = vadd.s32 %v1943, 1
        %vm1949 = vcmp.gt.s32.totalorder %v1948, 0
        %v1950 = vsel %vm1949, %v1948, 0
        %v1951 = vshrl.u32 %v1950, 5
        %v1952 = vand.u32 %v1950, 31
        %v1953 = vsub.s32 32, %v1952
        %v1954 = vshrl.u32 683565275, %v1953
        %v1955 = vshll.u32 683565275, %v1952
        %v1956 = vshrl.u32 2475754826, %v1953
        %v1957 = vor.u32 %v1955, %v1956
        %v1958 = vshll.u32 2475754826, %v1952
        %v1959 = vshrl.u32 2131351028, %v1953
        %v1960 = vor.u32 %v1958, %v1959
        %v1961 = vshll.u32 2131351028, %v1952
        %v1962 = vshrl.u32 2102212464, %v1953
        %v1963 = vor.u32 %v1961, %v1962
        %v1964 = vshll.u32 2102212464, %v1952
        %v1965 = vshrl.u32 920167782, %v1953
        %v1966 = vor.u32 %v1964, %v1965
        %v1967 = vshll.u32 920167782, %v1952
        %v1968 = vshrl.u32 1326507024, %v1953
        %v1969 = vor.u32 %v1967, %v1968
        %vm1970 = vcmp.lt.s32.totalorder %v1951, 1
        %vm1971 = vcmp.lt.s32.totalorder %v1951, 2
        %vm1972 = vcmp.lt.s32.totalorder %v1951, 3
        %vm1973 = vcmp.lt.s32.totalorder %v1951, 4
        %v1974 = vsel %vm1970, %v1954, %v1957
        %v1975 = vsel %vm1973, %v1963, 2102212464
        %v1976 = vsel %vm1972, %v1960, %v1975
        %v1977 = vsel %vm1971, %v1974, %v1976
        %v1978 = vsel %vm1970, %v1957, %v1960
        %v1979 = vsel %vm1973, %v1966, 920167782
        %v1980 = vsel %vm1972, %v1963, %v1979
        %v1981 = vsel %vm1971, %v1978, %v1980
        %v1982 = vsel %vm1970, %v1960, %v1963
        %v1983 = vsel %vm1973, %v1969, 1326507024
        %v1984 = vsel %vm1972, %v1966, %v1983
        %v1985 = vsel %vm1971, %v1982, %v1984
        %v1986 = vshll.u32 %v1946, 8
        %v1987 = vmul.u32.u64.compose %v1986, %v1985
        %v1988 = vextract.low.u32 %v1987
        %v1989 = vextract.high.u32 %v1987
        %v1990 = vmul.u32.u64.compose %v1986, %v1981
        %v1991 = vextract.low.u32 %v1990
        %v1992 = vextract.high.u32 %v1990
        %v1993 = vmul.u32 %v1986, %v1977
        %v1994 = vadd.s32 %v1989, %v1991
        %vm1995 = vc.u32 %v1989, %v1991
        %v1996 = vadd.s32 %v1992, 1
        %v1997 = vsel %vm1995, %v1996, %v1992
        %v1998 = vadd.s32 %v1993, %v1997
        %v1999 = vadd.s32 %v1998, 536870912
        %v2000 = vshrl.u32 %v1999, 30
        %v2001 = vshll.u32 %v2000, 30
        %v2002 = vsub.s32 %v1998, %v2001
        %vm2003 = vcmp.lt.s32.totalorder %v2002, 0
        %v2004 = vsub.s32 0, %v2002
        %v2005 = vsel %vm2003, %v2004, %v2002
        %v2006 = vclz %v2005
        %v2007 = vsub.s32 %v2006, 2
        %vm2008 = vcmp.gt.s32.totalorder 0, %v2007
        %v2009 = vsel %vm2008, 0, %v2007
        %v2010 = vsub.s32 32, %v2009
        %v2011 = vshll.u32 %v2002, %v2009
        %v2012 = vshrl.u32 %v1994, %v2010
        %v2013 = vor.u32 %v2011, %v2012
        %v2014 = vsub.s32 4294967266, %v2009
        %v2015 = vadd.s32 %v2014, 127
        %v2016 = vshll.u32 %v2015, 23
        %v2017 = vor.u32 4788187, %v2016
        %v2018 = vand.u32 2147483647, %v2017
        %v2020 = vcvt.s32.f32 %v2013
        %v2021 = vmul.f32 %v2020, %v2018
        %v2022 = vxor.u32 %v2021, 2147483648
        %v2023 = vsel %vm1940, %v2022, %v2021
        %v2024 = vsub.s32 4, %v2000
        %v2025 = vsel %vm1940, %v2024, %v2000
        %v2026 = vsel %vm1939, %v480, %v2023
        %v2027 = vsel %vm1939, 0, %v2025
        %v2028 = vcosq.f32.pop %v2026
        %v2029 = vsinq.f32.pop %v2026
        %vm2030 = vweird.f32 %v480
        %v2031 = vadd.s32 %v2027, 3
        %v2032 = vand.u32 %v2031, 3
        %vm2033 = vcmp.lt.s32.totalorder %v2032, 2
        %vm2034 = vcmp.eq.s32.totalorder %v2032, 0
        %v2035 = vxor.u32 %v2029, 2147483648
        %v2036 = vsel %vm2034, %v2028, %v2035
        %vm2037 = vcmp.eq.s32.totalorder %v2032, 2
        %v2038 = vxor.u32 %v2028, 2147483648
        %v2039 = vsel %vm2037, %v2038, %v2029
        %v2040 = vsel %vm2033, %v2036, %v2039
        %v2041 = vsel %vm2030, nan, %v2040
        %v2042 = vand.u32 2147483647, %v481
        %vm2043 = vcmp.le.f32.partialorder %v2042, 0.7853982
        %vm2044 = vcmp.lt.s32.totalorder %v481, 0
        %v2045 = vand.u32 %v481, 2139095040
        %v2046 = vshrl.u32 %v2045, 23
        %v2047 = vsub.s32 %v2046, 127
        %v2048 = vand.u32 2147483647, %v481
        %v2049 = vand.u32 %v2048, 8388607
        %v2050 = vor.u32 %v2049, 8388608
        %v2051 = vsub.s32 0, %v2050
        %v2052 = vadd.s32 %v2047, 1
        %vm2053 = vcmp.gt.s32.totalorder %v2052, 0
        %v2054 = vsel %vm2053, %v2052, 0
        %v2055 = vshrl.u32 %v2054, 5
        %v2056 = vand.u32 %v2054, 31
        %v2057 = vsub.s32 32, %v2056
        %v2058 = vshrl.u32 683565275, %v2057
        %v2059 = vshll.u32 683565275, %v2056
        %v2060 = vshrl.u32 2475754826, %v2057
        %v2061 = vor.u32 %v2059, %v2060
        %v2062 = vshll.u32 2475754826, %v2056
        %v2063 = vshrl.u32 2131351028, %v2057
        %v2064 = vor.u32 %v2062, %v2063
        %v2065 = vshll.u32 2131351028, %v2056
        %v2066 = vshrl.u32 2102212464, %v2057
        %v2067 = vor.u32 %v2065, %v2066
        %v2068 = vshll.u32 2102212464, %v2056
        %v2069 = vshrl.u32 920167782, %v2057
        %v2070 = vor.u32 %v2068, %v2069
        %v2071 = vshll.u32 920167782, %v2056
        %v2072 = vshrl.u32 1326507024, %v2057
        %v2073 = vor.u32 %v2071, %v2072
        %vm2074 = vcmp.lt.s32.totalorder %v2055, 1
        %vm2075 = vcmp.lt.s32.totalorder %v2055, 2
        %vm2076 = vcmp.lt.s32.totalorder %v2055, 3
        %vm2077 = vcmp.lt.s32.totalorder %v2055, 4
        %v2078 = vsel %vm2074, %v2058, %v2061
        %v2079 = vsel %vm2077, %v2067, 2102212464
        %v2080 = vsel %vm2076, %v2064, %v2079
        %v2081 = vsel %vm2075, %v2078, %v2080
        %v2082 = vsel %vm2074, %v2061, %v2064
        %v2083 = vsel %vm2077, %v2070, 920167782
        %v2084 = vsel %vm2076, %v2067, %v2083
        %v2085 = vsel %vm2075, %v2082, %v2084
        %v2086 = vsel %vm2074, %v2064, %v2067
        %v2087 = vsel %vm2077, %v2073, 1326507024
        %v2088 = vsel %vm2076, %v2070, %v2087
        %v2089 = vsel %vm2075, %v2086, %v2088
        %v2090 = vshll.u32 %v2050, 8
        %v2091 = vmul.u32.u64.compose %v2090, %v2089
        %v2092 = vextract.low.u32 %v2091
        %v2093 = vextract.high.u32 %v2091
        %v2094 = vmul.u32.u64.compose %v2090, %v2085
        %v2095 = vextract.low.u32 %v2094
        %v2096 = vextract.high.u32 %v2094
        %v2097 = vmul.u32 %v2090, %v2081
        %v2098 = vadd.s32 %v2093, %v2095
        %vm2099 = vc.u32 %v2093, %v2095
        %v2100 = vadd.s32 %v2096, 1
        %v2101 = vsel %vm2099, %v2100, %v2096
        %v2102 = vadd.s32 %v2097, %v2101
        %v2103 = vadd.s32 %v2102, 536870912
        %v2104 = vshrl.u32 %v2103, 30
        %v2105 = vshll.u32 %v2104, 30
        %v2106 = vsub.s32 %v2102, %v2105
        %vm2107 = vcmp.lt.s32.totalorder %v2106, 0
        %v2108 = vsub.s32 0, %v2106
        %v2109 = vsel %vm2107, %v2108, %v2106
        %v2110 = vclz %v2109
        %v2111 = vsub.s32 %v2110, 2
        %vm2112 = vcmp.gt.s32.totalorder 0, %v2111
        %v2113 = vsel %vm2112, 0, %v2111
        %v2114 = vsub.s32 32, %v2113
        %v2115 = vshll.u32 %v2106, %v2113
        %v2116 = vshrl.u32 %v2098, %v2114
        %v2117 = vor.u32 %v2115, %v2116
        %v2118 = vsub.s32 4294967266, %v2113
        %v2119 = vadd.s32 %v2118, 127
        %v2120 = vshll.u32 %v2119, 23
        %v2121 = vor.u32 4788187, %v2120
        %v2122 = vand.u32 2147483647, %v2121
        %v2124 = vcvt.s32.f32 %v2117
        %v2125 = vmul.f32 %v2124, %v2122
        %v2126 = vxor.u32 %v2125, 2147483648
        %v2127 = vsel %vm2044, %v2126, %v2125
        %v2128 = vsub.s32 4, %v2104
        %v2129 = vsel %vm2044, %v2128, %v2104
        %v2130 = vsel %vm2043, %v481, %v2127
        %v2131 = vsel %vm2043, 0, %v2129
        %v2132 = vcosq.f32.pop %v2130
        %v2133 = vsinq.f32.pop %v2130
        %vm2134 = vweird.f32 %v481
        %v2135 = vadd.s32 %v2131, 3
        %v2136 = vand.u32 %v2135, 3
        %vm2137 = vcmp.lt.s32.totalorder %v2136, 2
        %vm2138 = vcmp.eq.s32.totalorder %v2136, 0
        %v2139 = vxor.u32 %v2133, 2147483648
        %v2140 = vsel %vm2138, %v2132, %v2139
        %vm2141 = vcmp.eq.s32.totalorder %v2136, 2
        %v2142 = vxor.u32 %v2132, 2147483648
        %v2143 = vsel %vm2141, %v2142, %v2133
        %v2144 = vsel %vm2137, %v2140, %v2143
        %v2145 = vsel %vm2134, nan, %v2144
        %v2146 = vld [vmem:[%s3] sm:$0xff]
        %v2147 = vld [vmem:[%s3 + $0x8] sm:$0xff]
        %v2148 = vld [vmem:[%s3 + $0x10] sm:$0xff]
        %v2149 = vld [vmem:[%s3 + $0x18] sm:$0xff]
        %v2150 = vld [vmem:[%s4] sm:$0xff]
        %v2151 = vld [vmem:[%s4 + $0x8] sm:$0xff]
        %v2152 = vld [vmem:[%s4 + $0x10] sm:$0xff]
        %v2153 = vld [vmem:[%s4 + $0x18] sm:$0xff]
        %2155 = vset.pattern.permute.xlu0 0
        %2156 = vperm.xlu0 %2155, %v2150
        %v2157 = vpop.permute.xlu0 %2156
        %2160 = vset.pattern.permute.xlu0 0
        %2161 = vperm.xlu0 %2160, %v2151
        %v2162 = vpop.permute.xlu0 %2161
        %2165 = vset.pattern.permute.xlu0 0
        %2166 = vperm.xlu0 %2165, %v2152
        %v2167 = vpop.permute.xlu0 %2166
        %2170 = vset.pattern.permute.xlu0 0
        %2171 = vperm.xlu0 %2170, %v2153
        %v2172 = vpop.permute.xlu0 %2171
        %vm2174 = vcmask 261120
        %v2176 = vsel %vm2174, %v2146, 0
        %v2179 = vsel %vm2174, %v2147, 0
        %v2182 = vsel %vm2174, %v2148, 0
        %v2185 = vsel %vm2174, %v2149, 0
        %2187 = vmatprep.subr.mxu0 0.0
        %2188 = vmatpush1.msra.mxu0 0.0
        %2189 = vmatprep.subr.mxu0 0.0
        %2190 = vmatpush1.msra.mxu0 0.0
        %2191 = vmatprep.subr.mxu0 0.0
        %2192 = vmatpush1.msra.mxu0 0.0
        %2193 = vmatprep.subr.mxu0 0.0
        %2194 = vmatpush1.msra.mxu0 0.0
        %2195 = vmatprep.subr.mxu0 0.0
        %2196 = vmatpush1.msra.mxu0 0.0
        %2197 = vmatprep.subr.mxu0 0.0
        %2198 = vmatpush1.msra.mxu0 0.0
        %2199 = vmatprep.subr.mxu0 0.0
        %2200 = vmatpush1.msra.mxu0 0.0
        %2201 = vmatprep.subr.mxu0 0.0
        %2202 = vmatpush1.msra.mxu0 0.0
        %2203 = vmatprep.subr.mxu0 0.0
        %2204 = vmatpush1.msra.mxu0 0.0
        %2205 = vmatprep.subr.mxu0 0.0
        %2206 = vmatpush1.msra.mxu0 0.0
        %2207 = vmatprep.subr.mxu0 0.0
        %2208 = vmatpush1.msra.mxu0 0.0
        %2209 = vmatprep.subr.mxu0 0.0
        %2210 = vmatpush1.msra.mxu0 0.0
        %2211 = vmatprep.subr.mxu0 %v1937
        %2212 = vmatpush1.msra.mxu0 %v1833
        %2213 = vmatprep.subr.mxu0 %v1521
        %2214 = vmatpush1.msra.mxu0 %v1417
        %2215 = vmatprep.subr.mxu0 %v1105
        %2216 = vmatpush1.msra.mxu0 %v1001
        %2217 = vmatprep.subr.mxu0 %v689
        %2218 = vmatpush1.msra.mxu0 %v585
        %2219 = vmatprep.subr.mxu0 0.0
        %2220 = vmatpush2.msra.mxu0 0.0
        %2221 = vmatprep.subr.mxu0 0.0
        %2222 = vmatpush2.msra.mxu0 0.0
        %2223 = vmatprep.subr.mxu0 0.0
        %2224 = vmatpush2.msra.mxu0 0.0
        %2225 = vmatprep.subr.mxu0 0.0
        %2226 = vmatpush2.msra.mxu0 0.0
        %2227 = vmatprep.subr.mxu0 0.0
        %2228 = vmatpush2.msra.mxu0 0.0
        %2229 = vmatprep.subr.mxu0 0.0
        %2230 = vmatpush2.msra.mxu0 0.0
        %2231 = vmatprep.subr.mxu0 0.0
        %2232 = vmatpush2.msra.mxu0 0.0
        %2233 = vmatprep.subr.mxu0 0.0
        %2234 = vmatpush2.msra.mxu0 0.0
        %2235 = vmatprep.subr.mxu0 0.0
        %2236 = vmatpush2.msra.mxu0 0.0
        %2237 = vmatprep.subr.mxu0 0.0
        %2238 = vmatpush2.msra.mxu0 0.0
        %2239 = vmatprep.subr.mxu0 0.0
        %2240 = vmatpush2.msra.mxu0 0.0
        %2241 = vmatprep.subr.mxu0 0.0
        %2242 = vmatpush2.msra.mxu0 0.0
        %2243 = vmatprep.subr.mxu0 0.0
        %2244 = vmatpush2.msra.mxu0 0.0
        %2245 = vmatprep.subr.mxu0 0.0
        %2246 = vmatpush2.msra.mxu0 0.0
        %2247 = vmatprep.subr.mxu0 0.0
        %2248 = vmatpush2.msra.mxu0 0.0
        %2249 = vmatprep.subr.mxu0 0.0
        %2250 = vmatpush2.msra.mxu0 0.0
        %2251 = vmatprep.mubr.f32.mxu0 0.0
        %2252 = vmatmul.mubr.f32.gmra.mxu0 %v2176
        %v2253 = vpop.f32.mrf.mxu0
        %v2254 = vadd.f32 %v2157, %v2253
        %v2255 = vpop.f32.mrf.mxu0
        %v2256 = vadd.f32 %v2157, %v2255
        %2257 = vmatprep.mubr.f32.mxu0 0.0
        %2258 = vmatmul.mubr.f32.gmra.mxu0 %v2179
        %v2259 = vpop.f32.mrf.mxu0
        %v2260 = vadd.f32 %v2162, %v2259
        %v2261 = vpop.f32.mrf.mxu0
        %v2262 = vadd.f32 %v2162, %v2261
        %2263 = vmatprep.mubr.f32.mxu0 0.0
        %2264 = vmatmul.mubr.f32.gmra.mxu0 %v2182
        %v2265 = vpop.f32.mrf.mxu0
        %v2266 = vadd.f32 %v2167, %v2265
        %v2267 = vpop.f32.mrf.mxu0
        %v2268 = vadd.f32 %v2167, %v2267
        %2269 = vmatprep.mubr.f32.mxu0 0.0
        %2270 = vmatmul.mubr.f32.gmra.mxu0 %v2185
        %v2271 = vpop.f32.mrf.mxu0
        %v2272 = vadd.f32 %v2172, %v2271
        %v2273 = vpop.f32.mrf.mxu0
        %v2274 = vadd.f32 %v2172, %v2273
        %2275 = vdwg.mxu0
        %2276 = vmatprep.subr.mxu0 0.0
        %2277 = vmatpush1.msra.mxu0 0.0
        %2278 = vmatprep.subr.mxu0 0.0
        %2279 = vmatpush1.msra.mxu0 0.0
        %2280 = vmatprep.subr.mxu0 0.0
        %2281 = vmatpush1.msra.mxu0 0.0
        %2282 = vmatprep.subr.mxu0 0.0
        %2283 = vmatpush1.msra.mxu0 0.0
        %2284 = vmatprep.subr.mxu0 0.0
        %2285 = vmatpush1.msra.mxu0 0.0
        %2286 = vmatprep.subr.mxu0 0.0
        %2287 = vmatpush1.msra.mxu0 0.0
        %2288 = vmatprep.subr.mxu0 0.0
        %2289 = vmatpush1.msra.mxu0 0.0
        %2290 = vmatprep.subr.mxu0 0.0
        %2291 = vmatpush1.msra.mxu0 0.0
        %2292 = vmatprep.subr.mxu0 0.0
        %2293 = vmatpush1.msra.mxu0 0.0
        %2294 = vmatprep.subr.mxu0 0.0
        %2295 = vmatpush1.msra.mxu0 0.0
        %2296 = vmatprep.subr.mxu0 0.0
        %2297 = vmatpush1.msra.mxu0 0.0
        %2298 = vmatprep.subr.mxu0 0.0
        %2299 = vmatpush1.msra.mxu0 0.0
        %2300 = vmatprep.subr.mxu0 %v2145
        %2301 = vmatpush1.msra.mxu0 %v2041
        %2302 = vmatprep.subr.mxu0 %v1729
        %2303 = vmatpush1.msra.mxu0 %v1625
        %2304 = vmatprep.subr.mxu0 %v1313
        %2305 = vmatpush1.msra.mxu0 %v1209
        %2306 = vmatprep.subr.mxu0 %v897
        %2307 = vmatpush1.msra.mxu0 %v793
        %2308 = vmatprep.subr.mxu0 0.0
        %2309 = vmatpush2.msra.mxu0 0.0
        %2310 = vmatprep.subr.mxu0 0.0
        %2311 = vmatpush2.msra.mxu0 0.0
        %2312 = vmatprep.subr.mxu0 0.0
        %2313 = vmatpush2.msra.mxu0 0.0
        %2314 = vmatprep.subr.mxu0 0.0
        %2315 = vmatpush2.msra.mxu0 0.0
        %2316 = vmatprep.subr.mxu0 0.0
        %2317 = vmatpush2.msra.mxu0 0.0
        %2318 = vmatprep.subr.mxu0 0.0
        %2319 = vmatpush2.msra.mxu0 0.0
        %2320 = vmatprep.subr.mxu0 0.0
        %2321 = vmatpush2.msra.mxu0 0.0
        %2322 = vmatprep.subr.mxu0 0.0
        %2323 = vmatpush2.msra.mxu0 0.0
        %2324 = vmatprep.subr.mxu0 0.0
        %2325 = vmatpush2.msra.mxu0 0.0
        %2326 = vmatprep.subr.mxu0 0.0
        %2327 = vmatpush2.msra.mxu0 0.0
        %2328 = vmatprep.subr.mxu0 0.0
        %2329 = vmatpush2.msra.mxu0 0.0
        %2330 = vmatprep.subr.mxu0 0.0
        %2331 = vmatpush2.msra.mxu0 0.0
        %2332 = vmatprep.subr.mxu0 0.0
        %2333 = vmatpush2.msra.mxu0 0.0
        %2334 = vmatprep.subr.mxu0 0.0
        %2335 = vmatpush2.msra.mxu0 0.0
        %2336 = vmatprep.subr.mxu0 0.0
        %2337 = vmatpush2.msra.mxu0 0.0
        %2338 = vmatprep.subr.mxu0 0.0
        %2339 = vmatpush2.msra.mxu0 0.0
        %2340 = vmatprep.mubr.f32.mxu0 0.0
        %2341 = vmatmul.mubr.f32.gmra.mxu0 %v2176
        %v2342 = vpop.f32.mrf.mxu0
        %v2343 = vadd.f32 %v2157, %v2342
        %v2344 = vpop.f32.mrf.mxu0
        %v2345 = vadd.f32 %v2157, %v2344
        %2346 = vmatprep.mubr.f32.mxu0 0.0
        %2347 = vmatmul.mubr.f32.gmra.mxu0 %v2179
        %v2348 = vpop.f32.mrf.mxu0
        %v2349 = vadd.f32 %v2162, %v2348
        %v2350 = vpop.f32.mrf.mxu0
        %v2351 = vadd.f32 %v2162, %v2350
        %2352 = vmatprep.mubr.f32.mxu0 0.0
        %2353 = vmatmul.mubr.f32.gmra.mxu0 %v2182
        %v2354 = vpop.f32.mrf.mxu0
        %v2355 = vadd.f32 %v2167, %v2354
        %v2356 = vpop.f32.mrf.mxu0
        %v2357 = vadd.f32 %v2167, %v2356
        %2358 = vmatprep.mubr.f32.mxu0 0.0
        %2359 = vmatmul.mubr.f32.gmra.mxu0 %v2185
        %v2360 = vpop.f32.mrf.mxu0
        %v2361 = vadd.f32 %v2172, %v2360
        %v2362 = vpop.f32.mrf.mxu0
        %v2363 = vadd.f32 %v2172, %v2362
        %2364 = vdwg.mxu0
        %v2365 = vand.u32 2147483647, %v2254
        %vm2366 = vcmp.le.f32.partialorder %v2365, 0.7853982
        %vm2367 = vcmp.lt.s32.totalorder %v2254, 0
        %v2368 = vand.u32 %v2254, 2139095040
        %v2369 = vshrl.u32 %v2368, 23
        %v2370 = vsub.s32 %v2369, 127
        %v2371 = vand.u32 2147483647, %v2254
        %v2372 = vand.u32 %v2371, 8388607
        %v2373 = vor.u32 %v2372, 8388608
        %v2374 = vsub.s32 0, %v2373
        %v2375 = vadd.s32 %v2370, 1
        %vm2376 = vcmp.gt.s32.totalorder %v2375, 0
        %v2377 = vsel %vm2376, %v2375, 0
        %v2378 = vshrl.u32 %v2377, 5
        %v2379 = vand.u32 %v2377, 31
        %v2380 = vsub.s32 32, %v2379
        %v2381 = vshrl.u32 683565275, %v2380
        %v2382 = vshll.u32 683565275, %v2379
        %v2383 = vshrl.u32 2475754826, %v2380
        %v2384 = vor.u32 %v2382, %v2383
        %v2385 = vshll.u32 2475754826, %v2379
        %v2386 = vshrl.u32 2131351028, %v2380
        %v2387 = vor.u32 %v2385, %v2386
        %v2388 = vshll.u32 2131351028, %v2379
        %v2389 = vshrl.u32 2102212464, %v2380
        %v2390 = vor.u32 %v2388, %v2389
        %v2391 = vshll.u32 2102212464, %v2379
        %v2392 = vshrl.u32 920167782, %v2380
        %v2393 = vor.u32 %v2391, %v2392
        %v2394 = vshll.u32 920167782, %v2379
        %v2395 = vshrl.u32 1326507024, %v2380
        %v2396 = vor.u32 %v2394, %v2395
        %vm2397 = vcmp.lt.s32.totalorder %v2378, 1
        %vm2398 = vcmp.lt.s32.totalorder %v2378, 2
        %vm2399 = vcmp.lt.s32.totalorder %v2378, 3
        %vm2400 = vcmp.lt.s32.totalorder %v2378, 4
        %v2401 = vsel %vm2397, %v2381, %v2384
        %v2402 = vsel %vm2400, %v2390, 2102212464
        %v2403 = vsel %vm2399, %v2387, %v2402
        %v2404 = vsel %vm2398, %v2401, %v2403
        %v2405 = vsel %vm2397, %v2384, %v2387
        %v2406 = vsel %vm2400, %v2393, 920167782
        %v2407 = vsel %vm2399, %v2390, %v2406
        %v2408 = vsel %vm2398, %v2405, %v2407
        %v2409 = vsel %vm2397, %v2387, %v2390
        %v2410 = vsel %vm2400, %v2396, 1326507024
        %v2411 = vsel %vm2399, %v2393, %v2410
        %v2412 = vsel %vm2398, %v2409, %v2411
        %v2413 = vshll.u32 %v2373, 8
        %v2414 = vmul.u32.u64.compose %v2413, %v2412
        %v2415 = vextract.low.u32 %v2414
        %v2416 = vextract.high.u32 %v2414
        %v2417 = vmul.u32.u64.compose %v2413, %v2408
        %v2418 = vextract.low.u32 %v2417
        %v2419 = vextract.high.u32 %v2417
        %v2420 = vmul.u32 %v2413, %v2404
        %v2421 = vadd.s32 %v2416, %v2418
        %vm2422 = vc.u32 %v2416, %v2418
        %v2423 = vadd.s32 %v2419, 1
        %v2424 = vsel %vm2422, %v2423, %v2419
        %v2425 = vadd.s32 %v2420, %v2424
        %v2426 = vadd.s32 %v2425, 536870912
        %v2427 = vshrl.u32 %v2426, 30
        %v2428 = vshll.u32 %v2427, 30
        %v2429 = vsub.s32 %v2425, %v2428
        %vm2430 = vcmp.lt.s32.totalorder %v2429, 0
        %v2431 = vsub.s32 0, %v2429
        %v2432 = vsel %vm2430, %v2431, %v2429
        %v2433 = vclz %v2432
        %v2434 = vsub.s32 %v2433, 2
        %vm2435 = vcmp.gt.s32.totalorder 0, %v2434
        %v2436 = vsel %vm2435, 0, %v2434
        %v2437 = vsub.s32 32, %v2436
        %v2438 = vshll.u32 %v2429, %v2436
        %v2439 = vshrl.u32 %v2421, %v2437
        %v2440 = vor.u32 %v2438, %v2439
        %v2441 = vsub.s32 4294967266, %v2436
        %v2442 = vadd.s32 %v2441, 127
        %v2443 = vshll.u32 %v2442, 23
        %v2444 = vor.u32 4788187, %v2443
        %v2445 = vand.u32 2147483647, %v2444
        %v2447 = vcvt.s32.f32 %v2440
        %v2448 = vmul.f32 %v2447, %v2445
        %v2449 = vxor.u32 %v2448, 2147483648
        %v2450 = vsel %vm2367, %v2449, %v2448
        %v2451 = vsub.s32 4, %v2427
        %v2452 = vsel %vm2367, %v2451, %v2427
        %v2453 = vsel %vm2366, %v2254, %v2450
        %v2454 = vsel %vm2366, 0, %v2452
        %v2455 = vcosq.f32.pop %v2453
        %v2456 = vsinq.f32.pop %v2453
        %vm2457 = vweird.f32 %v2254
        %v2458 = vadd.s32 %v2454, 3
        %v2459 = vand.u32 %v2458, 3
        %vm2460 = vcmp.lt.s32.totalorder %v2459, 2
        %vm2461 = vcmp.eq.s32.totalorder %v2459, 0
        %v2462 = vxor.u32 %v2456, 2147483648
        %v2463 = vsel %vm2461, %v2455, %v2462
        %vm2464 = vcmp.eq.s32.totalorder %v2459, 2
        %v2465 = vxor.u32 %v2455, 2147483648
        %v2466 = vsel %vm2464, %v2465, %v2456
        %v2467 = vsel %vm2460, %v2463, %v2466
        %v2468 = vsel %vm2457, nan, %v2467
        %v2469 = vand.u32 2147483647, %v2256
        %vm2470 = vcmp.le.f32.partialorder %v2469, 0.7853982
        %vm2471 = vcmp.lt.s32.totalorder %v2256, 0
        %v2472 = vand.u32 %v2256, 2139095040
        %v2473 = vshrl.u32 %v2472, 23
        %v2474 = vsub.s32 %v2473, 127
        %v2475 = vand.u32 2147483647, %v2256
        %v2476 = vand.u32 %v2475, 8388607
        %v2477 = vor.u32 %v2476, 8388608
        %v2478 = vsub.s32 0, %v2477
        %v2479 = vadd.s32 %v2474, 1
        %vm2480 = vcmp.gt.s32.totalorder %v2479, 0
        %v2481 = vsel %vm2480, %v2479, 0
        %v2482 = vshrl.u32 %v2481, 5
        %v2483 = vand.u32 %v2481, 31
        %v2484 = vsub.s32 32, %v2483
        %v2485 = vshrl.u32 683565275, %v2484
        %v2486 = vshll.u32 683565275, %v2483
        %v2487 = vshrl.u32 2475754826, %v2484
        %v2488 = vor.u32 %v2486, %v2487
        %v2489 = vshll.u32 2475754826, %v2483
        %v2490 = vshrl.u32 2131351028, %v2484
        %v2491 = vor.u32 %v2489, %v2490
        %v2492 = vshll.u32 2131351028, %v2483
        %v2493 = vshrl.u32 2102212464, %v2484
        %v2494 = vor.u32 %v2492, %v2493
        %v2495 = vshll.u32 2102212464, %v2483
        %v2496 = vshrl.u32 920167782, %v2484
        %v2497 = vor.u32 %v2495, %v2496
        %v2498 = vshll.u32 920167782, %v2483
        %v2499 = vshrl.u32 1326507024, %v2484
        %v2500 = vor.u32 %v2498, %v2499
        %vm2501 = vcmp.lt.s32.totalorder %v2482, 1
        %vm2502 = vcmp.lt.s32.totalorder %v2482, 2
        %vm2503 = vcmp.lt.s32.totalorder %v2482, 3
        %vm2504 = vcmp.lt.s32.totalorder %v2482, 4
        %v2505 = vsel %vm2501, %v2485, %v2488
        %v2506 = vsel %vm2504, %v2494, 2102212464
        %v2507 = vsel %vm2503, %v2491, %v2506
        %v2508 = vsel %vm2502, %v2505, %v2507
        %v2509 = vsel %vm2501, %v2488, %v2491
        %v2510 = vsel %vm2504, %v2497, 920167782
        %v2511 = vsel %vm2503, %v2494, %v2510
        %v2512 = vsel %vm2502, %v2509, %v2511
        %v2513 = vsel %vm2501, %v2491, %v2494
        %v2514 = vsel %vm2504, %v2500, 1326507024
        %v2515 = vsel %vm2503, %v2497, %v2514
        %v2516 = vsel %vm2502, %v2513, %v2515
        %v2517 = vshll.u32 %v2477, 8
        %v2518 = vmul.u32.u64.compose %v2517, %v2516
        %v2519 = vextract.low.u32 %v2518
        %v2520 = vextract.high.u32 %v2518
        %v2521 = vmul.u32.u64.compose %v2517, %v2512
        %v2522 = vextract.low.u32 %v2521
        %v2523 = vextract.high.u32 %v2521
        %v2524 = vmul.u32 %v2517, %v2508
        %v2525 = vadd.s32 %v2520, %v2522
        %vm2526 = vc.u32 %v2520, %v2522
        %v2527 = vadd.s32 %v2523, 1
        %v2528 = vsel %vm2526, %v2527, %v2523
        %v2529 = vadd.s32 %v2524, %v2528
        %v2530 = vadd.s32 %v2529, 536870912
        %v2531 = vshrl.u32 %v2530, 30
        %v2532 = vshll.u32 %v2531, 30
        %v2533 = vsub.s32 %v2529, %v2532
        %vm2534 = vcmp.lt.s32.totalorder %v2533, 0
        %v2535 = vsub.s32 0, %v2533
        %v2536 = vsel %vm2534, %v2535, %v2533
        %v2537 = vclz %v2536
        %v2538 = vsub.s32 %v2537, 2
        %vm2539 = vcmp.gt.s32.totalorder 0, %v2538
        %v2540 = vsel %vm2539, 0, %v2538
        %v2541 = vsub.s32 32, %v2540
        %v2542 = vshll.u32 %v2533, %v2540
        %v2543 = vshrl.u32 %v2525, %v2541
        %v2544 = vor.u32 %v2542, %v2543
        %v2545 = vsub.s32 4294967266, %v2540
        %v2546 = vadd.s32 %v2545, 127
        %v2547 = vshll.u32 %v2546, 23
        %v2548 = vor.u32 4788187, %v2547
        %v2549 = vand.u32 2147483647, %v2548
        %v2551 = vcvt.s32.f32 %v2544
        %v2552 = vmul.f32 %v2551, %v2549
        %v2553 = vxor.u32 %v2552, 2147483648
        %v2554 = vsel %vm2471, %v2553, %v2552
        %v2555 = vsub.s32 4, %v2531
        %v2556 = vsel %vm2471, %v2555, %v2531
        %v2557 = vsel %vm2470, %v2256, %v2554
        %v2558 = vsel %vm2470, 0, %v2556
        %v2559 = vcosq.f32.pop %v2557
        %v2560 = vsinq.f32.pop %v2557
        %vm2561 = vweird.f32 %v2256
        %v2562 = vadd.s32 %v2558, 3
        %v2563 = vand.u32 %v2562, 3
        %vm2564 = vcmp.lt.s32.totalorder %v2563, 2
        %vm2565 = vcmp.eq.s32.totalorder %v2563, 0
        %v2566 = vxor.u32 %v2560, 2147483648
        %v2567 = vsel %vm2565, %v2559, %v2566
        %vm2568 = vcmp.eq.s32.totalorder %v2563, 2
        %v2569 = vxor.u32 %v2559, 2147483648
        %v2570 = vsel %vm2568, %v2569, %v2560
        %v2571 = vsel %vm2564, %v2567, %v2570
        %v2572 = vsel %vm2561, nan, %v2571
        %v2573 = vand.u32 2147483647, %v2343
        %vm2574 = vcmp.le.f32.partialorder %v2573, 0.7853982
        %vm2575 = vcmp.lt.s32.totalorder %v2343, 0
        %v2576 = vand.u32 %v2343, 2139095040
        %v2577 = vshrl.u32 %v2576, 23
        %v2578 = vsub.s32 %v2577, 127
        %v2579 = vand.u32 2147483647, %v2343
        %v2580 = vand.u32 %v2579, 8388607
        %v2581 = vor.u32 %v2580, 8388608
        %v2582 = vsub.s32 0, %v2581
        %v2583 = vadd.s32 %v2578, 1
        %vm2584 = vcmp.gt.s32.totalorder %v2583, 0
        %v2585 = vsel %vm2584, %v2583, 0
        %v2586 = vshrl.u32 %v2585, 5
        %v2587 = vand.u32 %v2585, 31
        %v2588 = vsub.s32 32, %v2587
        %v2589 = vshrl.u32 683565275, %v2588
        %v2590 = vshll.u32 683565275, %v2587
        %v2591 = vshrl.u32 2475754826, %v2588
        %v2592 = vor.u32 %v2590, %v2591
        %v2593 = vshll.u32 2475754826, %v2587
        %v2594 = vshrl.u32 2131351028, %v2588
        %v2595 = vor.u32 %v2593, %v2594
        %v2596 = vshll.u32 2131351028, %v2587
        %v2597 = vshrl.u32 2102212464, %v2588
        %v2598 = vor.u32 %v2596, %v2597
        %v2599 = vshll.u32 2102212464, %v2587
        %v2600 = vshrl.u32 920167782, %v2588
        %v2601 = vor.u32 %v2599, %v2600
        %v2602 = vshll.u32 920167782, %v2587
        %v2603 = vshrl.u32 1326507024, %v2588
        %v2604 = vor.u32 %v2602, %v2603
        %vm2605 = vcmp.lt.s32.totalorder %v2586, 1
        %vm2606 = vcmp.lt.s32.totalorder %v2586, 2
        %vm2607 = vcmp.lt.s32.totalorder %v2586, 3
        %vm2608 = vcmp.lt.s32.totalorder %v2586, 4
        %v2609 = vsel %vm2605, %v2589, %v2592
        %v2610 = vsel %vm2608, %v2598, 2102212464
        %v2611 = vsel %vm2607, %v2595, %v2610
        %v2612 = vsel %vm2606, %v2609, %v2611
        %v2613 = vsel %vm2605, %v2592, %v2595
        %v2614 = vsel %vm2608, %v2601, 920167782
        %v2615 = vsel %vm2607, %v2598, %v2614
        %v2616 = vsel %vm2606, %v2613, %v2615
        %v2617 = vsel %vm2605, %v2595, %v2598
        %v2618 = vsel %vm2608, %v2604, 1326507024
        %v2619 = vsel %vm2607, %v2601, %v2618
        %v2620 = vsel %vm2606, %v2617, %v2619
        %v2621 = vshll.u32 %v2581, 8
        %v2622 = vmul.u32.u64.compose %v2621, %v2620
        %v2623 = vextract.low.u32 %v2622
        %v2624 = vextract.high.u32 %v2622
        %v2625 = vmul.u32.u64.compose %v2621, %v2616
        %v2626 = vextract.low.u32 %v2625
        %v2627 = vextract.high.u32 %v2625
        %v2628 = vmul.u32 %v2621, %v2612
        %v2629 = vadd.s32 %v2624, %v2626
        %vm2630 = vc.u32 %v2624, %v2626
        %v2631 = vadd.s32 %v2627, 1
        %v2632 = vsel %vm2630, %v2631, %v2627
        %v2633 = vadd.s32 %v2628, %v2632
        %v2634 = vadd.s32 %v2633, 536870912
        %v2635 = vshrl.u32 %v2634, 30
        %v2636 = vshll.u32 %v2635, 30
        %v2637 = vsub.s32 %v2633, %v2636
        %vm2638 = vcmp.lt.s32.totalorder %v2637, 0
        %v2639 = vsub.s32 0, %v2637
        %v2640 = vsel %vm2638, %v2639, %v2637
        %v2641 = vclz %v2640
        %v2642 = vsub.s32 %v2641, 2
        %vm2643 = vcmp.gt.s32.totalorder 0, %v2642
        %v2644 = vsel %vm2643, 0, %v2642
        %v2645 = vsub.s32 32, %v2644
        %v2646 = vshll.u32 %v2637, %v2644
        %v2647 = vshrl.u32 %v2629, %v2645
        %v2648 = vor.u32 %v2646, %v2647
        %v2649 = vsub.s32 4294967266, %v2644
        %v2650 = vadd.s32 %v2649, 127
        %v2651 = vshll.u32 %v2650, 23
        %v2652 = vor.u32 4788187, %v2651
        %v2653 = vand.u32 2147483647, %v2652
        %v2655 = vcvt.s32.f32 %v2648
        %v2656 = vmul.f32 %v2655, %v2653
        %v2657 = vxor.u32 %v2656, 2147483648
        %v2658 = vsel %vm2575, %v2657, %v2656
        %v2659 = vsub.s32 4, %v2635
        %v2660 = vsel %vm2575, %v2659, %v2635
        %v2661 = vsel %vm2574, %v2343, %v2658
        %v2662 = vsel %vm2574, 0, %v2660
        %v2663 = vcosq.f32.pop %v2661
        %v2664 = vsinq.f32.pop %v2661
        %vm2665 = vweird.f32 %v2343
        %v2666 = vadd.s32 %v2662, 3
        %v2667 = vand.u32 %v2666, 3
        %vm2668 = vcmp.lt.s32.totalorder %v2667, 2
        %vm2669 = vcmp.eq.s32.totalorder %v2667, 0
        %v2670 = vxor.u32 %v2664, 2147483648
        %v2671 = vsel %vm2669, %v2663, %v2670
        %vm2672 = vcmp.eq.s32.totalorder %v2667, 2
        %v2673 = vxor.u32 %v2663, 2147483648
        %v2674 = vsel %vm2672, %v2673, %v2664
        %v2675 = vsel %vm2668, %v2671, %v2674
        %v2676 = vsel %vm2665, nan, %v2675
        %v2677 = vand.u32 2147483647, %v2345
        %vm2678 = vcmp.le.f32.partialorder %v2677, 0.7853982
        %vm2679 = vcmp.lt.s32.totalorder %v2345, 0
        %v2680 = vand.u32 %v2345, 2139095040
        %v2681 = vshrl.u32 %v2680, 23
        %v2682 = vsub.s32 %v2681, 127
        %v2683 = vand.u32 2147483647, %v2345
        %v2684 = vand.u32 %v2683, 8388607
        %v2685 = vor.u32 %v2684, 8388608
        %v2686 = vsub.s32 0, %v2685
        %v2687 = vadd.s32 %v2682, 1
        %vm2688 = vcmp.gt.s32.totalorder %v2687, 0
        %v2689 = vsel %vm2688, %v2687, 0
        %v2690 = vshrl.u32 %v2689, 5
        %v2691 = vand.u32 %v2689, 31
        %v2692 = vsub.s32 32, %v2691
        %v2693 = vshrl.u32 683565275, %v2692
        %v2694 = vshll.u32 683565275, %v2691
        %v2695 = vshrl.u32 2475754826, %v2692
        %v2696 = vor.u32 %v2694, %v2695
        %v2697 = vshll.u32 2475754826, %v2691
        %v2698 = vshrl.u32 2131351028, %v2692
        %v2699 = vor.u32 %v2697, %v2698
        %v2700 = vshll.u32 2131351028, %v2691
        %v2701 = vshrl.u32 2102212464, %v2692
        %v2702 = vor.u32 %v2700, %v2701
        %v2703 = vshll.u32 2102212464, %v2691
        %v2704 = vshrl.u32 920167782, %v2692
        %v2705 = vor.u32 %v2703, %v2704
        %v2706 = vshll.u32 920167782, %v2691
        %v2707 = vshrl.u32 1326507024, %v2692
        %v2708 = vor.u32 %v2706, %v2707
        %vm2709 = vcmp.lt.s32.totalorder %v2690, 1
        %vm2710 = vcmp.lt.s32.totalorder %v2690, 2
        %vm2711 = vcmp.lt.s32.totalorder %v2690, 3
        %vm2712 = vcmp.lt.s32.totalorder %v2690, 4
        %v2713 = vsel %vm2709, %v2693, %v2696
        %v2714 = vsel %vm2712, %v2702, 2102212464
        %v2715 = vsel %vm2711, %v2699, %v2714
        %v2716 = vsel %vm2710, %v2713, %v2715
        %v2717 = vsel %vm2709, %v2696, %v2699
        %v2718 = vsel %vm2712, %v2705, 920167782
        %v2719 = vsel %vm2711, %v2702, %v2718
        %v2720 = vsel %vm2710, %v2717, %v2719
        %v2721 = vsel %vm2709, %v2699, %v2702
        %v2722 = vsel %vm2712, %v2708, 1326507024
        %v2723 = vsel %vm2711, %v2705, %v2722
        %v2724 = vsel %vm2710, %v2721, %v2723
        %v2725 = vshll.u32 %v2685, 8
        %v2726 = vmul.u32.u64.compose %v2725, %v2724
        %v2727 = vextract.low.u32 %v2726
        %v2728 = vextract.high.u32 %v2726
        %v2729 = vmul.u32.u64.compose %v2725, %v2720
        %v2730 = vextract.low.u32 %v2729
        %v2731 = vextract.high.u32 %v2729
        %v2732 = vmul.u32 %v2725, %v2716
        %v2733 = vadd.s32 %v2728, %v2730
        %vm2734 = vc.u32 %v2728, %v2730
        %v2735 = vadd.s32 %v2731, 1
        %v2736 = vsel %vm2734, %v2735, %v2731
        %v2737 = vadd.s32 %v2732, %v2736
        %v2738 = vadd.s32 %v2737, 536870912
        %v2739 = vshrl.u32 %v2738, 30
        %v2740 = vshll.u32 %v2739, 30
        %v2741 = vsub.s32 %v2737, %v2740
        %vm2742 = vcmp.lt.s32.totalorder %v2741, 0
        %v2743 = vsub.s32 0, %v2741
        %v2744 = vsel %vm2742, %v2743, %v2741
        %v2745 = vclz %v2744
        %v2746 = vsub.s32 %v2745, 2
        %vm2747 = vcmp.gt.s32.totalorder 0, %v2746
        %v2748 = vsel %vm2747, 0, %v2746
        %v2749 = vsub.s32 32, %v2748
        %v2750 = vshll.u32 %v2741, %v2748
        %v2751 = vshrl.u32 %v2733, %v2749
        %v2752 = vor.u32 %v2750, %v2751
        %v2753 = vsub.s32 4294967266, %v2748
        %v2754 = vadd.s32 %v2753, 127
        %v2755 = vshll.u32 %v2754, 23
        %v2756 = vor.u32 4788187, %v2755
        %v2757 = vand.u32 2147483647, %v2756
        %v2759 = vcvt.s32.f32 %v2752
        %v2760 = vmul.f32 %v2759, %v2757
        %v2761 = vxor.u32 %v2760, 2147483648
        %v2762 = vsel %vm2679, %v2761, %v2760
        %v2763 = vsub.s32 4, %v2739
        %v2764 = vsel %vm2679, %v2763, %v2739
        %v2765 = vsel %vm2678, %v2345, %v2762
        %v2766 = vsel %vm2678, 0, %v2764
        %v2767 = vcosq.f32.pop %v2765
        %v2768 = vsinq.f32.pop %v2765
        %vm2769 = vweird.f32 %v2345
        %v2770 = vadd.s32 %v2766, 3
        %v2771 = vand.u32 %v2770, 3
        %vm2772 = vcmp.lt.s32.totalorder %v2771, 2
        %vm2773 = vcmp.eq.s32.totalorder %v2771, 0
        %v2774 = vxor.u32 %v2768, 2147483648
        %v2775 = vsel %vm2773, %v2767, %v2774
        %vm2776 = vcmp.eq.s32.totalorder %v2771, 2
        %v2777 = vxor.u32 %v2767, 2147483648
        %v2778 = vsel %vm2776, %v2777, %v2768
        %v2779 = vsel %vm2772, %v2775, %v2778
        %v2780 = vsel %vm2769, nan, %v2779
        %v2781 = vand.u32 2147483647, %v2260
        %vm2782 = vcmp.le.f32.partialorder %v2781, 0.7853982
        %vm2783 = vcmp.lt.s32.totalorder %v2260, 0
        %v2784 = vand.u32 %v2260, 2139095040
        %v2785 = vshrl.u32 %v2784, 23
        %v2786 = vsub.s32 %v2785, 127
        %v2787 = vand.u32 2147483647, %v2260
        %v2788 = vand.u32 %v2787, 8388607
        %v2789 = vor.u32 %v2788, 8388608
        %v2790 = vsub.s32 0, %v2789
        %v2791 = vadd.s32 %v2786, 1
        %vm2792 = vcmp.gt.s32.totalorder %v2791, 0
        %v2793 = vsel %vm2792, %v2791, 0
        %v2794 = vshrl.u32 %v2793, 5
        %v2795 = vand.u32 %v2793, 31
        %v2796 = vsub.s32 32, %v2795
        %v2797 = vshrl.u32 683565275, %v2796
        %v2798 = vshll.u32 683565275, %v2795
        %v2799 = vshrl.u32 2475754826, %v2796
        %v2800 = vor.u32 %v2798, %v2799
        %v2801 = vshll.u32 2475754826, %v2795
        %v2802 = vshrl.u32 2131351028, %v2796
        %v2803 = vor.u32 %v2801, %v2802
        %v2804 = vshll.u32 2131351028, %v2795
        %v2805 = vshrl.u32 2102212464, %v2796
        %v2806 = vor.u32 %v2804, %v2805
        %v2807 = vshll.u32 2102212464, %v2795
        %v2808 = vshrl.u32 920167782, %v2796
        %v2809 = vor.u32 %v2807, %v2808
        %v2810 = vshll.u32 920167782, %v2795
        %v2811 = vshrl.u32 1326507024, %v2796
        %v2812 = vor.u32 %v2810, %v2811
        %vm2813 = vcmp.lt.s32.totalorder %v2794, 1
        %vm2814 = vcmp.lt.s32.totalorder %v2794, 2
        %vm2815 = vcmp.lt.s32.totalorder %v2794, 3
        %vm2816 = vcmp.lt.s32.totalorder %v2794, 4
        %v2817 = vsel %vm2813, %v2797, %v2800
        %v2818 = vsel %vm2816, %v2806, 2102212464
        %v2819 = vsel %vm2815, %v2803, %v2818
        %v2820 = vsel %vm2814, %v2817, %v2819
        %v2821 = vsel %vm2813, %v2800, %v2803
        %v2822 = vsel %vm2816, %v2809, 920167782
        %v2823 = vsel %vm2815, %v2806, %v2822
        %v2824 = vsel %vm2814, %v2821, %v2823
        %v2825 = vsel %vm2813, %v2803, %v2806
        %v2826 = vsel %vm2816, %v2812, 1326507024
        %v2827 = vsel %vm2815, %v2809, %v2826
        %v2828 = vsel %vm2814, %v2825, %v2827
        %v2829 = vshll.u32 %v2789, 8
        %v2830 = vmul.u32.u64.compose %v2829, %v2828
        %v2831 = vextract.low.u32 %v2830
        %v2832 = vextract.high.u32 %v2830
        %v2833 = vmul.u32.u64.compose %v2829, %v2824
        %v2834 = vextract.low.u32 %v2833
        %v2835 = vextract.high.u32 %v2833
        %v2836 = vmul.u32 %v2829, %v2820
        %v2837 = vadd.s32 %v2832, %v2834
        %vm2838 = vc.u32 %v2832, %v2834
        %v2839 = vadd.s32 %v2835, 1
        %v2840 = vsel %vm2838, %v2839, %v2835
        %v2841 = vadd.s32 %v2836, %v2840
        %v2842 = vadd.s32 %v2841, 536870912
        %v2843 = vshrl.u32 %v2842, 30
        %v2844 = vshll.u32 %v2843, 30
        %v2845 = vsub.s32 %v2841, %v2844
        %vm2846 = vcmp.lt.s32.totalorder %v2845, 0
        %v2847 = vsub.s32 0, %v2845
        %v2848 = vsel %vm2846, %v2847, %v2845
        %v2849 = vclz %v2848
        %v2850 = vsub.s32 %v2849, 2
        %vm2851 = vcmp.gt.s32.totalorder 0, %v2850
        %v2852 = vsel %vm2851, 0, %v2850
        %v2853 = vsub.s32 32, %v2852
        %v2854 = vshll.u32 %v2845, %v2852
        %v2855 = vshrl.u32 %v2837, %v2853
        %v2856 = vor.u32 %v2854, %v2855
        %v2857 = vsub.s32 4294967266, %v2852
        %v2858 = vadd.s32 %v2857, 127
        %v2859 = vshll.u32 %v2858, 23
        %v2860 = vor.u32 4788187, %v2859
        %v2861 = vand.u32 2147483647, %v2860
        %v2863 = vcvt.s32.f32 %v2856
        %v2864 = vmul.f32 %v2863, %v2861
        %v2865 = vxor.u32 %v2864, 2147483648
        %v2866 = vsel %vm2783, %v2865, %v2864
        %v2867 = vsub.s32 4, %v2843
        %v2868 = vsel %vm2783, %v2867, %v2843
        %v2869 = vsel %vm2782, %v2260, %v2866
        %v2870 = vsel %vm2782, 0, %v2868
        %v2871 = vcosq.f32.pop %v2869
        %v2872 = vsinq.f32.pop %v2869
        %vm2873 = vweird.f32 %v2260
        %v2874 = vadd.s32 %v2870, 3
        %v2875 = vand.u32 %v2874, 3
        %vm2876 = vcmp.lt.s32.totalorder %v2875, 2
        %vm2877 = vcmp.eq.s32.totalorder %v2875, 0
        %v2878 = vxor.u32 %v2872, 2147483648
        %v2879 = vsel %vm2877, %v2871, %v2878
        %vm2880 = vcmp.eq.s32.totalorder %v2875, 2
        %v2881 = vxor.u32 %v2871, 2147483648
        %v2882 = vsel %vm2880, %v2881, %v2872
        %v2883 = vsel %vm2876, %v2879, %v2882
        %v2884 = vsel %vm2873, nan, %v2883
        %v2885 = vand.u32 2147483647, %v2262
        %vm2886 = vcmp.le.f32.partialorder %v2885, 0.7853982
        %vm2887 = vcmp.lt.s32.totalorder %v2262, 0
        %v2888 = vand.u32 %v2262, 2139095040
        %v2889 = vshrl.u32 %v2888, 23
        %v2890 = vsub.s32 %v2889, 127
        %v2891 = vand.u32 2147483647, %v2262
        %v2892 = vand.u32 %v2891, 8388607
        %v2893 = vor.u32 %v2892, 8388608
        %v2894 = vsub.s32 0, %v2893
        %v2895 = vadd.s32 %v2890, 1
        %vm2896 = vcmp.gt.s32.totalorder %v2895, 0
        %v2897 = vsel %vm2896, %v2895, 0
        %v2898 = vshrl.u32 %v2897, 5
        %v2899 = vand.u32 %v2897, 31
        %v2900 = vsub.s32 32, %v2899
        %v2901 = vshrl.u32 683565275, %v2900
        %v2902 = vshll.u32 683565275, %v2899
        %v2903 = vshrl.u32 2475754826, %v2900
        %v2904 = vor.u32 %v2902, %v2903
        %v2905 = vshll.u32 2475754826, %v2899
        %v2906 = vshrl.u32 2131351028, %v2900
        %v2907 = vor.u32 %v2905, %v2906
        %v2908 = vshll.u32 2131351028, %v2899
        %v2909 = vshrl.u32 2102212464, %v2900
        %v2910 = vor.u32 %v2908, %v2909
        %v2911 = vshll.u32 2102212464, %v2899
        %v2912 = vshrl.u32 920167782, %v2900
        %v2913 = vor.u32 %v2911, %v2912
        %v2914 = vshll.u32 920167782, %v2899
        %v2915 = vshrl.u32 1326507024, %v2900
        %v2916 = vor.u32 %v2914, %v2915
        %vm2917 = vcmp.lt.s32.totalorder %v2898, 1
        %vm2918 = vcmp.lt.s32.totalorder %v2898, 2
        %vm2919 = vcmp.lt.s32.totalorder %v2898, 3
        %vm2920 = vcmp.lt.s32.totalorder %v2898, 4
        %v2921 = vsel %vm2917, %v2901, %v2904
        %v2922 = vsel %vm2920, %v2910, 2102212464
        %v2923 = vsel %vm2919, %v2907, %v2922
        %v2924 = vsel %vm2918, %v2921, %v2923
        %v2925 = vsel %vm2917, %v2904, %v2907
        %v2926 = vsel %vm2920, %v2913, 920167782
        %v2927 = vsel %vm2919, %v2910, %v2926
        %v2928 = vsel %vm2918, %v2925, %v2927
        %v2929 = vsel %vm2917, %v2907, %v2910
        %v2930 = vsel %vm2920, %v2916, 1326507024
        %v2931 = vsel %vm2919, %v2913, %v2930
        %v2932 = vsel %vm2918, %v2929, %v2931
        %v2933 = vshll.u32 %v2893, 8
        %v2934 = vmul.u32.u64.compose %v2933, %v2932
        %v2935 = vextract.low.u32 %v2934
        %v2936 = vextract.high.u32 %v2934
        %v2937 = vmul.u32.u64.compose %v2933, %v2928
        %v2938 = vextract.low.u32 %v2937
        %v2939 = vextract.high.u32 %v2937
        %v2940 = vmul.u32 %v2933, %v2924
        %v2941 = vadd.s32 %v2936, %v2938
        %vm2942 = vc.u32 %v2936, %v2938
        %v2943 = vadd.s32 %v2939, 1
        %v2944 = vsel %vm2942, %v2943, %v2939
        %v2945 = vadd.s32 %v2940, %v2944
        %v2946 = vadd.s32 %v2945, 536870912
        %v2947 = vshrl.u32 %v2946, 30
        %v2948 = vshll.u32 %v2947, 30
        %v2949 = vsub.s32 %v2945, %v2948
        %vm2950 = vcmp.lt.s32.totalorder %v2949, 0
        %v2951 = vsub.s32 0, %v2949
        %v2952 = vsel %vm2950, %v2951, %v2949
        %v2953 = vclz %v2952
        %v2954 = vsub.s32 %v2953, 2
        %vm2955 = vcmp.gt.s32.totalorder 0, %v2954
        %v2956 = vsel %vm2955, 0, %v2954
        %v2957 = vsub.s32 32, %v2956
        %v2958 = vshll.u32 %v2949, %v2956
        %v2959 = vshrl.u32 %v2941, %v2957
        %v2960 = vor.u32 %v2958, %v2959
        %v2961 = vsub.s32 4294967266, %v2956
        %v2962 = vadd.s32 %v2961, 127
        %v2963 = vshll.u32 %v2962, 23
        %v2964 = vor.u32 4788187, %v2963
        %v2965 = vand.u32 2147483647, %v2964
        %v2967 = vcvt.s32.f32 %v2960
        %v2968 = vmul.f32 %v2967, %v2965
        %v2969 = vxor.u32 %v2968, 2147483648
        %v2970 = vsel %vm2887, %v2969, %v2968
        %v2971 = vsub.s32 4, %v2947
        %v2972 = vsel %vm2887, %v2971, %v2947
        %v2973 = vsel %vm2886, %v2262, %v2970
        %v2974 = vsel %vm2886, 0, %v2972
        %v2975 = vcosq.f32.pop %v2973
        %v2976 = vsinq.f32.pop %v2973
        %vm2977 = vweird.f32 %v2262
        %v2978 = vadd.s32 %v2974, 3
        %v2979 = vand.u32 %v2978, 3
        %vm2980 = vcmp.lt.s32.totalorder %v2979, 2
        %vm2981 = vcmp.eq.s32.totalorder %v2979, 0
        %v2982 = vxor.u32 %v2976, 2147483648
        %v2983 = vsel %vm2981, %v2975, %v2982
        %vm2984 = vcmp.eq.s32.totalorder %v2979, 2
        %v2985 = vxor.u32 %v2975, 2147483648
        %v2986 = vsel %vm2984, %v2985, %v2976
        %v2987 = vsel %vm2980, %v2983, %v2986
        %v2988 = vsel %vm2977, nan, %v2987
        %v2989 = vand.u32 2147483647, %v2349
        %vm2990 = vcmp.le.f32.partialorder %v2989, 0.7853982
        %vm2991 = vcmp.lt.s32.totalorder %v2349, 0
        %v2992 = vand.u32 %v2349, 2139095040
        %v2993 = vshrl.u32 %v2992, 23
        %v2994 = vsub.s32 %v2993, 127
        %v2995 = vand.u32 2147483647, %v2349
        %v2996 = vand.u32 %v2995, 8388607
        %v2997 = vor.u32 %v2996, 8388608
        %v2998 = vsub.s32 0, %v2997
        %v2999 = vadd.s32 %v2994, 1
        %vm3000 = vcmp.gt.s32.totalorder %v2999, 0
        %v3001 = vsel %vm3000, %v2999, 0
        %v3002 = vshrl.u32 %v3001, 5
        %v3003 = vand.u32 %v3001, 31
        %v3004 = vsub.s32 32, %v3003
        %v3005 = vshrl.u32 683565275, %v3004
        %v3006 = vshll.u32 683565275, %v3003
        %v3007 = vshrl.u32 2475754826, %v3004
        %v3008 = vor.u32 %v3006, %v3007
        %v3009 = vshll.u32 2475754826, %v3003
        %v3010 = vshrl.u32 2131351028, %v3004
        %v3011 = vor.u32 %v3009, %v3010
        %v3012 = vshll.u32 2131351028, %v3003
        %v3013 = vshrl.u32 2102212464, %v3004
        %v3014 = vor.u32 %v3012, %v3013
        %v3015 = vshll.u32 2102212464, %v3003
        %v3016 = vshrl.u32 920167782, %v3004
        %v3017 = vor.u32 %v3015, %v3016
        %v3018 = vshll.u32 920167782, %v3003
        %v3019 = vshrl.u32 1326507024, %v3004
        %v3020 = vor.u32 %v3018, %v3019
        %vm3021 = vcmp.lt.s32.totalorder %v3002, 1
        %vm3022 = vcmp.lt.s32.totalorder %v3002, 2
        %vm3023 = vcmp.lt.s32.totalorder %v3002, 3
        %vm3024 = vcmp.lt.s32.totalorder %v3002, 4
        %v3025 = vsel %vm3021, %v3005, %v3008
        %v3026 = vsel %vm3024, %v3014, 2102212464
        %v3027 = vsel %vm3023, %v3011, %v3026
        %v3028 = vsel %vm3022, %v3025, %v3027
        %v3029 = vsel %vm3021, %v3008, %v3011
        %v3030 = vsel %vm3024, %v3017, 920167782
        %v3031 = vsel %vm3023, %v3014, %v3030
        %v3032 = vsel %vm3022, %v3029, %v3031
        %v3033 = vsel %vm3021, %v3011, %v3014
        %v3034 = vsel %vm3024, %v3020, 1326507024
        %v3035 = vsel %vm3023, %v3017, %v3034
        %v3036 = vsel %vm3022, %v3033, %v3035
        %v3037 = vshll.u32 %v2997, 8
        %v3038 = vmul.u32.u64.compose %v3037, %v3036
        %v3039 = vextract.low.u32 %v3038
        %v3040 = vextract.high.u32 %v3038
        %v3041 = vmul.u32.u64.compose %v3037, %v3032
        %v3042 = vextract.low.u32 %v3041
        %v3043 = vextract.high.u32 %v3041
        %v3044 = vmul.u32 %v3037, %v3028
        %v3045 = vadd.s32 %v3040, %v3042
        %vm3046 = vc.u32 %v3040, %v3042
        %v3047 = vadd.s32 %v3043, 1
        %v3048 = vsel %vm3046, %v3047, %v3043
        %v3049 = vadd.s32 %v3044, %v3048
        %v3050 = vadd.s32 %v3049, 536870912
        %v3051 = vshrl.u32 %v3050, 30
        %v3052 = vshll.u32 %v3051, 30
        %v3053 = vsub.s32 %v3049, %v3052
        %vm3054 = vcmp.lt.s32.totalorder %v3053, 0
        %v3055 = vsub.s32 0, %v3053
        %v3056 = vsel %vm3054, %v3055, %v3053
        %v3057 = vclz %v3056
        %v3058 = vsub.s32 %v3057, 2
        %vm3059 = vcmp.gt.s32.totalorder 0, %v3058
        %v3060 = vsel %vm3059, 0, %v3058
        %v3061 = vsub.s32 32, %v3060
        %v3062 = vshll.u32 %v3053, %v3060
        %v3063 = vshrl.u32 %v3045, %v3061
        %v3064 = vor.u32 %v3062, %v3063
        %v3065 = vsub.s32 4294967266, %v3060
        %v3066 = vadd.s32 %v3065, 127
        %v3067 = vshll.u32 %v3066, 23
        %v3068 = vor.u32 4788187, %v3067
        %v3069 = vand.u32 2147483647, %v3068
        %v3071 = vcvt.s32.f32 %v3064
        %v3072 = vmul.f32 %v3071, %v3069
        %v3073 = vxor.u32 %v3072, 2147483648
        %v3074 = vsel %vm2991, %v3073, %v3072
        %v3075 = vsub.s32 4, %v3051
        %v3076 = vsel %vm2991, %v3075, %v3051
        %v3077 = vsel %vm2990, %v2349, %v3074
        %v3078 = vsel %vm2990, 0, %v3076
        %v3079 = vcosq.f32.pop %v3077
        %v3080 = vsinq.f32.pop %v3077
        %vm3081 = vweird.f32 %v2349
        %v3082 = vadd.s32 %v3078, 3
        %v3083 = vand.u32 %v3082, 3
        %vm3084 = vcmp.lt.s32.totalorder %v3083, 2
        %vm3085 = vcmp.eq.s32.totalorder %v3083, 0
        %v3086 = vxor.u32 %v3080, 2147483648
        %v3087 = vsel %vm3085, %v3079, %v3086
        %vm3088 = vcmp.eq.s32.totalorder %v3083, 2
        %v3089 = vxor.u32 %v3079, 2147483648
        %v3090 = vsel %vm3088, %v3089, %v3080
        %v3091 = vsel %vm3084, %v3087, %v3090
        %v3092 = vsel %vm3081, nan, %v3091
        %v3093 = vand.u32 2147483647, %v2351
        %vm3094 = vcmp.le.f32.partialorder %v3093, 0.7853982
        %vm3095 = vcmp.lt.s32.totalorder %v2351, 0
        %v3096 = vand.u32 %v2351, 2139095040
        %v3097 = vshrl.u32 %v3096, 23
        %v3098 = vsub.s32 %v3097, 127
        %v3099 = vand.u32 2147483647, %v2351
        %v3100 = vand.u32 %v3099, 8388607
        %v3101 = vor.u32 %v3100, 8388608
        %v3102 = vsub.s32 0, %v3101
        %v3103 = vadd.s32 %v3098, 1
        %vm3104 = vcmp.gt.s32.totalorder %v3103, 0
        %v3105 = vsel %vm3104, %v3103, 0
        %v3106 = vshrl.u32 %v3105, 5
        %v3107 = vand.u32 %v3105, 31
        %v3108 = vsub.s32 32, %v3107
        %v3109 = vshrl.u32 683565275, %v3108
        %v3110 = vshll.u32 683565275, %v3107
        %v3111 = vshrl.u32 2475754826, %v3108
        %v3112 = vor.u32 %v3110, %v3111
        %v3113 = vshll.u32 2475754826, %v3107
        %v3114 = vshrl.u32 2131351028, %v3108
        %v3115 = vor.u32 %v3113, %v3114
        %v3116 = vshll.u32 2131351028, %v3107
        %v3117 = vshrl.u32 2102212464, %v3108
        %v3118 = vor.u32 %v3116, %v3117
        %v3119 = vshll.u32 2102212464, %v3107
        %v3120 = vshrl.u32 920167782, %v3108
        %v3121 = vor.u32 %v3119, %v3120
        %v3122 = vshll.u32 920167782, %v3107
        %v3123 = vshrl.u32 1326507024, %v3108
        %v3124 = vor.u32 %v3122, %v3123
        %vm3125 = vcmp.lt.s32.totalorder %v3106, 1
        %vm3126 = vcmp.lt.s32.totalorder %v3106, 2
        %vm3127 = vcmp.lt.s32.totalorder %v3106, 3
        %vm3128 = vcmp.lt.s32.totalorder %v3106, 4
        %v3129 = vsel %vm3125, %v3109, %v3112
        %v3130 = vsel %vm3128, %v3118, 2102212464
        %v3131 = vsel %vm3127, %v3115, %v3130
        %v3132 = vsel %vm3126, %v3129, %v3131
        %v3133 = vsel %vm3125, %v3112, %v3115
        %v3134 = vsel %vm3128, %v3121, 920167782
        %v3135 = vsel %vm3127, %v3118, %v3134
        %v3136 = vsel %vm3126, %v3133, %v3135
        %v3137 = vsel %vm3125, %v3115, %v3118
        %v3138 = vsel %vm3128, %v3124, 1326507024
        %v3139 = vsel %vm3127, %v3121, %v3138
        %v3140 = vsel %vm3126, %v3137, %v3139
        %v3141 = vshll.u32 %v3101, 8
        %v3142 = vmul.u32.u64.compose %v3141, %v3140
        %v3143 = vextract.low.u32 %v3142
        %v3144 = vextract.high.u32 %v3142
        %v3145 = vmul.u32.u64.compose %v3141, %v3136
        %v3146 = vextract.low.u32 %v3145
        %v3147 = vextract.high.u32 %v3145
        %v3148 = vmul.u32 %v3141, %v3132
        %v3149 = vadd.s32 %v3144, %v3146
        %vm3150 = vc.u32 %v3144, %v3146
        %v3151 = vadd.s32 %v3147, 1
        %v3152 = vsel %vm3150, %v3151, %v3147
        %v3153 = vadd.s32 %v3148, %v3152
        %v3154 = vadd.s32 %v3153, 536870912
        %v3155 = vshrl.u32 %v3154, 30
        %v3156 = vshll.u32 %v3155, 30
        %v3157 = vsub.s32 %v3153, %v3156
        %vm3158 = vcmp.lt.s32.totalorder %v3157, 0
        %v3159 = vsub.s32 0, %v3157
        %v3160 = vsel %vm3158, %v3159, %v3157
        %v3161 = vclz %v3160
        %v3162 = vsub.s32 %v3161, 2
        %vm3163 = vcmp.gt.s32.totalorder 0, %v3162
        %v3164 = vsel %vm3163, 0, %v3162
        %v3165 = vsub.s32 32, %v3164
        %v3166 = vshll.u32 %v3157, %v3164
        %v3167 = vshrl.u32 %v3149, %v3165
        %v3168 = vor.u32 %v3166, %v3167
        %v3169 = vsub.s32 4294967266, %v3164
        %v3170 = vadd.s32 %v3169, 127
        %v3171 = vshll.u32 %v3170, 23
        %v3172 = vor.u32 4788187, %v3171
        %v3173 = vand.u32 2147483647, %v3172
        %v3175 = vcvt.s32.f32 %v3168
        %v3176 = vmul.f32 %v3175, %v3173
        %v3177 = vxor.u32 %v3176, 2147483648
        %v3178 = vsel %vm3095, %v3177, %v3176
        %v3179 = vsub.s32 4, %v3155
        %v3180 = vsel %vm3095, %v3179, %v3155
        %v3181 = vsel %vm3094, %v2351, %v3178
        %v3182 = vsel %vm3094, 0, %v3180
        %v3183 = vcosq.f32.pop %v3181
        %v3184 = vsinq.f32.pop %v3181
        %vm3185 = vweird.f32 %v2351
        %v3186 = vadd.s32 %v3182, 3
        %v3187 = vand.u32 %v3186, 3
        %vm3188 = vcmp.lt.s32.totalorder %v3187, 2
        %vm3189 = vcmp.eq.s32.totalorder %v3187, 0
        %v3190 = vxor.u32 %v3184, 2147483648
        %v3191 = vsel %vm3189, %v3183, %v3190
        %vm3192 = vcmp.eq.s32.totalorder %v3187, 2
        %v3193 = vxor.u32 %v3183, 2147483648
        %v3194 = vsel %vm3192, %v3193, %v3184
        %v3195 = vsel %vm3188, %v3191, %v3194
        %v3196 = vsel %vm3185, nan, %v3195
        %v3197 = vand.u32 2147483647, %v2266
        %vm3198 = vcmp.le.f32.partialorder %v3197, 0.7853982
        %vm3199 = vcmp.lt.s32.totalorder %v2266, 0
        %v3200 = vand.u32 %v2266, 2139095040
        %v3201 = vshrl.u32 %v3200, 23
        %v3202 = vsub.s32 %v3201, 127
        %v3203 = vand.u32 2147483647, %v2266
        %v3204 = vand.u32 %v3203, 8388607
        %v3205 = vor.u32 %v3204, 8388608
        %v3206 = vsub.s32 0, %v3205
        %v3207 = vadd.s32 %v3202, 1
        %vm3208 = vcmp.gt.s32.totalorder %v3207, 0
        %v3209 = vsel %vm3208, %v3207, 0
        %v3210 = vshrl.u32 %v3209, 5
        %v3211 = vand.u32 %v3209, 31
        %v3212 = vsub.s32 32, %v3211
        %v3213 = vshrl.u32 683565275, %v3212
        %v3214 = vshll.u32 683565275, %v3211
        %v3215 = vshrl.u32 2475754826, %v3212
        %v3216 = vor.u32 %v3214, %v3215
        %v3217 = vshll.u32 2475754826, %v3211
        %v3218 = vshrl.u32 2131351028, %v3212
        %v3219 = vor.u32 %v3217, %v3218
        %v3220 = vshll.u32 2131351028, %v3211
        %v3221 = vshrl.u32 2102212464, %v3212
        %v3222 = vor.u32 %v3220, %v3221
        %v3223 = vshll.u32 2102212464, %v3211
        %v3224 = vshrl.u32 920167782, %v3212
        %v3225 = vor.u32 %v3223, %v3224
        %v3226 = vshll.u32 920167782, %v3211
        %v3227 = vshrl.u32 1326507024, %v3212
        %v3228 = vor.u32 %v3226, %v3227
        %vm3229 = vcmp.lt.s32.totalorder %v3210, 1
        %vm3230 = vcmp.lt.s32.totalorder %v3210, 2
        %vm3231 = vcmp.lt.s32.totalorder %v3210, 3
        %vm3232 = vcmp.lt.s32.totalorder %v3210, 4
        %v3233 = vsel %vm3229, %v3213, %v3216
        %v3234 = vsel %vm3232, %v3222, 2102212464
        %v3235 = vsel %vm3231, %v3219, %v3234
        %v3236 = vsel %vm3230, %v3233, %v3235
        %v3237 = vsel %vm3229, %v3216, %v3219
        %v3238 = vsel %vm3232, %v3225, 920167782
        %v3239 = vsel %vm3231, %v3222, %v3238
        %v3240 = vsel %vm3230, %v3237, %v3239
        %v3241 = vsel %vm3229, %v3219, %v3222
        %v3242 = vsel %vm3232, %v3228, 1326507024
        %v3243 = vsel %vm3231, %v3225, %v3242
        %v3244 = vsel %vm3230, %v3241, %v3243
        %v3245 = vshll.u32 %v3205, 8
        %v3246 = vmul.u32.u64.compose %v3245, %v3244
        %v3247 = vextract.low.u32 %v3246
        %v3248 = vextract.high.u32 %v3246
        %v3249 = vmul.u32.u64.compose %v3245, %v3240
        %v3250 = vextract.low.u32 %v3249
        %v3251 = vextract.high.u32 %v3249
        %v3252 = vmul.u32 %v3245, %v3236
        %v3253 = vadd.s32 %v3248, %v3250
        %vm3254 = vc.u32 %v3248, %v3250
        %v3255 = vadd.s32 %v3251, 1
        %v3256 = vsel %vm3254, %v3255, %v3251
        %v3257 = vadd.s32 %v3252, %v3256
        %v3258 = vadd.s32 %v3257, 536870912
        %v3259 = vshrl.u32 %v3258, 30
        %v3260 = vshll.u32 %v3259, 30
        %v3261 = vsub.s32 %v3257, %v3260
        %vm3262 = vcmp.lt.s32.totalorder %v3261, 0
        %v3263 = vsub.s32 0, %v3261
        %v3264 = vsel %vm3262, %v3263, %v3261
        %v3265 = vclz %v3264
        %v3266 = vsub.s32 %v3265, 2
        %vm3267 = vcmp.gt.s32.totalorder 0, %v3266
        %v3268 = vsel %vm3267, 0, %v3266
        %v3269 = vsub.s32 32, %v3268
        %v3270 = vshll.u32 %v3261, %v3268
        %v3271 = vshrl.u32 %v3253, %v3269
        %v3272 = vor.u32 %v3270, %v3271
        %v3273 = vsub.s32 4294967266, %v3268
        %v3274 = vadd.s32 %v3273, 127
        %v3275 = vshll.u32 %v3274, 23
        %v3276 = vor.u32 4788187, %v3275
        %v3277 = vand.u32 2147483647, %v3276
        %v3279 = vcvt.s32.f32 %v3272
        %v3280 = vmul.f32 %v3279, %v3277
        %v3281 = vxor.u32 %v3280, 2147483648
        %v3282 = vsel %vm3199, %v3281, %v3280
        %v3283 = vsub.s32 4, %v3259
        %v3284 = vsel %vm3199, %v3283, %v3259
        %v3285 = vsel %vm3198, %v2266, %v3282
        %v3286 = vsel %vm3198, 0, %v3284
        %v3287 = vcosq.f32.pop %v3285
        %v3288 = vsinq.f32.pop %v3285
        %vm3289 = vweird.f32 %v2266
        %v3290 = vadd.s32 %v3286, 3
        %v3291 = vand.u32 %v3290, 3
        %vm3292 = vcmp.lt.s32.totalorder %v3291, 2
        %vm3293 = vcmp.eq.s32.totalorder %v3291, 0
        %v3294 = vxor.u32 %v3288, 2147483648
        %v3295 = vsel %vm3293, %v3287, %v3294
        %vm3296 = vcmp.eq.s32.totalorder %v3291, 2
        %v3297 = vxor.u32 %v3287, 2147483648
        %v3298 = vsel %vm3296, %v3297, %v3288
        %v3299 = vsel %vm3292, %v3295, %v3298
        %v3300 = vsel %vm3289, nan, %v3299
        %v3301 = vand.u32 2147483647, %v2268
        %vm3302 = vcmp.le.f32.partialorder %v3301, 0.7853982
        %vm3303 = vcmp.lt.s32.totalorder %v2268, 0
        %v3304 = vand.u32 %v2268, 2139095040
        %v3305 = vshrl.u32 %v3304, 23
        %v3306 = vsub.s32 %v3305, 127
        %v3307 = vand.u32 2147483647, %v2268
        %v3308 = vand.u32 %v3307, 8388607
        %v3309 = vor.u32 %v3308, 8388608
        %v3310 = vsub.s32 0, %v3309
        %v3311 = vadd.s32 %v3306, 1
        %vm3312 = vcmp.gt.s32.totalorder %v3311, 0
        %v3313 = vsel %vm3312, %v3311, 0
        %v3314 = vshrl.u32 %v3313, 5
        %v3315 = vand.u32 %v3313, 31
        %v3316 = vsub.s32 32, %v3315
        %v3317 = vshrl.u32 683565275, %v3316
        %v3318 = vshll.u32 683565275, %v3315
        %v3319 = vshrl.u32 2475754826, %v3316
        %v3320 = vor.u32 %v3318, %v3319
        %v3321 = vshll.u32 2475754826, %v3315
        %v3322 = vshrl.u32 2131351028, %v3316
        %v3323 = vor.u32 %v3321, %v3322
        %v3324 = vshll.u32 2131351028, %v3315
        %v3325 = vshrl.u32 2102212464, %v3316
        %v3326 = vor.u32 %v3324, %v3325
        %v3327 = vshll.u32 2102212464, %v3315
        %v3328 = vshrl.u32 920167782, %v3316
        %v3329 = vor.u32 %v3327, %v3328
        %v3330 = vshll.u32 920167782, %v3315
        %v3331 = vshrl.u32 1326507024, %v3316
        %v3332 = vor.u32 %v3330, %v3331
        %vm3333 = vcmp.lt.s32.totalorder %v3314, 1
        %vm3334 = vcmp.lt.s32.totalorder %v3314, 2
        %vm3335 = vcmp.lt.s32.totalorder %v3314, 3
        %vm3336 = vcmp.lt.s32.totalorder %v3314, 4
        %v3337 = vsel %vm3333, %v3317, %v3320
        %v3338 = vsel %vm3336, %v3326, 2102212464
        %v3339 = vsel %vm3335, %v3323, %v3338
        %v3340 = vsel %vm3334, %v3337, %v3339
        %v3341 = vsel %vm3333, %v3320, %v3323
        %v3342 = vsel %vm3336, %v3329, 920167782
        %v3343 = vsel %vm3335, %v3326, %v3342
        %v3344 = vsel %vm3334, %v3341, %v3343
        %v3345 = vsel %vm3333, %v3323, %v3326
        %v3346 = vsel %vm3336, %v3332, 1326507024
        %v3347 = vsel %vm3335, %v3329, %v3346
        %v3348 = vsel %vm3334, %v3345, %v3347
        %v3349 = vshll.u32 %v3309, 8
        %v3350 = vmul.u32.u64.compose %v3349, %v3348
        %v3351 = vextract.low.u32 %v3350
        %v3352 = vextract.high.u32 %v3350
        %v3353 = vmul.u32.u64.compose %v3349, %v3344
        %v3354 = vextract.low.u32 %v3353
        %v3355 = vextract.high.u32 %v3353
        %v3356 = vmul.u32 %v3349, %v3340
        %v3357 = vadd.s32 %v3352, %v3354
        %vm3358 = vc.u32 %v3352, %v3354
        %v3359 = vadd.s32 %v3355, 1
        %v3360 = vsel %vm3358, %v3359, %v3355
        %v3361 = vadd.s32 %v3356, %v3360
        %v3362 = vadd.s32 %v3361, 536870912
        %v3363 = vshrl.u32 %v3362, 30
        %v3364 = vshll.u32 %v3363, 30
        %v3365 = vsub.s32 %v3361, %v3364
        %vm3366 = vcmp.lt.s32.totalorder %v3365, 0
        %v3367 = vsub.s32 0, %v3365
        %v3368 = vsel %vm3366, %v3367, %v3365
        %v3369 = vclz %v3368
        %v3370 = vsub.s32 %v3369, 2
        %vm3371 = vcmp.gt.s32.totalorder 0, %v3370
        %v3372 = vsel %vm3371, 0, %v3370
        %v3373 = vsub.s32 32, %v3372
        %v3374 = vshll.u32 %v3365, %v3372
        %v3375 = vshrl.u32 %v3357, %v3373
        %v3376 = vor.u32 %v3374, %v3375
        %v3377 = vsub.s32 4294967266, %v3372
        %v3378 = vadd.s32 %v3377, 127
        %v3379 = vshll.u32 %v3378, 23
        %v3380 = vor.u32 4788187, %v3379
        %v3381 = vand.u32 2147483647, %v3380
        %v3383 = vcvt.s32.f32 %v3376
        %v3384 = vmul.f32 %v3383, %v3381
        %v3385 = vxor.u32 %v3384, 2147483648
        %v3386 = vsel %vm3303, %v3385, %v3384
        %v3387 = vsub.s32 4, %v3363
        %v3388 = vsel %vm3303, %v3387, %v3363
        %v3389 = vsel %vm3302, %v2268, %v3386
        %v3390 = vsel %vm3302, 0, %v3388
        %v3391 = vcosq.f32.pop %v3389
        %v3392 = vsinq.f32.pop %v3389
        %vm3393 = vweird.f32 %v2268
        %v3394 = vadd.s32 %v3390, 3
        %v3395 = vand.u32 %v3394, 3
        %vm3396 = vcmp.lt.s32.totalorder %v3395, 2
        %vm3397 = vcmp.eq.s32.totalorder %v3395, 0
        %v3398 = vxor.u32 %v3392, 2147483648
        %v3399 = vsel %vm3397, %v3391, %v3398
        %vm3400 = vcmp.eq.s32.totalorder %v3395, 2
        %v3401 = vxor.u32 %v3391, 2147483648
        %v3402 = vsel %vm3400, %v3401, %v3392
        %v3403 = vsel %vm3396, %v3399, %v3402
        %v3404 = vsel %vm3393, nan, %v3403
        %v3405 = vand.u32 2147483647, %v2355
        %vm3406 = vcmp.le.f32.partialorder %v3405, 0.7853982
        %vm3407 = vcmp.lt.s32.totalorder %v2355, 0
        %v3408 = vand.u32 %v2355, 2139095040
        %v3409 = vshrl.u32 %v3408, 23
        %v3410 = vsub.s32 %v3409, 127
        %v3411 = vand.u32 2147483647, %v2355
        %v3412 = vand.u32 %v3411, 8388607
        %v3413 = vor.u32 %v3412, 8388608
        %v3414 = vsub.s32 0, %v3413
        %v3415 = vadd.s32 %v3410, 1
        %vm3416 = vcmp.gt.s32.totalorder %v3415, 0
        %v3417 = vsel %vm3416, %v3415, 0
        %v3418 = vshrl.u32 %v3417, 5
        %v3419 = vand.u32 %v3417, 31
        %v3420 = vsub.s32 32, %v3419
        %v3421 = vshrl.u32 683565275, %v3420
        %v3422 = vshll.u32 683565275, %v3419
        %v3423 = vshrl.u32 2475754826, %v3420
        %v3424 = vor.u32 %v3422, %v3423
        %v3425 = vshll.u32 2475754826, %v3419
        %v3426 = vshrl.u32 2131351028, %v3420
        %v3427 = vor.u32 %v3425, %v3426
        %v3428 = vshll.u32 2131351028, %v3419
        %v3429 = vshrl.u32 2102212464, %v3420
        %v3430 = vor.u32 %v3428, %v3429
        %v3431 = vshll.u32 2102212464, %v3419
        %v3432 = vshrl.u32 920167782, %v3420
        %v3433 = vor.u32 %v3431, %v3432
        %v3434 = vshll.u32 920167782, %v3419
        %v3435 = vshrl.u32 1326507024, %v3420
        %v3436 = vor.u32 %v3434, %v3435
        %vm3437 = vcmp.lt.s32.totalorder %v3418, 1
        %vm3438 = vcmp.lt.s32.totalorder %v3418, 2
        %vm3439 = vcmp.lt.s32.totalorder %v3418, 3
        %vm3440 = vcmp.lt.s32.totalorder %v3418, 4
        %v3441 = vsel %vm3437, %v3421, %v3424
        %v3442 = vsel %vm3440, %v3430, 2102212464
        %v3443 = vsel %vm3439, %v3427, %v3442
        %v3444 = vsel %vm3438, %v3441, %v3443
        %v3445 = vsel %vm3437, %v3424, %v3427
        %v3446 = vsel %vm3440, %v3433, 920167782
        %v3447 = vsel %vm3439, %v3430, %v3446
        %v3448 = vsel %vm3438, %v3445, %v3447
        %v3449 = vsel %vm3437, %v3427, %v3430
        %v3450 = vsel %vm3440, %v3436, 1326507024
        %v3451 = vsel %vm3439, %v3433, %v3450
        %v3452 = vsel %vm3438, %v3449, %v3451
        %v3453 = vshll.u32 %v3413, 8
        %v3454 = vmul.u32.u64.compose %v3453, %v3452
        %v3455 = vextract.low.u32 %v3454
        %v3456 = vextract.high.u32 %v3454
        %v3457 = vmul.u32.u64.compose %v3453, %v3448
        %v3458 = vextract.low.u32 %v3457
        %v3459 = vextract.high.u32 %v3457
        %v3460 = vmul.u32 %v3453, %v3444
        %v3461 = vadd.s32 %v3456, %v3458
        %vm3462 = vc.u32 %v3456, %v3458
        %v3463 = vadd.s32 %v3459, 1
        %v3464 = vsel %vm3462, %v3463, %v3459
        %v3465 = vadd.s32 %v3460, %v3464
        %v3466 = vadd.s32 %v3465, 536870912
        %v3467 = vshrl.u32 %v3466, 30
        %v3468 = vshll.u32 %v3467, 30
        %v3469 = vsub.s32 %v3465, %v3468
        %vm3470 = vcmp.lt.s32.totalorder %v3469, 0
        %v3471 = vsub.s32 0, %v3469
        %v3472 = vsel %vm3470, %v3471, %v3469
        %v3473 = vclz %v3472
        %v3474 = vsub.s32 %v3473, 2
        %vm3475 = vcmp.gt.s32.totalorder 0, %v3474
        %v3476 = vsel %vm3475, 0, %v3474
        %v3477 = vsub.s32 32, %v3476
        %v3478 = vshll.u32 %v3469, %v3476
        %v3479 = vshrl.u32 %v3461, %v3477
        %v3480 = vor.u32 %v3478, %v3479
        %v3481 = vsub.s32 4294967266, %v3476
        %v3482 = vadd.s32 %v3481, 127
        %v3483 = vshll.u32 %v3482, 23
        %v3484 = vor.u32 4788187, %v3483
        %v3485 = vand.u32 2147483647, %v3484
        %v3487 = vcvt.s32.f32 %v3480
        %v3488 = vmul.f32 %v3487, %v3485
        %v3489 = vxor.u32 %v3488, 2147483648
        %v3490 = vsel %vm3407, %v3489, %v3488
        %v3491 = vsub.s32 4, %v3467
        %v3492 = vsel %vm3407, %v3491, %v3467
        %v3493 = vsel %vm3406, %v2355, %v3490
        %v3494 = vsel %vm3406, 0, %v3492
        %v3495 = vcosq.f32.pop %v3493
        %v3496 = vsinq.f32.pop %v3493
        %vm3497 = vweird.f32 %v2355
        %v3498 = vadd.s32 %v3494, 3
        %v3499 = vand.u32 %v3498, 3
        %vm3500 = vcmp.lt.s32.totalorder %v3499, 2
        %vm3501 = vcmp.eq.s32.totalorder %v3499, 0
        %v3502 = vxor.u32 %v3496, 2147483648
        %v3503 = vsel %vm3501, %v3495, %v3502
        %vm3504 = vcmp.eq.s32.totalorder %v3499, 2
        %v3505 = vxor.u32 %v3495, 2147483648
        %v3506 = vsel %vm3504, %v3505, %v3496
        %v3507 = vsel %vm3500, %v3503, %v3506
        %v3508 = vsel %vm3497, nan, %v3507
        %v3509 = vand.u32 2147483647, %v2357
        %vm3510 = vcmp.le.f32.partialorder %v3509, 0.7853982
        %vm3511 = vcmp.lt.s32.totalorder %v2357, 0
        %v3512 = vand.u32 %v2357, 2139095040
        %v3513 = vshrl.u32 %v3512, 23
        %v3514 = vsub.s32 %v3513, 127
        %v3515 = vand.u32 2147483647, %v2357
        %v3516 = vand.u32 %v3515, 8388607
        %v3517 = vor.u32 %v3516, 8388608
        %v3518 = vsub.s32 0, %v3517
        %v3519 = vadd.s32 %v3514, 1
        %vm3520 = vcmp.gt.s32.totalorder %v3519, 0
        %v3521 = vsel %vm3520, %v3519, 0
        %v3522 = vshrl.u32 %v3521, 5
        %v3523 = vand.u32 %v3521, 31
        %v3524 = vsub.s32 32, %v3523
        %v3525 = vshrl.u32 683565275, %v3524
        %v3526 = vshll.u32 683565275, %v3523
        %v3527 = vshrl.u32 2475754826, %v3524
        %v3528 = vor.u32 %v3526, %v3527
        %v3529 = vshll.u32 2475754826, %v3523
        %v3530 = vshrl.u32 2131351028, %v3524
        %v3531 = vor.u32 %v3529, %v3530
        %v3532 = vshll.u32 2131351028, %v3523
        %v3533 = vshrl.u32 2102212464, %v3524
        %v3534 = vor.u32 %v3532, %v3533
        %v3535 = vshll.u32 2102212464, %v3523
        %v3536 = vshrl.u32 920167782, %v3524
        %v3537 = vor.u32 %v3535, %v3536
        %v3538 = vshll.u32 920167782, %v3523
        %v3539 = vshrl.u32 1326507024, %v3524
        %v3540 = vor.u32 %v3538, %v3539
        %vm3541 = vcmp.lt.s32.totalorder %v3522, 1
        %vm3542 = vcmp.lt.s32.totalorder %v3522, 2
        %vm3543 = vcmp.lt.s32.totalorder %v3522, 3
        %vm3544 = vcmp.lt.s32.totalorder %v3522, 4
        %v3545 = vsel %vm3541, %v3525, %v3528
        %v3546 = vsel %vm3544, %v3534, 2102212464
        %v3547 = vsel %vm3543, %v3531, %v3546
        %v3548 = vsel %vm3542, %v3545, %v3547
        %v3549 = vsel %vm3541, %v3528, %v3531
        %v3550 = vsel %vm3544, %v3537, 920167782
        %v3551 = vsel %vm3543, %v3534, %v3550
        %v3552 = vsel %vm3542, %v3549, %v3551
        %v3553 = vsel %vm3541, %v3531, %v3534
        %v3554 = vsel %vm3544, %v3540, 1326507024
        %v3555 = vsel %vm3543, %v3537, %v3554
        %v3556 = vsel %vm3542, %v3553, %v3555
        %v3557 = vshll.u32 %v3517, 8
        %v3558 = vmul.u32.u64.compose %v3557, %v3556
        %v3559 = vextract.low.u32 %v3558
        %v3560 = vextract.high.u32 %v3558
        %v3561 = vmul.u32.u64.compose %v3557, %v3552
        %v3562 = vextract.low.u32 %v3561
        %v3563 = vextract.high.u32 %v3561
        %v3564 = vmul.u32 %v3557, %v3548
        %v3565 = vadd.s32 %v3560, %v3562
        %vm3566 = vc.u32 %v3560, %v3562
        %v3567 = vadd.s32 %v3563, 1
        %v3568 = vsel %vm3566, %v3567, %v3563
        %v3569 = vadd.s32 %v3564, %v3568
        %v3570 = vadd.s32 %v3569, 536870912
        %v3571 = vshrl.u32 %v3570, 30
        %v3572 = vshll.u32 %v3571, 30
        %v3573 = vsub.s32 %v3569, %v3572
        %vm3574 = vcmp.lt.s32.totalorder %v3573, 0
        %v3575 = vsub.s32 0, %v3573
        %v3576 = vsel %vm3574, %v3575, %v3573
        %v3577 = vclz %v3576
        %v3578 = vsub.s32 %v3577, 2
        %vm3579 = vcmp.gt.s32.totalorder 0, %v3578
        %v3580 = vsel %vm3579, 0, %v3578
        %v3581 = vsub.s32 32, %v3580
        %v3582 = vshll.u32 %v3573, %v3580
        %v3583 = vshrl.u32 %v3565, %v3581
        %v3584 = vor.u32 %v3582, %v3583
        %v3585 = vsub.s32 4294967266, %v3580
        %v3586 = vadd.s32 %v3585, 127
        %v3587 = vshll.u32 %v3586, 23
        %v3588 = vor.u32 4788187, %v3587
        %v3589 = vand.u32 2147483647, %v3588
        %v3591 = vcvt.s32.f32 %v3584
        %v3592 = vmul.f32 %v3591, %v3589
        %v3593 = vxor.u32 %v3592, 2147483648
        %v3594 = vsel %vm3511, %v3593, %v3592
        %v3595 = vsub.s32 4, %v3571
        %v3596 = vsel %vm3511, %v3595, %v3571
        %v3597 = vsel %vm3510, %v2357, %v3594
        %v3598 = vsel %vm3510, 0, %v3596
        %v3599 = vcosq.f32.pop %v3597
        %v3600 = vsinq.f32.pop %v3597
        %vm3601 = vweird.f32 %v2357
        %v3602 = vadd.s32 %v3598, 3
        %v3603 = vand.u32 %v3602, 3
        %vm3604 = vcmp.lt.s32.totalorder %v3603, 2
        %vm3605 = vcmp.eq.s32.totalorder %v3603, 0
        %v3606 = vxor.u32 %v3600, 2147483648
        %v3607 = vsel %vm3605, %v3599, %v3606
        %vm3608 = vcmp.eq.s32.totalorder %v3603, 2
        %v3609 = vxor.u32 %v3599, 2147483648
        %v3610 = vsel %vm3608, %v3609, %v3600
        %v3611 = vsel %vm3604, %v3607, %v3610
        %v3612 = vsel %vm3601, nan, %v3611
        %v3613 = vand.u32 2147483647, %v2272
        %vm3614 = vcmp.le.f32.partialorder %v3613, 0.7853982
        %vm3615 = vcmp.lt.s32.totalorder %v2272, 0
        %v3616 = vand.u32 %v2272, 2139095040
        %v3617 = vshrl.u32 %v3616, 23
        %v3618 = vsub.s32 %v3617, 127
        %v3619 = vand.u32 2147483647, %v2272
        %v3620 = vand.u32 %v3619, 8388607
        %v3621 = vor.u32 %v3620, 8388608
        %v3622 = vsub.s32 0, %v3621
        %v3623 = vadd.s32 %v3618, 1
        %vm3624 = vcmp.gt.s32.totalorder %v3623, 0
        %v3625 = vsel %vm3624, %v3623, 0
        %v3626 = vshrl.u32 %v3625, 5
        %v3627 = vand.u32 %v3625, 31
        %v3628 = vsub.s32 32, %v3627
        %v3629 = vshrl.u32 683565275, %v3628
        %v3630 = vshll.u32 683565275, %v3627
        %v3631 = vshrl.u32 2475754826, %v3628
        %v3632 = vor.u32 %v3630, %v3631
        %v3633 = vshll.u32 2475754826, %v3627
        %v3634 = vshrl.u32 2131351028, %v3628
        %v3635 = vor.u32 %v3633, %v3634
        %v3636 = vshll.u32 2131351028, %v3627
        %v3637 = vshrl.u32 2102212464, %v3628
        %v3638 = vor.u32 %v3636, %v3637
        %v3639 = vshll.u32 2102212464, %v3627
        %v3640 = vshrl.u32 920167782, %v3628
        %v3641 = vor.u32 %v3639, %v3640
        %v3642 = vshll.u32 920167782, %v3627
        %v3643 = vshrl.u32 1326507024, %v3628
        %v3644 = vor.u32 %v3642, %v3643
        %vm3645 = vcmp.lt.s32.totalorder %v3626, 1
        %vm3646 = vcmp.lt.s32.totalorder %v3626, 2
        %vm3647 = vcmp.lt.s32.totalorder %v3626, 3
        %vm3648 = vcmp.lt.s32.totalorder %v3626, 4
        %v3649 = vsel %vm3645, %v3629, %v3632
        %v3650 = vsel %vm3648, %v3638, 2102212464
        %v3651 = vsel %vm3647, %v3635, %v3650
        %v3652 = vsel %vm3646, %v3649, %v3651
        %v3653 = vsel %vm3645, %v3632, %v3635
        %v3654 = vsel %vm3648, %v3641, 920167782
        %v3655 = vsel %vm3647, %v3638, %v3654
        %v3656 = vsel %vm3646, %v3653, %v3655
        %v3657 = vsel %vm3645, %v3635, %v3638
        %v3658 = vsel %vm3648, %v3644, 1326507024
        %v3659 = vsel %vm3647, %v3641, %v3658
        %v3660 = vsel %vm3646, %v3657, %v3659
        %v3661 = vshll.u32 %v3621, 8
        %v3662 = vmul.u32.u64.compose %v3661, %v3660
        %v3663 = vextract.low.u32 %v3662
        %v3664 = vextract.high.u32 %v3662
        %v3665 = vmul.u32.u64.compose %v3661, %v3656
        %v3666 = vextract.low.u32 %v3665
        %v3667 = vextract.high.u32 %v3665
        %v3668 = vmul.u32 %v3661, %v3652
        %v3669 = vadd.s32 %v3664, %v3666
        %vm3670 = vc.u32 %v3664, %v3666
        %v3671 = vadd.s32 %v3667, 1
        %v3672 = vsel %vm3670, %v3671, %v3667
        %v3673 = vadd.s32 %v3668, %v3672
        %v3674 = vadd.s32 %v3673, 536870912
        %v3675 = vshrl.u32 %v3674, 30
        %v3676 = vshll.u32 %v3675, 30
        %v3677 = vsub.s32 %v3673, %v3676
        %vm3678 = vcmp.lt.s32.totalorder %v3677, 0
        %v3679 = vsub.s32 0, %v3677
        %v3680 = vsel %vm3678, %v3679, %v3677
        %v3681 = vclz %v3680
        %v3682 = vsub.s32 %v3681, 2
        %vm3683 = vcmp.gt.s32.totalorder 0, %v3682
        %v3684 = vsel %vm3683, 0, %v3682
        %v3685 = vsub.s32 32, %v3684
        %v3686 = vshll.u32 %v3677, %v3684
        %v3687 = vshrl.u32 %v3669, %v3685
        %v3688 = vor.u32 %v3686, %v3687
        %v3689 = vsub.s32 4294967266, %v3684
        %v3690 = vadd.s32 %v3689, 127
        %v3691 = vshll.u32 %v3690, 23
        %v3692 = vor.u32 4788187, %v3691
        %v3693 = vand.u32 2147483647, %v3692
        %v3695 = vcvt.s32.f32 %v3688
        %v3696 = vmul.f32 %v3695, %v3693
        %v3697 = vxor.u32 %v3696, 2147483648
        %v3698 = vsel %vm3615, %v3697, %v3696
        %v3699 = vsub.s32 4, %v3675
        %v3700 = vsel %vm3615, %v3699, %v3675
        %v3701 = vsel %vm3614, %v2272, %v3698
        %v3702 = vsel %vm3614, 0, %v3700
        %v3703 = vcosq.f32.pop %v3701
        %v3704 = vsinq.f32.pop %v3701
        %vm3705 = vweird.f32 %v2272
        %v3706 = vadd.s32 %v3702, 3
        %v3707 = vand.u32 %v3706, 3
        %vm3708 = vcmp.lt.s32.totalorder %v3707, 2
        %vm3709 = vcmp.eq.s32.totalorder %v3707, 0
        %v3710 = vxor.u32 %v3704, 2147483648
        %v3711 = vsel %vm3709, %v3703, %v3710
        %vm3712 = vcmp.eq.s32.totalorder %v3707, 2
        %v3713 = vxor.u32 %v3703, 2147483648
        %v3714 = vsel %vm3712, %v3713, %v3704
        %v3715 = vsel %vm3708, %v3711, %v3714
        %v3716 = vsel %vm3705, nan, %v3715
        %v3717 = vand.u32 2147483647, %v2274
        %vm3718 = vcmp.le.f32.partialorder %v3717, 0.7853982
        %vm3719 = vcmp.lt.s32.totalorder %v2274, 0
        %v3720 = vand.u32 %v2274, 2139095040
        %v3721 = vshrl.u32 %v3720, 23
        %v3722 = vsub.s32 %v3721, 127
        %v3723 = vand.u32 2147483647, %v2274
        %v3724 = vand.u32 %v3723, 8388607
        %v3725 = vor.u32 %v3724, 8388608
        %v3726 = vsub.s32 0, %v3725
        %v3727 = vadd.s32 %v3722, 1
        %vm3728 = vcmp.gt.s32.totalorder %v3727, 0
        %v3729 = vsel %vm3728, %v3727, 0
        %v3730 = vshrl.u32 %v3729, 5
        %v3731 = vand.u32 %v3729, 31
        %v3732 = vsub.s32 32, %v3731
        %v3733 = vshrl.u32 683565275, %v3732
        %v3734 = vshll.u32 683565275, %v3731
        %v3735 = vshrl.u32 2475754826, %v3732
        %v3736 = vor.u32 %v3734, %v3735
        %v3737 = vshll.u32 2475754826, %v3731
        %v3738 = vshrl.u32 2131351028, %v3732
        %v3739 = vor.u32 %v3737, %v3738
        %v3740 = vshll.u32 2131351028, %v3731
        %v3741 = vshrl.u32 2102212464, %v3732
        %v3742 = vor.u32 %v3740, %v3741
        %v3743 = vshll.u32 2102212464, %v3731
        %v3744 = vshrl.u32 920167782, %v3732
        %v3745 = vor.u32 %v3743, %v3744
        %v3746 = vshll.u32 920167782, %v3731
        %v3747 = vshrl.u32 1326507024, %v3732
        %v3748 = vor.u32 %v3746, %v3747
        %vm3749 = vcmp.lt.s32.totalorder %v3730, 1
        %vm3750 = vcmp.lt.s32.totalorder %v3730, 2
        %vm3751 = vcmp.lt.s32.totalorder %v3730, 3
        %vm3752 = vcmp.lt.s32.totalorder %v3730, 4
        %v3753 = vsel %vm3749, %v3733, %v3736
        %v3754 = vsel %vm3752, %v3742, 2102212464
        %v3755 = vsel %vm3751, %v3739, %v3754
        %v3756 = vsel %vm3750, %v3753, %v3755
        %v3757 = vsel %vm3749, %v3736, %v3739
        %v3758 = vsel %vm3752, %v3745, 920167782
        %v3759 = vsel %vm3751, %v3742, %v3758
        %v3760 = vsel %vm3750, %v3757, %v3759
        %v3761 = vsel %vm3749, %v3739, %v3742
        %v3762 = vsel %vm3752, %v3748, 1326507024
        %v3763 = vsel %vm3751, %v3745, %v3762
        %v3764 = vsel %vm3750, %v3761, %v3763
        %v3765 = vshll.u32 %v3725, 8
        %v3766 = vmul.u32.u64.compose %v3765, %v3764
        %v3767 = vextract.low.u32 %v3766
        %v3768 = vextract.high.u32 %v3766
        %v3769 = vmul.u32.u64.compose %v3765, %v3760
        %v3770 = vextract.low.u32 %v3769
        %v3771 = vextract.high.u32 %v3769
        %v3772 = vmul.u32 %v3765, %v3756
        %v3773 = vadd.s32 %v3768, %v3770
        %vm3774 = vc.u32 %v3768, %v3770
        %v3775 = vadd.s32 %v3771, 1
        %v3776 = vsel %vm3774, %v3775, %v3771
        %v3777 = vadd.s32 %v3772, %v3776
        %v3778 = vadd.s32 %v3777, 536870912
        %v3779 = vshrl.u32 %v3778, 30
        %v3780 = vshll.u32 %v3779, 30
        %v3781 = vsub.s32 %v3777, %v3780
        %vm3782 = vcmp.lt.s32.totalorder %v3781, 0
        %v3783 = vsub.s32 0, %v3781
        %v3784 = vsel %vm3782, %v3783, %v3781
        %v3785 = vclz %v3784
        %v3786 = vsub.s32 %v3785, 2
        %vm3787 = vcmp.gt.s32.totalorder 0, %v3786
        %v3788 = vsel %vm3787, 0, %v3786
        %v3789 = vsub.s32 32, %v3788
        %v3790 = vshll.u32 %v3781, %v3788
        %v3791 = vshrl.u32 %v3773, %v3789
        %v3792 = vor.u32 %v3790, %v3791
        %v3793 = vsub.s32 4294967266, %v3788
        %v3794 = vadd.s32 %v3793, 127
        %v3795 = vshll.u32 %v3794, 23
        %v3796 = vor.u32 4788187, %v3795
        %v3797 = vand.u32 2147483647, %v3796
        %v3799 = vcvt.s32.f32 %v3792
        %v3800 = vmul.f32 %v3799, %v3797
        %v3801 = vxor.u32 %v3800, 2147483648
        %v3802 = vsel %vm3719, %v3801, %v3800
        %v3803 = vsub.s32 4, %v3779
        %v3804 = vsel %vm3719, %v3803, %v3779
        %v3805 = vsel %vm3718, %v2274, %v3802
        %v3806 = vsel %vm3718, 0, %v3804
        %v3807 = vcosq.f32.pop %v3805
        %v3808 = vsinq.f32.pop %v3805
        %vm3809 = vweird.f32 %v2274
        %v3810 = vadd.s32 %v3806, 3
        %v3811 = vand.u32 %v3810, 3
        %vm3812 = vcmp.lt.s32.totalorder %v3811, 2
        %vm3813 = vcmp.eq.s32.totalorder %v3811, 0
        %v3814 = vxor.u32 %v3808, 2147483648
        %v3815 = vsel %vm3813, %v3807, %v3814
        %vm3816 = vcmp.eq.s32.totalorder %v3811, 2
        %v3817 = vxor.u32 %v3807, 2147483648
        %v3818 = vsel %vm3816, %v3817, %v3808
        %v3819 = vsel %vm3812, %v3815, %v3818
        %v3820 = vsel %vm3809, nan, %v3819
        %v3821 = vand.u32 2147483647, %v2361
        %vm3822 = vcmp.le.f32.partialorder %v3821, 0.7853982
        %vm3823 = vcmp.lt.s32.totalorder %v2361, 0
        %v3824 = vand.u32 %v2361, 2139095040
        %v3825 = vshrl.u32 %v3824, 23
        %v3826 = vsub.s32 %v3825, 127
        %v3827 = vand.u32 2147483647, %v2361
        %v3828 = vand.u32 %v3827, 8388607
        %v3829 = vor.u32 %v3828, 8388608
        %v3830 = vsub.s32 0, %v3829
        %v3831 = vadd.s32 %v3826, 1
        %vm3832 = vcmp.gt.s32.totalorder %v3831, 0
        %v3833 = vsel %vm3832, %v3831, 0
        %v3834 = vshrl.u32 %v3833, 5
        %v3835 = vand.u32 %v3833, 31
        %v3836 = vsub.s32 32, %v3835
        %v3837 = vshrl.u32 683565275, %v3836
        %v3838 = vshll.u32 683565275, %v3835
        %v3839 = vshrl.u32 2475754826, %v3836
        %v3840 = vor.u32 %v3838, %v3839
        %v3841 = vshll.u32 2475754826, %v3835
        %v3842 = vshrl.u32 2131351028, %v3836
        %v3843 = vor.u32 %v3841, %v3842
        %v3844 = vshll.u32 2131351028, %v3835
        %v3845 = vshrl.u32 2102212464, %v3836
        %v3846 = vor.u32 %v3844, %v3845
        %v3847 = vshll.u32 2102212464, %v3835
        %v3848 = vshrl.u32 920167782, %v3836
        %v3849 = vor.u32 %v3847, %v3848
        %v3850 = vshll.u32 920167782, %v3835
        %v3851 = vshrl.u32 1326507024, %v3836
        %v3852 = vor.u32 %v3850, %v3851
        %vm3853 = vcmp.lt.s32.totalorder %v3834, 1
        %vm3854 = vcmp.lt.s32.totalorder %v3834, 2
        %vm3855 = vcmp.lt.s32.totalorder %v3834, 3
        %vm3856 = vcmp.lt.s32.totalorder %v3834, 4
        %v3857 = vsel %vm3853, %v3837, %v3840
        %v3858 = vsel %vm3856, %v3846, 2102212464
        %v3859 = vsel %vm3855, %v3843, %v3858
        %v3860 = vsel %vm3854, %v3857, %v3859
        %v3861 = vsel %vm3853, %v3840, %v3843
        %v3862 = vsel %vm3856, %v3849, 920167782
        %v3863 = vsel %vm3855, %v3846, %v3862
        %v3864 = vsel %vm3854, %v3861, %v3863
        %v3865 = vsel %vm3853, %v3843, %v3846
        %v3866 = vsel %vm3856, %v3852, 1326507024
        %v3867 = vsel %vm3855, %v3849, %v3866
        %v3868 = vsel %vm3854, %v3865, %v3867
        %v3869 = vshll.u32 %v3829, 8
        %v3870 = vmul.u32.u64.compose %v3869, %v3868
        %v3871 = vextract.low.u32 %v3870
        %v3872 = vextract.high.u32 %v3870
        %v3873 = vmul.u32.u64.compose %v3869, %v3864
        %v3874 = vextract.low.u32 %v3873
        %v3875 = vextract.high.u32 %v3873
        %v3876 = vmul.u32 %v3869, %v3860
        %v3877 = vadd.s32 %v3872, %v3874
        %vm3878 = vc.u32 %v3872, %v3874
        %v3879 = vadd.s32 %v3875, 1
        %v3880 = vsel %vm3878, %v3879, %v3875
        %v3881 = vadd.s32 %v3876, %v3880
        %v3882 = vadd.s32 %v3881, 536870912
        %v3883 = vshrl.u32 %v3882, 30
        %v3884 = vshll.u32 %v3883, 30
        %v3885 = vsub.s32 %v3881, %v3884
        %vm3886 = vcmp.lt.s32.totalorder %v3885, 0
        %v3887 = vsub.s32 0, %v3885
        %v3888 = vsel %vm3886, %v3887, %v3885
        %v3889 = vclz %v3888
        %v3890 = vsub.s32 %v3889, 2
        %vm3891 = vcmp.gt.s32.totalorder 0, %v3890
        %v3892 = vsel %vm3891, 0, %v3890
        %v3893 = vsub.s32 32, %v3892
        %v3894 = vshll.u32 %v3885, %v3892
        %v3895 = vshrl.u32 %v3877, %v3893
        %v3896 = vor.u32 %v3894, %v3895
        %v3897 = vsub.s32 4294967266, %v3892
        %v3898 = vadd.s32 %v3897, 127
        %v3899 = vshll.u32 %v3898, 23
        %v3900 = vor.u32 4788187, %v3899
        %v3901 = vand.u32 2147483647, %v3900
        %v3903 = vcvt.s32.f32 %v3896
        %v3904 = vmul.f32 %v3903, %v3901
        %v3905 = vxor.u32 %v3904, 2147483648
        %v3906 = vsel %vm3823, %v3905, %v3904
        %v3907 = vsub.s32 4, %v3883
        %v3908 = vsel %vm3823, %v3907, %v3883
        %v3909 = vsel %vm3822, %v2361, %v3906
        %v3910 = vsel %vm3822, 0, %v3908
        %v3911 = vcosq.f32.pop %v3909
        %v3912 = vsinq.f32.pop %v3909
        %vm3913 = vweird.f32 %v2361
        %v3914 = vadd.s32 %v3910, 3
        %v3915 = vand.u32 %v3914, 3
        %vm3916 = vcmp.lt.s32.totalorder %v3915, 2
        %vm3917 = vcmp.eq.s32.totalorder %v3915, 0
        %v3918 = vxor.u32 %v3912, 2147483648
        %v3919 = vsel %vm3917, %v3911, %v3918
        %vm3920 = vcmp.eq.s32.totalorder %v3915, 2
        %v3921 = vxor.u32 %v3911, 2147483648
        %v3922 = vsel %vm3920, %v3921, %v3912
        %v3923 = vsel %vm3916, %v3919, %v3922
        %v3924 = vsel %vm3913, nan, %v3923
        %v3925 = vand.u32 2147483647, %v2363
        %vm3926 = vcmp.le.f32.partialorder %v3925, 0.7853982
        %vm3927 = vcmp.lt.s32.totalorder %v2363, 0
        %v3928 = vand.u32 %v2363, 2139095040
        %v3929 = vshrl.u32 %v3928, 23
        %v3930 = vsub.s32 %v3929, 127
        %v3931 = vand.u32 2147483647, %v2363
        %v3932 = vand.u32 %v3931, 8388607
        %v3933 = vor.u32 %v3932, 8388608
        %v3934 = vsub.s32 0, %v3933
        %v3935 = vadd.s32 %v3930, 1
        %vm3936 = vcmp.gt.s32.totalorder %v3935, 0
        %v3937 = vsel %vm3936, %v3935, 0
        %v3938 = vshrl.u32 %v3937, 5
        %v3939 = vand.u32 %v3937, 31
        %v3940 = vsub.s32 32, %v3939
        %v3941 = vshrl.u32 683565275, %v3940
        %v3942 = vshll.u32 683565275, %v3939
        %v3943 = vshrl.u32 2475754826, %v3940
        %v3944 = vor.u32 %v3942, %v3943
        %v3945 = vshll.u32 2475754826, %v3939
        %v3946 = vshrl.u32 2131351028, %v3940
        %v3947 = vor.u32 %v3945, %v3946
        %v3948 = vshll.u32 2131351028, %v3939
        %v3949 = vshrl.u32 2102212464, %v3940
        %v3950 = vor.u32 %v3948, %v3949
        %v3951 = vshll.u32 2102212464, %v3939
        %v3952 = vshrl.u32 920167782, %v3940
        %v3953 = vor.u32 %v3951, %v3952
        %v3954 = vshll.u32 920167782, %v3939
        %v3955 = vshrl.u32 1326507024, %v3940
        %v3956 = vor.u32 %v3954, %v3955
        %vm3957 = vcmp.lt.s32.totalorder %v3938, 1
        %vm3958 = vcmp.lt.s32.totalorder %v3938, 2
        %vm3959 = vcmp.lt.s32.totalorder %v3938, 3
        %vm3960 = vcmp.lt.s32.totalorder %v3938, 4
        %v3961 = vsel %vm3957, %v3941, %v3944
        %v3962 = vsel %vm3960, %v3950, 2102212464
        %v3963 = vsel %vm3959, %v3947, %v3962
        %v3964 = vsel %vm3958, %v3961, %v3963
        %v3965 = vsel %vm3957, %v3944, %v3947
        %v3966 = vsel %vm3960, %v3953, 920167782
        %v3967 = vsel %vm3959, %v3950, %v3966
        %v3968 = vsel %vm3958, %v3965, %v3967
        %v3969 = vsel %vm3957, %v3947, %v3950
        %v3970 = vsel %vm3960, %v3956, 1326507024
        %v3971 = vsel %vm3959, %v3953, %v3970
        %v3972 = vsel %vm3958, %v3969, %v3971
        %v3973 = vshll.u32 %v3933, 8
        %v3974 = vmul.u32.u64.compose %v3973, %v3972
        %v3975 = vextract.low.u32 %v3974
        %v3976 = vextract.high.u32 %v3974
        %v3977 = vmul.u32.u64.compose %v3973, %v3968
        %v3978 = vextract.low.u32 %v3977
        %v3979 = vextract.high.u32 %v3977
        %v3980 = vmul.u32 %v3973, %v3964
        %v3981 = vadd.s32 %v3976, %v3978
        %vm3982 = vc.u32 %v3976, %v3978
        %v3983 = vadd.s32 %v3979, 1
        %v3984 = vsel %vm3982, %v3983, %v3979
        %v3985 = vadd.s32 %v3980, %v3984
        %v3986 = vadd.s32 %v3985, 536870912
        %v3987 = vshrl.u32 %v3986, 30
        %v3988 = vshll.u32 %v3987, 30
        %v3989 = vsub.s32 %v3985, %v3988
        %vm3990 = vcmp.lt.s32.totalorder %v3989, 0
        %v3991 = vsub.s32 0, %v3989
        %v3992 = vsel %vm3990, %v3991, %v3989
        %v3993 = vclz %v3992
        %v3994 = vsub.s32 %v3993, 2
        %vm3995 = vcmp.gt.s32.totalorder 0, %v3994
        %v3996 = vsel %vm3995, 0, %v3994
        %v3997 = vsub.s32 32, %v3996
        %v3998 = vshll.u32 %v3989, %v3996
        %v3999 = vshrl.u32 %v3981, %v3997
        %v4000 = vor.u32 %v3998, %v3999
        %v4001 = vsub.s32 4294967266, %v3996
        %v4002 = vadd.s32 %v4001, 127
        %v4003 = vshll.u32 %v4002, 23
        %v4004 = vor.u32 4788187, %v4003
        %v4005 = vand.u32 2147483647, %v4004
        %v4007 = vcvt.s32.f32 %v4000
        %v4008 = vmul.f32 %v4007, %v4005
        %v4009 = vxor.u32 %v4008, 2147483648
        %v4010 = vsel %vm3927, %v4009, %v4008
        %v4011 = vsub.s32 4, %v3987
        %v4012 = vsel %vm3927, %v4011, %v3987
        %v4013 = vsel %vm3926, %v2363, %v4010
        %v4014 = vsel %vm3926, 0, %v4012
        %v4015 = vcosq.f32.pop %v4013
        %v4016 = vsinq.f32.pop %v4013
        %vm4017 = vweird.f32 %v2363
        %v4018 = vadd.s32 %v4014, 3
        %v4019 = vand.u32 %v4018, 3
        %vm4020 = vcmp.lt.s32.totalorder %v4019, 2
        %vm4021 = vcmp.eq.s32.totalorder %v4019, 0
        %v4022 = vxor.u32 %v4016, 2147483648
        %v4023 = vsel %vm4021, %v4015, %v4022
        %vm4024 = vcmp.eq.s32.totalorder %v4019, 2
        %v4025 = vxor.u32 %v4015, 2147483648
        %v4026 = vsel %vm4024, %v4025, %v4016
        %v4027 = vsel %vm4020, %v4023, %v4026
        %v4028 = vsel %vm4017, nan, %v4027
        %v4029 = vld [vmem:[%s5] sm:$0x7]
        %v4030 = vld [vmem:[%s6] sm:$0x7]
        %4032 = vset.pattern.permute.xlu0 0
        %4033 = vperm.xlu0 %4032, %v4030
        %v4034 = vpop.permute.xlu0 %4033
        %v4037 = vsel %vm2174, %v4029, 0
        %4039 = vmatprep.subr.mxu0 0.0
        %4040 = vmatpush1.msra.mxu0 0.0
        %4041 = vmatprep.subr.mxu0 0.0
        %4042 = vmatpush1.msra.mxu0 0.0
        %4043 = vmatprep.subr.mxu0 0.0
        %4044 = vmatpush1.msra.mxu0 0.0
        %4045 = vmatprep.subr.mxu0 0.0
        %4046 = vmatpush1.msra.mxu0 0.0
        %4047 = vmatprep.subr.mxu0 0.0
        %4048 = vmatpush1.msra.mxu0 0.0
        %4049 = vmatprep.subr.mxu0 0.0
        %4050 = vmatpush1.msra.mxu0 0.0
        %4051 = vmatprep.subr.mxu0 0.0
        %4052 = vmatpush1.msra.mxu0 0.0
        %4053 = vmatprep.subr.mxu0 0.0
        %4054 = vmatpush1.msra.mxu0 0.0
        %4055 = vmatprep.subr.mxu0 0.0
        %4056 = vmatpush1.msra.mxu0 0.0
        %4057 = vmatprep.subr.mxu0 0.0
        %4058 = vmatpush1.msra.mxu0 0.0
        %4059 = vmatprep.subr.mxu0 0.0
        %4060 = vmatpush1.msra.mxu0 0.0
        %4061 = vmatprep.subr.mxu0 0.0
        %4062 = vmatpush1.msra.mxu0 0.0
        %4063 = vmatprep.subr.mxu0 %v3820
        %4064 = vmatpush1.msra.mxu0 %v3716
        %4065 = vmatprep.subr.mxu0 %v3404
        %4066 = vmatpush1.msra.mxu0 %v3300
        %4067 = vmatprep.subr.mxu0 %v2988
        %4068 = vmatpush1.msra.mxu0 %v2884
        %4069 = vmatprep.subr.mxu0 %v2572
        %4070 = vmatpush1.msra.mxu0 %v2468
        %4071 = vmatprep.subr.mxu0 0.0
        %4072 = vmatpush2.msra.mxu0 0.0
        %4073 = vmatprep.subr.mxu0 0.0
        %4074 = vmatpush2.msra.mxu0 0.0
        %4075 = vmatprep.subr.mxu0 0.0
        %4076 = vmatpush2.msra.mxu0 0.0
        %4077 = vmatprep.subr.mxu0 0.0
        %4078 = vmatpush2.msra.mxu0 0.0
        %4079 = vmatprep.subr.mxu0 0.0
        %4080 = vmatpush2.msra.mxu0 0.0
        %4081 = vmatprep.subr.mxu0 0.0
        %4082 = vmatpush2.msra.mxu0 0.0
        %4083 = vmatprep.subr.mxu0 0.0
        %4084 = vmatpush2.msra.mxu0 0.0
        %4085 = vmatprep.subr.mxu0 0.0
        %4086 = vmatpush2.msra.mxu0 0.0
        %4087 = vmatprep.subr.mxu0 0.0
        %4088 = vmatpush2.msra.mxu0 0.0
        %4089 = vmatprep.subr.mxu0 0.0
        %4090 = vmatpush2.msra.mxu0 0.0
        %4091 = vmatprep.subr.mxu0 0.0
        %4092 = vmatpush2.msra.mxu0 0.0
        %4093 = vmatprep.subr.mxu0 0.0
        %4094 = vmatpush2.msra.mxu0 0.0
        %4095 = vmatprep.subr.mxu0 0.0
        %4096 = vmatpush2.msra.mxu0 0.0
        %4097 = vmatprep.subr.mxu0 0.0
        %4098 = vmatpush2.msra.mxu0 0.0
        %4099 = vmatprep.subr.mxu0 0.0
        %4100 = vmatpush2.msra.mxu0 0.0
        %4101 = vmatprep.subr.mxu0 0.0
        %4102 = vmatpush2.msra.mxu0 0.0
        %4103 = vmatprep.mubr.f32.mxu0 0.0
        %4104 = vmatmul.mubr.f32.gmra.mxu0 %v4037
        %v4105 = vpop.f32.mrf.mxu0
        %v4106 = vadd.f32 %v4034, %v4105
        %v4107 = vpop.f32.mrf.mxu0
        %v4108 = vadd.f32 %v4034, %v4107
        %4109 = vdwg.mxu0
        %4110 = vmatprep.subr.mxu0 0.0
        %4111 = vmatpush1.msra.mxu0 0.0
        %4112 = vmatprep.subr.mxu0 0.0
        %4113 = vmatpush1.msra.mxu0 0.0
        %4114 = vmatprep.subr.mxu0 0.0
        %4115 = vmatpush1.msra.mxu0 0.0
        %4116 = vmatprep.subr.mxu0 0.0
        %4117 = vmatpush1.msra.mxu0 0.0
        %4118 = vmatprep.subr.mxu0 0.0
        %4119 = vmatpush1.msra.mxu0 0.0
        %4120 = vmatprep.subr.mxu0 0.0
        %4121 = vmatpush1.msra.mxu0 0.0
        %4122 = vmatprep.subr.mxu0 0.0
        %4123 = vmatpush1.msra.mxu0 0.0
        %4124 = vmatprep.subr.mxu0 0.0
        %4125 = vmatpush1.msra.mxu0 0.0
        %4126 = vmatprep.subr.mxu0 0.0
        %4127 = vmatpush1.msra.mxu0 0.0
        %4128 = vmatprep.subr.mxu0 0.0
        %4129 = vmatpush1.msra.mxu0 0.0
        %4130 = vmatprep.subr.mxu0 0.0
        %4131 = vmatpush1.msra.mxu0 0.0
        %4132 = vmatprep.subr.mxu0 0.0
        %4133 = vmatpush1.msra.mxu0 0.0
        %4134 = vmatprep.subr.mxu0 %v4028
        %4135 = vmatpush1.msra.mxu0 %v3924
        %4136 = vmatprep.subr.mxu0 %v3612
        %4137 = vmatpush1.msra.mxu0 %v3508
        %4138 = vmatprep.subr.mxu0 %v3196
        %4139 = vmatpush1.msra.mxu0 %v3092
        %4140 = vmatprep.subr.mxu0 %v2780
        %4141 = vmatpush1.msra.mxu0 %v2676
        %4142 = vmatprep.subr.mxu0 0.0
        %4143 = vmatpush2.msra.mxu0 0.0
        %4144 = vmatprep.subr.mxu0 0.0
        %4145 = vmatpush2.msra.mxu0 0.0
        %4146 = vmatprep.subr.mxu0 0.0
        %4147 = vmatpush2.msra.mxu0 0.0
        %4148 = vmatprep.subr.mxu0 0.0
        %4149 = vmatpush2.msra.mxu0 0.0
        %4150 = vmatprep.subr.mxu0 0.0
        %4151 = vmatpush2.msra.mxu0 0.0
        %4152 = vmatprep.subr.mxu0 0.0
        %4153 = vmatpush2.msra.mxu0 0.0
        %4154 = vmatprep.subr.mxu0 0.0
        %4155 = vmatpush2.msra.mxu0 0.0
        %4156 = vmatprep.subr.mxu0 0.0
        %4157 = vmatpush2.msra.mxu0 0.0
        %4158 = vmatprep.subr.mxu0 0.0
        %4159 = vmatpush2.msra.mxu0 0.0
        %4160 = vmatprep.subr.mxu0 0.0
        %4161 = vmatpush2.msra.mxu0 0.0
        %4162 = vmatprep.subr.mxu0 0.0
        %4163 = vmatpush2.msra.mxu0 0.0
        %4164 = vmatprep.subr.mxu0 0.0
        %4165 = vmatpush2.msra.mxu0 0.0
        %4166 = vmatprep.subr.mxu0 0.0
        %4167 = vmatpush2.msra.mxu0 0.0
        %4168 = vmatprep.subr.mxu0 0.0
        %4169 = vmatpush2.msra.mxu0 0.0
        %4170 = vmatprep.subr.mxu0 0.0
        %4171 = vmatpush2.msra.mxu0 0.0
        %4172 = vmatprep.subr.mxu0 0.0
        %4173 = vmatpush2.msra.mxu0 0.0
        %4174 = vmatprep.mubr.f32.mxu0 0.0
        %4175 = vmatmul.mubr.f32.gmra.mxu0 %v4037
        %v4176 = vpop.f32.mrf.mxu0
        %v4177 = vadd.f32 %v4034, %v4176
        %v4178 = vpop.f32.mrf.mxu0
        %v4179 = vadd.f32 %v4034, %v4178
        %4180 = vdwg.mxu0
        %v4185 = vcombine.low %v4106, %v4108
        %v4186 = vcombine.low %v4177, %v4179
        %4189 = vst [vmem:[%s272] sm:$0x77] %v4185
        %4190 = vst [vmem:[%s272 + $0x8] sm:$0x77] %v4186
        %s4191 = sand.u32 %s181, 1
        %s4192 = scalar_lea.sflag [#allocation3], %s4191
        %s4193 = sand.u32 %s181, 1
        %s4194 = smul.addr %s4193, 16
        %s4195 = scalar_lea.vmem [#allocation2], %s4194
        // Predicated region
        $region49: #{tpu_custom_call.1} parent=47 // pred_check
          %p4196 = pneg %p191
        $region50: #{tpu_custom_call.1} parent=47 // pred_check_branch
          %4198 = sbr.rel (%p4196) target = $region52
        $region51: #{tpu_custom_call.1} parent=47 // pred_region
          %s4199 = smul.u32 4, %s21
          %s4201 = ssub.s32 256, 256
          %4202 = vsyncadd %s4192, %s4201
          %s4203 = smul.addr %s4199, 64
          %s4204 = scalar_lea.hbm %s7, %s4203
          %s4206 = sshll.u32 %s4195, 4
          %s4207 = int_to_ptr.vmem [resolvable:$true] %s4206
          %4209 = dma.vmem_to_hbm [thread:$0]  %s4207, 256, %s4204, %s4192
        $region52: #{tpu_custom_call.1} parent=47 // pred_fallthru
          _
      $region48: #{tpu_custom_call.1} parent=5 // pred_fallthru
        _
      %p4210 = scmp.le.s32.totalorder 2, %s16
      // Predicated region
      $region53: #{tpu_custom_call.1} parent=5 // pred_check
        %p4211 = pneg %p4210
      $region54: #{tpu_custom_call.1} parent=5 // pred_check_branch
        %4213 = sbr.rel (%p4211) target = $region56
      $region55: #{tpu_custom_call.1} parent=5 // pred_region
        %s4214 = ssub.s32 %s16, 2
        // Predicated region
        $region57: #{tpu_custom_call.1} parent=55 // pred_check
          %p4215 = pneg %p197
        $region58: #{tpu_custom_call.1} parent=55 // pred_check_branch
          %4217 = sbr.rel (%p4215) target = $region60
        $region59: #{tpu_custom_call.1} parent=55 // pred_region
          %s4218 = sand.u32 %s182, 1
          %s4219 = scalar_lea.sflag [#allocation3], %s4218
          %s4220 = sand.u32 %s182, 1
          %s4221 = smul.addr %s4220, 16
          %s4222 = scalar_lea.vmem [#allocation2], %s4221
          %4223 = dma.done %s4219, 256
        $region60: #{tpu_custom_call.1} parent=55 // pred_fallthru
          _
      $region56: #{tpu_custom_call.1} parent=5 // pred_fallthru
        _
    $region6: #{tpu_custom_call.1} parent=1 // loop_footer
      %s20 = sadd.s32 1, %s16
    $region7: #{tpu_custom_call.1} parent=1 // loop_footer_branch
      %15 = sbr.rel target = $region3
    $region8: #{tpu_custom_call.1} parent=1 // loop_exit
      _
    %4224 = vsyncpa [#allocation3], 1
    %s4225 = scalar_lea.sflag [#allocation3], 1
    %4226 = vsyncpa %s4225, 1

</llo_original>
